<compile_context>
chip_gen: v6e
topology: v6e:2x2x1
jax: 0.10.0
libtpu: 0.0.40
codegen_flags: <defaults>
</compile_context>

<pallas_src>
import functools
import math

import jax
import jax.numpy as jnp
from jax.experimental import pallas as pl
from jax.experimental.pallas import tpu as pltpu

_LN_EPS = 1e-12
_OUT_PAD = 128   # lane-dense padding for the 17-wide classifier output


def _layernorm(y, g, b, eps):
    """Row layernorm in f32; g, b are (1, H)."""
    mu = jnp.mean(y, axis=-1, keepdims=True)
    var = jnp.mean(jnp.square(y - mu), axis=-1, keepdims=True)
    return (y - mu) * jax.lax.rsqrt(var + eps) * g + b


# -----------------------------------------------------------------------------
# Single fused kernel: emb-LN -> L x (attn block + FFN block) -> pooler -> fc
# grid = (batch, layer); activations stay resident in VMEM scratch across layers
# -----------------------------------------------------------------------------
def _encoder_kernel(x_ref, mask_ref, embg_ref, embb_ref,
                    wqkv_ref, bqkv_ref, wo_ref, bo_ref, ln1g_ref, ln1b_ref,
                    wi_ref, bi_ref, wo2_ref, bo2_ref, ln2g_ref, ln2b_ref,
                    pw_ref, pb_ref, fw_ref, fb_ref,
                    logits_ref,
                    x_res,
                    *, num_heads, head_dim, eps):
    l = pl.program_id(1)

    # ---- layer 0: fold the embedding layernorm into the first grid step ----
    @pl.when(l == 0)
    def _():
        x0 = x_ref[...].astype(jnp.float32)
        x_res[...] = _layernorm(x0, embg_ref[...], embb_ref[...], eps)

    x = x_res[...]                                      # (S, H) f32, VMEM-resident
    S, H = x.shape

    # ---- self-attention: fused QKV matmul, heads batched in one dot_general ----
    qkv = jnp.dot(x.astype(jnp.bfloat16), wqkv_ref[0],
                  preferred_element_type=jnp.float32) + bqkv_ref[0]    # (S, 3H)
    q = qkv[:, 0:H].reshape(S, num_heads, head_dim)
    k = qkv[:, H:2 * H].reshape(S, num_heads, head_dim)
    v = qkv[:, 2 * H:3 * H].reshape(S, num_heads, head_dim)

    scale = 1.0 / math.sqrt(head_dim)
    s = jnp.einsum('qhd,khd->hqk', q, k,
                   preferred_element_type=jnp.float32) * scale         # (nH,S,S)
    s = s + mask_ref[0]                                 # additive key mask (1, S)
    s = s - jnp.max(s, axis=-1, keepdims=True)
    p = jnp.exp(s)
    p = p / jnp.sum(p, axis=-1, keepdims=True)          # exact softmax (f32)
    ctx = jnp.einsum('hqk,khd->qhd', p, v,
                     preferred_element_type=jnp.float32)               # (S,nH,hd)
    ctx = ctx.reshape(S, H)

    attn = jnp.dot(ctx.astype(jnp.bfloat16), wo_ref[0],
                   preferred_element_type=jnp.float32) + bo_ref[0]
    y = _layernorm(x + attn, ln1g_ref[0], ln1b_ref[0], eps)

    # ---- FFN: intermediate + GELU + output + residual + LN ----
    h = jnp.dot(y.astype(jnp.bfloat16), wi_ref[0],
                preferred_element_type=jnp.float32) + bi_ref[0]
    # TODO(synk): HF BERT default is exact erf GELU; tanh approximation used here.
    c = math.sqrt(2.0 / math.pi)
    h = 0.5 * h * (1.0 + jnp.tanh(c * (h + 0.044715 * h * h * h)))
    z = jnp.dot(h.astype(jnp.bfloat16), wo2_ref[0],
                preferred_element_type=jnp.float32) + bo2_ref[0]
    z = _layernorm(y + z, ln2g_ref[0], ln2b_ref[0], eps)
    x_res[...] = z                                      # stays resident for l + 1

    # ---- last layer: pooler(tanh) + dropout(eval=identity) + fc head ----
    @pl.when(l == pl.num_programs(1) - 1)
    def _():
        cls = z[0:1, :]                                 # h_[CLS], (1, H)
        pooled = jnp.tanh(
            jnp.dot(cls.astype(jnp.bfloat16), pw_ref[...],
                    preferred_element_type=jnp.float32) + pb_ref[...])
        # dropout(p=0.2) is identity at inference.
        # TODO(synk): training-mode stochastic dropout (pltpu.prng_*) not exercised.
        logits = jnp.dot(pooled.astype(jnp.bfloat16), fw_ref[...],
                         preferred_element_type=jnp.float32) + fb_ref[...]
        logits_ref[...] = logits.reshape(1, 1, -1).astype(logits_ref.dtype)


def encoder_classifier(x, add_mask, p, *, num_heads, seq_len, eps=_LN_EPS):
    M, H = x.shape
    B = M // seq_len
    L = p["wqkv"].shape[0]
    I = p["wi"].shape[-1]
    OUT_PAD = p["fc_w"].shape[-1]

    const = lambda shp: pl.BlockSpec(shp, lambda b, l: (0,) * len(shp))
    layer = lambda shp: pl.BlockSpec(shp, lambda b, l: (l, 0, 0))

    kernel = functools.partial(_encoder_kernel, num_heads=num_heads,
                               head_dim=H // num_heads, eps=eps)

    grid_spec = pltpu.PrefetchScalarGridSpec(
        num_scalar_prefetch=0,
        grid=(B, L),
        in_specs=[
            pl.BlockSpec((seq_len, H), lambda b, l: (b, 0)),         # embeddings
            pl.BlockSpec((1, 1, seq_len), lambda b, l: (b, 0, 0)),   # additive mask
            const((1, H)), const((1, H)),                             # emb LN g, b
            layer((1, H, 3 * H)), layer((1, 1, 3 * H)),               # fused Wq|Wk|Wv
            layer((1, H, H)), layer((1, 1, H)),                       # attn out proj
            layer((1, 1, H)), layer((1, 1, H)),                       # LN1 g, b
            layer((1, H, I)), layer((1, 1, I)),                       # FFN in
            layer((1, I, H)), layer((1, 1, H)),                       # FFN out
            layer((1, 1, H)), layer((1, 1, H)),                       # LN2 g, b
            const((H, H)), const((1, H)),                             # pooler
            const((H, OUT_PAD)), const((1, OUT_PAD)),                 # fc (padded)
        ],
        out_specs=pl.BlockSpec((1, 1, OUT_PAD), lambda b, l: (b, 0, 0)),
        scratch_shapes=[pltpu.VMEM((seq_len, H), jnp.float32)],       # resident x
    )
    return pl.pallas_call(
        kernel,
        out_shape=jax.ShapeDtypeStruct((B, 1, OUT_PAD), jnp.float32),
        grid_spec=grid_spec,
        compiler_params=pltpu.CompilerParams(
            dimension_semantics=("parallel", "arbitrary"),
            vmem_limit_bytes=32 * 1024 * 1024),
    )(x, add_mask,
      p["emb_ln_g"], p["emb_ln_b"],
      p["wqkv"], p["bqkv"], p["wo"], p["bo"], p["ln1_g"], p["ln1_b"],
      p["wi"], p["bi"], p["wo2"], p["bo2"], p["ln2_g"], p["ln2_b"],
      p["pool_w"], p["pool_b"], p["fc_w"], p["fc_b"])


# -----------------------------------------------------------------------------
# Parameters (stacked per-layer, weights pre-cast to bf16, fc pre-padded)
# -----------------------------------------------------------------------------
def init_params(key, *, vocab, max_pos, hidden, heads, layers, intermediate,
                output_dim):
    H, I, L = hidden, intermediate, layers
    out_pad = max(_OUT_PAD, ((output_dim + 127) // 128) * 128)

    def nrm(k, shape, std=0.02):
        return (std * jax.random.normal(k, shape)).astype(jnp.float32)

    zeros = lambda s: jnp.zeros(s, jnp.float32)
    ones = lambda s: jnp.ones(s, jnp.float32)
    bf16 = lambda a: a.astype(jnp.bfloat16)   # pre-cast weights once (HBM bf16)
    keys = iter(jax.random.split(key, 32))

    # hoisted one-time lane-padding of the 17-wide classifier to 128 lanes
    fc_w = nrm(next(keys), (H, output_dim))
    fc_w_pad = jnp.zeros((H, out_pad), jnp.float32).at[:, :output_dim].set(fc_w)
    fc_b_pad = jnp.zeros((1, out_pad), jnp.float32)

    return {
        "cfg": dict(hidden=H, heads=heads, layers=L, output_dim=output_dim),
        "emb": {
            "word": nrm(next(keys), (vocab, H)),
            "pos": nrm(next(keys), (max_pos, H)),
            "type": nrm(next(keys), (2, H)),
        },
        "emb_ln_g": ones((1, H)), "emb_ln_b": zeros((1, H)),
        # per-layer weights stacked along a leading L axis (picked by index_map)
        "wqkv": bf16(nrm(next(keys), (L, H, 3 * H))), "bqkv": zeros((L, 1, 3 * H)),
        "wo": bf16(nrm(next(keys), (L, H, H))),       "bo": zeros((L, 1, H)),
        "ln1_g": ones((L, 1, H)), "ln1_b": zeros((L, 1, H)),
        "wi": bf16(nrm(next(keys), (L, H, I))),       "bi": zeros((L, 1, I)),
        "wo2": bf16(nrm(next(keys), (L, I, H))),      "bo2": zeros((L, 1, H)),
        "ln2_g": ones((L, 1, H)), "ln2_b": zeros((L, 1, H)),
        "pool_w": bf16(nrm(next(keys), (H, H))), "pool_b": zeros((1, H)),
        "fc_w": bf16(fc_w_pad), "fc_b": fc_b_pad,
    }


def classifier_forward(params, input_ids, attention_mask):
    cfg = params["cfg"]
    H, nH, out_dim = cfg["hidden"], cfg["heads"], cfg["output_dim"]
    B, S = input_ids.shape

    # embeddings: gather/add is cheap XLA glue; layernorm is fused into layer 0
    emb = params["emb"]
    # TODO(synk): token_type_ids hardcoded to 0 (reference forward never passes them).
    x = (jnp.take(emb["word"], input_ids, axis=0)
         + emb["pos"][None, :S, :]
         + emb["type"][0][None, None, :]).astype(jnp.float32)
    x = x.reshape(B * S, H)

    # additive attention mask: 0 for real tokens, -1e9 for pads, shape (B, 1, S)
    add_mask = ((1.0 - attention_mask.astype(jnp.float32)) * -1e9)[:, None, :]

    logits_pad = encoder_classifier(x, add_mask, params, num_heads=nH, seq_len=S)
    return logits_pad.reshape(B, -1)[:, :out_dim]


if __name__ == "__main__":
    # small, BERT-shaped config
    VOCAB, MAX_POS = 100, 32
    HIDDEN, HEADS, LAYERS, INTER = 32, 4, 2, 64
    OUTPUT_DIM = 17
    B, S = 2, 8

    key = jax.random.PRNGKey(0)
    kp, ki = jax.random.split(key)
    params = init_params(kp, vocab=VOCAB, max_pos=MAX_POS, hidden=HIDDEN,
                         heads=HEADS, layers=LAYERS, intermediate=INTER,
                         output_dim=OUTPUT_DIM)

    input_ids = jax.random.randint(ki, (B, S), 0, VOCAB, dtype=jnp.int32)
    lengths = jnp.array([S, 5], dtype=jnp.int32)
    attention_mask = (jnp.arange(S)[None, :] < lengths[:, None]).astype(jnp.int32)

    logits = classifier_forward(params, input_ids, attention_mask)
    logits = jax.block_until_ready(logits)
    assert logits.shape == (B, OUTPUT_DIM)
    assert bool(jnp.all(jnp.isfinite(logits)))
    print("KERNEL_OK")
</pallas_src>

<mosaic_0001>
module attributes {stable_mosaic.version = 11 : i64} {
  func.func @_encoder_kernel(%arg0: i32, %arg1: i32, %arg2: memref<8x32xf32, #tpu.memory_space<vmem>>, %arg3: memref<1x1x8xf32, #tpu.memory_space<vmem>>, %arg4: memref<1x32xf32, #tpu.memory_space<vmem>>, %arg5: memref<1x32xf32, #tpu.memory_space<vmem>>, %arg6: memref<1x32x96xbf16, #tpu.memory_space<vmem>>, %arg7: memref<1x1x96xf32, #tpu.memory_space<vmem>>, %arg8: memref<1x32x32xbf16, #tpu.memory_space<vmem>>, %arg9: memref<1x1x32xf32, #tpu.memory_space<vmem>>, %arg10: memref<1x1x32xf32, #tpu.memory_space<vmem>>, %arg11: memref<1x1x32xf32, #tpu.memory_space<vmem>>, %arg12: memref<1x32x64xbf16, #tpu.memory_space<vmem>>, %arg13: memref<1x1x64xf32, #tpu.memory_space<vmem>>, %arg14: memref<1x64x32xbf16, #tpu.memory_space<vmem>>, %arg15: memref<1x1x32xf32, #tpu.memory_space<vmem>>, %arg16: memref<1x1x32xf32, #tpu.memory_space<vmem>>, %arg17: memref<1x1x32xf32, #tpu.memory_space<vmem>>, %arg18: memref<32x32xbf16, #tpu.memory_space<vmem>>, %arg19: memref<1x32xf32, #tpu.memory_space<vmem>>, %arg20: memref<32x128xbf16, #tpu.memory_space<vmem>>, %arg21: memref<1x128xf32, #tpu.memory_space<vmem>>, %arg22: memref<1x1x128xf32, #tpu.memory_space<vmem>>, %arg23: memref<8x32xf32, #tpu.memory_space<vmem>>) attributes {dimension_semantics = [#tpu.dimension_semantics<parallel>, #tpu.dimension_semantics<arbitrary>], iteration_bounds = array<i64: 2, 2>, scalar_prefetch = 0 : i64, scratch_operands = 1 : i64, tpu.core_type = #tpu.core_type<tc>, window_params = [{transform_indices = @transform_0, window_bounds = array<i64: 8, 32>}, {transform_indices = @transform_1, window_bounds = array<i64: 1, 1, 8>}, {pipeline_mode = #tpu.pipeline_mode<synchronous>, transform_indices = @transform_2, window_bounds = array<i64: 1, 32>}, {pipeline_mode = #tpu.pipeline_mode<synchronous>, transform_indices = @transform_3, window_bounds = array<i64: 1, 32>}, {transform_indices = @transform_4, window_bounds = array<i64: 1, 32, 96>}, {transform_indices = @transform_5, window_bounds = array<i64: 1, 1, 96>}, {transform_indices = @transform_6, window_bounds = array<i64: 1, 32, 32>}, {transform_indices = @transform_7, window_bounds = array<i64: 1, 1, 32>}, {transform_indices = @transform_8, window_bounds = array<i64: 1, 1, 32>}, {transform_indices = @transform_9, window_bounds = array<i64: 1, 1, 32>}, {transform_indices = @transform_10, window_bounds = array<i64: 1, 32, 64>}, {transform_indices = @transform_11, window_bounds = array<i64: 1, 1, 64>}, {transform_indices = @transform_12, window_bounds = array<i64: 1, 64, 32>}, {transform_indices = @transform_13, window_bounds = array<i64: 1, 1, 32>}, {transform_indices = @transform_14, window_bounds = array<i64: 1, 1, 32>}, {transform_indices = @transform_15, window_bounds = array<i64: 1, 1, 32>}, {pipeline_mode = #tpu.pipeline_mode<synchronous>, transform_indices = @transform_16, window_bounds = array<i64: 32, 32>}, {pipeline_mode = #tpu.pipeline_mode<synchronous>, transform_indices = @transform_17, window_bounds = array<i64: 1, 32>}, {pipeline_mode = #tpu.pipeline_mode<synchronous>, transform_indices = @transform_18, window_bounds = array<i64: 32, 128>}, {pipeline_mode = #tpu.pipeline_mode<synchronous>, transform_indices = @transform_19, window_bounds = array<i64: 1, 128>}, {transform_indices = @transform_20, window_bounds = array<i64: 1, 1, 128>}]} {
    %c0_i32 = arith.constant 0 : i32
    %0 = arith.cmpi eq, %arg1, %c0_i32 : i32
    %1 = arith.extui %0 : i1 to i32
    %c0_i32_0 = arith.constant 0 : i32
    %2 = arith.cmpi ne, %1, %c0_i32_0 : i32
    scf.if %2 {
      %c0_66 = arith.constant 0 : index
      %c0_67 = arith.constant 0 : index
      %133 = vector.load %arg2[%c0_66, %c0_67] : memref<8x32xf32, #tpu.memory_space<vmem>>, vector<8x32xf32>
      %c0_68 = arith.constant 0 : index
      %c0_69 = arith.constant 0 : index
      %134 = vector.load %arg4[%c0_68, %c0_69] : memref<1x32xf32, #tpu.memory_space<vmem>>, vector<1x32xf32>
      %c0_70 = arith.constant 0 : index
      %c0_71 = arith.constant 0 : index
      %135 = vector.load %arg5[%c0_70, %c0_71] : memref<1x32xf32, #tpu.memory_space<vmem>>, vector<1x32xf32>
      %cst_72 = arith.constant dense<0.000000e+00> : vector<8xf32>
      %136 = vector.multi_reduction <add>, %133, %cst_72 [1] : vector<8x32xf32> to vector<8xf32>
      %137 = vector.shape_cast %136 : vector<8xf32> to vector<8x1xf32>
      %cst_73 = arith.constant 3.200000e+01 : f32
      %138 = vector.broadcast %cst_73 : f32 to vector<8x1xf32>
      %139 = arith.divf %137, %138 : vector<8x1xf32>
      %140 = vector.broadcast %139 : vector<8x1xf32> to vector<8x32xf32>
      %141 = arith.subf %133, %140 : vector<8x32xf32>
      %142 = arith.mulf %141, %141 : vector<8x32xf32>
      %cst_74 = arith.constant dense<0.000000e+00> : vector<8xf32>
      %143 = vector.multi_reduction <add>, %142, %cst_74 [1] : vector<8x32xf32> to vector<8xf32>
      %144 = vector.shape_cast %143 : vector<8xf32> to vector<8x1xf32>
      %cst_75 = arith.constant 3.200000e+01 : f32
      %145 = vector.broadcast %cst_75 : f32 to vector<8x1xf32>
      %146 = arith.divf %144, %145 : vector<8x1xf32>
      %147 = vector.broadcast %139 : vector<8x1xf32> to vector<8x32xf32>
      %148 = arith.subf %133, %147 : vector<8x32xf32>
      %cst_76 = arith.constant 9.99999996E-13 : f32
      %149 = vector.broadcast %cst_76 : f32 to vector<8x1xf32>
      %150 = arith.addf %146, %149 : vector<8x1xf32>
      %151 = math.rsqrt %150 : vector<8x1xf32>
      %152 = vector.broadcast %151 : vector<8x1xf32> to vector<8x32xf32>
      %153 = arith.mulf %148, %152 : vector<8x32xf32>
      %154 = vector.broadcast %134 : vector<1x32xf32> to vector<8x32xf32>
      %155 = arith.mulf %153, %154 : vector<8x32xf32>
      %156 = vector.broadcast %135 : vector<1x32xf32> to vector<8x32xf32>
      %157 = arith.addf %155, %156 : vector<8x32xf32>
      %c0_77 = arith.constant 0 : index
      %c0_78 = arith.constant 0 : index
      %158 = vector.load %arg23[%c0_77, %c0_78] : memref<8x32xf32, #tpu.memory_space<vmem>>, vector<8x32xf32>
      tpu.vector_store %arg23[%c0_77, %c0_78], %157 {strides = array<i32>} : memref<8x32xf32, #tpu.memory_space<vmem>>, vector<8x32xf32>,
    } else {
    }
    %c0 = arith.constant 0 : index
    %c0_1 = arith.constant 0 : index
    %3 = vector.load %arg23[%c0, %c0_1] : memref<8x32xf32, #tpu.memory_space<vmem>>, vector<8x32xf32>
    %4 = arith.truncf %3 : vector<8x32xf32> to vector<8x32xbf16>
    %c0_2 = arith.constant 0 : index
    %c0_3 = arith.constant 0 : index
    %c0_4 = arith.constant 0 : index
    %5 = vector.load %arg6[%c0_2, %c0_3, %c0_4] : memref<1x32x96xbf16, #tpu.memory_space<vmem>>, vector<1x32x96xbf16>
    %6 = vector.shape_cast %5 : vector<1x32x96xbf16> to vector<32x96xbf16>
    %cst = arith.constant dense<0.000000e+00> : vector<8x96xf32>
    %7 = tpu.matmul %4, %6, %cst {dimension_numbers = #tpu.dot_dimension_numbers<[1], [0], [0], [1], [0, 0, 1, 1], [], []>} : vector<8x32xbf16>, vector<32x96xbf16>, vector<8x96xf32> -> vector<8x96xf32>
    %c0_5 = arith.constant 0 : index
    %c0_6 = arith.constant 0 : index
    %c0_7 = arith.constant 0 : index
    %8 = vector.load %arg7[%c0_5, %c0_6, %c0_7] : memref<1x1x96xf32, #tpu.memory_space<vmem>>, vector<1x1x96xf32>
    %9 = vector.shape_cast %8 : vector<1x1x96xf32> to vector<1x96xf32>
    %10 = vector.broadcast %9 : vector<1x96xf32> to vector<8x96xf32>
    %11 = arith.addf %7, %10 : vector<8x96xf32>
    %12 = vector.extract_strided_slice %11 {offsets = [0, 0], sizes = [8, 32], strides = [1, 1]} : vector<8x96xf32> to vector<8x32xf32>
    %13 = vector.shape_cast %12 : vector<8x32xf32> to vector<8x4x8xf32>
    %14 = vector.extract_strided_slice %11 {offsets = [0, 32], sizes = [8, 32], strides = [1, 1]} : vector<8x96xf32> to vector<8x32xf32>
    %15 = vector.shape_cast %14 : vector<8x32xf32> to vector<8x4x8xf32>
    %16 = vector.extract_strided_slice %11 {offsets = [0, 64], sizes = [8, 32], strides = [1, 1]} : vector<8x96xf32> to vector<8x32xf32>
    %17 = vector.shape_cast %16 : vector<8x32xf32> to vector<8x4x8xf32>
    "tpu.trace_start"() <{level = 10 : i32, message = "qhd,khd->hqk"}> : () -> ()
    %cst_8 = arith.constant dense<0.000000e+00> : vector<4x8x8xf32>
    %18 = tpu.matmul %13, %15, %cst_8 {dimension_numbers = #tpu.dot_dimension_numbers<[2], [2], [0], [0], [0, 1, 0, 0, 1, 0], [1], [1]>} : vector<8x4x8xf32>, vector<8x4x8xf32>, vector<4x8x8xf32> -> vector<4x8x8xf32>
    "tpu.trace_stop"() : () -> ()
    %cst_9 = arith.constant 0.353553385 : f32
    %19 = vector.broadcast %cst_9 : f32 to vector<4x8x8xf32>
    %20 = arith.mulf %18, %19 : vector<4x8x8xf32>
    %c0_10 = arith.constant 0 : index
    %c0_11 = arith.constant 0 : index
    %c0_12 = arith.constant 0 : index
    %21 = vector.load %arg3[%c0_10, %c0_11, %c0_12] : memref<1x1x8xf32, #tpu.memory_space<vmem>>, vector<1x1x8xf32>
    %22 = vector.shape_cast %21 : vector<1x1x8xf32> to vector<1x8xf32>
    %23 = vector.shape_cast %22 : vector<1x8xf32> to vector<1x1x8xf32>
    %24 = vector.broadcast %23 : vector<1x1x8xf32> to vector<4x8x8xf32>
    %25 = arith.addf %20, %24 : vector<4x8x8xf32>
    %cst_13 = arith.constant dense<0xFF800000> : vector<4x8xf32>
    %26 = vector.multi_reduction <maximumf>, %25, %cst_13 [2] : vector<4x8x8xf32> to vector<4x8xf32>
    %27 = vector.shape_cast %26 : vector<4x8xf32> to vector<4x8x1xf32>
    %28 = vector.broadcast %27 : vector<4x8x1xf32> to vector<4x8x8xf32>
    %29 = arith.subf %25, %28 : vector<4x8x8xf32>
    %30 = math.exp %29 : vector<4x8x8xf32>
    %cst_14 = arith.constant dense<0.000000e+00> : vector<4x8xf32>
    %31 = vector.multi_reduction <add>, %30, %cst_14 [2] : vector<4x8x8xf32> to vector<4x8xf32>
    %32 = vector.shape_cast %31 : vector<4x8xf32> to vector<4x8x1xf32>
    %33 = vector.broadcast %32 : vector<4x8x1xf32> to vector<4x8x8xf32>
    %34 = arith.divf %30, %33 : vector<4x8x8xf32>
    "tpu.trace_start"() <{level = 10 : i32, message = "hqk,khd->qhd"}> : () -> ()
    %cst_15 = arith.constant dense<0.000000e+00> : vector<4x8x8xf32>
    %35 = tpu.matmul %17, %34, %cst_15 {dimension_numbers = #tpu.dot_dimension_numbers<[0], [2], [2], [1], [0, 1, 0, 2, 1, 1], [1], [0]>} : vector<8x4x8xf32>, vector<4x8x8xf32>, vector<4x8x8xf32> -> vector<4x8x8xf32>
    %36 = tpu.transpose %35, [2, 0, 1] : vector<4x8x8xf32> -> vector<8x4x8xf32>
    "tpu.trace_stop"() : () -> ()
    %37 = vector.shape_cast %36 : vector<8x4x8xf32> to vector<8x32xf32>
    %38 = arith.truncf %37 : vector<8x32xf32> to vector<8x32xbf16>
    %c0_16 = arith.constant 0 : index
    %c0_17 = arith.constant 0 : index
    %c0_18 = arith.constant 0 : index
    %39 = vector.load %arg8[%c0_16, %c0_17, %c0_18] : memref<1x32x32xbf16, #tpu.memory_space<vmem>>, vector<1x32x32xbf16>
    %40 = vector.shape_cast %39 : vector<1x32x32xbf16> to vector<32x32xbf16>
    %cst_19 = arith.constant dense<0.000000e+00> : vector<8x32xf32>
    %41 = tpu.matmul %38, %40, %cst_19 {dimension_numbers = #tpu.dot_dimension_numbers<[1], [0], [0], [1], [0, 0, 1, 1], [], []>} : vector<8x32xbf16>, vector<32x32xbf16>, vector<8x32xf32> -> vector<8x32xf32>
    %c0_20 = arith.constant 0 : index
    %c0_21 = arith.constant 0 : index
    %c0_22 = arith.constant 0 : index
    %42 = vector.load %arg9[%c0_20, %c0_21, %c0_22] : memref<1x1x32xf32, #tpu.memory_space<vmem>>, vector<1x1x32xf32>
    %43 = vector.shape_cast %42 : vector<1x1x32xf32> to vector<1x32xf32>
    %44 = vector.broadcast %43 : vector<1x32xf32> to vector<8x32xf32>
    %45 = arith.addf %41, %44 : vector<8x32xf32>
    %46 = arith.addf %3, %45 : vector<8x32xf32>
    %c0_23 = arith.constant 0 : index
    %c0_24 = arith.constant 0 : index
    %c0_25 = arith.constant 0 : index
    %47 = vector.load %arg10[%c0_23, %c0_24, %c0_25] : memref<1x1x32xf32, #tpu.memory_space<vmem>>, vector<1x1x32xf32>
    %48 = vector.shape_cast %47 : vector<1x1x32xf32> to vector<1x32xf32>
    %c0_26 = arith.constant 0 : index
    %c0_27 = arith.constant 0 : index
    %c0_28 = arith.constant 0 : index
    %49 = vector.load %arg11[%c0_26, %c0_27, %c0_28] : memref<1x1x32xf32, #tpu.memory_space<vmem>>, vector<1x1x32xf32>
    %50 = vector.shape_cast %49 : vector<1x1x32xf32> to vector<1x32xf32>
    %cst_29 = arith.constant dense<0.000000e+00> : vector<8xf32>
    %51 = vector.multi_reduction <add>, %46, %cst_29 [1] : vector<8x32xf32> to vector<8xf32>
    %52 = vector.shape_cast %51 : vector<8xf32> to vector<8x1xf32>
    %cst_30 = arith.constant 3.200000e+01 : f32
    %53 = vector.broadcast %cst_30 : f32 to vector<8x1xf32>
    %54 = arith.divf %52, %53 : vector<8x1xf32>
    %55 = vector.broadcast %54 : vector<8x1xf32> to vector<8x32xf32>
    %56 = arith.subf %46, %55 : vector<8x32xf32>
    %57 = arith.mulf %56, %56 : vector<8x32xf32>
    %cst_31 = arith.constant dense<0.000000e+00> : vector<8xf32>
    %58 = vector.multi_reduction <add>, %57, %cst_31 [1] : vector<8x32xf32> to vector<8xf32>
    %59 = vector.shape_cast %58 : vector<8xf32> to vector<8x1xf32>
    %cst_32 = arith.constant 3.200000e+01 : f32
    %60 = vector.broadcast %cst_32 : f32 to vector<8x1xf32>
    %61 = arith.divf %59, %60 : vector<8x1xf32>
    %62 = vector.broadcast %54 : vector<8x1xf32> to vector<8x32xf32>
    %63 = arith.subf %46, %62 : vector<8x32xf32>
    %cst_33 = arith.constant 9.99999996E-13 : f32
    %64 = vector.broadcast %cst_33 : f32 to vector<8x1xf32>
    %65 = arith.addf %61, %64 : vector<8x1xf32>
    %66 = math.rsqrt %65 : vector<8x1xf32>
    %67 = vector.broadcast %66 : vector<8x1xf32> to vector<8x32xf32>
    %68 = arith.mulf %63, %67 : vector<8x32xf32>
    %69 = vector.broadcast %48 : vector<1x32xf32> to vector<8x32xf32>
    %70 = arith.mulf %68, %69 : vector<8x32xf32>
    %71 = vector.broadcast %50 : vector<1x32xf32> to vector<8x32xf32>
    %72 = arith.addf %70, %71 : vector<8x32xf32>
    %73 = arith.truncf %72 : vector<8x32xf32> to vector<8x32xbf16>
    %c0_34 = arith.constant 0 : index
    %c0_35 = arith.constant 0 : index
    %c0_36 = arith.constant 0 : index
    %74 = vector.load %arg12[%c0_34, %c0_35, %c0_36] : memref<1x32x64xbf16, #tpu.memory_space<vmem>>, vector<1x32x64xbf16>
    %75 = vector.shape_cast %74 : vector<1x32x64xbf16> to vector<32x64xbf16>
    %cst_37 = arith.constant dense<0.000000e+00> : vector<8x64xf32>
    %76 = tpu.matmul %73, %75, %cst_37 {dimension_numbers = #tpu.dot_dimension_numbers<[1], [0], [0], [1], [0, 0, 1, 1], [], []>} : vector<8x32xbf16>, vector<32x64xbf16>, vector<8x64xf32> -> vector<8x64xf32>
    %c0_38 = arith.constant 0 : index
    %c0_39 = arith.constant 0 : index
    %c0_40 = arith.constant 0 : index
    %77 = vector.load %arg13[%c0_38, %c0_39, %c0_40] : memref<1x1x64xf32, #tpu.memory_space<vmem>>, vector<1x1x64xf32>
    %78 = vector.shape_cast %77 : vector<1x1x64xf32> to vector<1x64xf32>
    %79 = vector.broadcast %78 : vector<1x64xf32> to vector<8x64xf32>
    %80 = arith.addf %76, %79 : vector<8x64xf32>
    %cst_41 = arith.constant 5.000000e-01 : f32
    %81 = vector.broadcast %cst_41 : f32 to vector<8x64xf32>
    %82 = arith.mulf %81, %80 : vector<8x64xf32>
    %cst_42 = arith.constant 4.471500e-02 : f32
    %83 = vector.broadcast %cst_42 : f32 to vector<8x64xf32>
    %84 = arith.mulf %83, %80 : vector<8x64xf32>
    %85 = arith.mulf %84, %80 : vector<8x64xf32>
    %86 = arith.mulf %85, %80 : vector<8x64xf32>
    %87 = arith.addf %80, %86 : vector<8x64xf32>
    %cst_43 = arith.constant 0.797884583 : f32
    %88 = vector.broadcast %cst_43 : f32 to vector<8x64xf32>
    %89 = arith.mulf %88, %87 : vector<8x64xf32>
    %90 = math.tanh %89 : vector<8x64xf32>
    %cst_44 = arith.constant 1.000000e+00 : f32
    %91 = vector.broadcast %cst_44 : f32 to vector<8x64xf32>
    %92 = arith.addf %91, %90 : vector<8x64xf32>
    %93 = arith.mulf %82, %92 : vector<8x64xf32>
    %94 = arith.truncf %93 : vector<8x64xf32> to vector<8x64xbf16>
    %c0_45 = arith.constant 0 : index
    %c0_46 = arith.constant 0 : index
    %c0_47 = arith.constant 0 : index
    %95 = vector.load %arg14[%c0_45, %c0_46, %c0_47] : memref<1x64x32xbf16, #tpu.memory_space<vmem>>, vector<1x64x32xbf16>
    %96 = vector.shape_cast %95 : vector<1x64x32xbf16> to vector<64x32xbf16>
    %cst_48 = arith.constant dense<0.000000e+00> : vector<8x32xf32>
    %97 = tpu.matmul %94, %96, %cst_48 {dimension_numbers = #tpu.dot_dimension_numbers<[1], [0], [0], [1], [0, 0, 1, 1], [], []>} : vector<8x64xbf16>, vector<64x32xbf16>, vector<8x32xf32> -> vector<8x32xf32>
    %c0_49 = arith.constant 0 : index
    %c0_50 = arith.constant 0 : index
    %c0_51 = arith.constant 0 : index
    %98 = vector.load %arg15[%c0_49, %c0_50, %c0_51] : memref<1x1x32xf32, #tpu.memory_space<vmem>>, vector<1x1x32xf32>
    %99 = vector.shape_cast %98 : vector<1x1x32xf32> to vector<1x32xf32>
    %100 = vector.broadcast %99 : vector<1x32xf32> to vector<8x32xf32>
    %101 = arith.addf %97, %100 : vector<8x32xf32>
    %102 = arith.addf %72, %101 : vector<8x32xf32>
    %c0_52 = arith.constant 0 : index
    %c0_53 = arith.constant 0 : index
    %c0_54 = arith.constant 0 : index
    %103 = vector.load %arg16[%c0_52, %c0_53, %c0_54] : memref<1x1x32xf32, #tpu.memory_space<vmem>>, vector<1x1x32xf32>
    %104 = vector.shape_cast %103 : vector<1x1x32xf32> to vector<1x32xf32>
    %c0_55 = arith.constant 0 : index
    %c0_56 = arith.constant 0 : index
    %c0_57 = arith.constant 0 : index
    %105 = vector.load %arg17[%c0_55, %c0_56, %c0_57] : memref<1x1x32xf32, #tpu.memory_space<vmem>>, vector<1x1x32xf32>
    %106 = vector.shape_cast %105 : vector<1x1x32xf32> to vector<1x32xf32>
    %cst_58 = arith.constant dense<0.000000e+00> : vector<8xf32>
    %107 = vector.multi_reduction <add>, %102, %cst_58 [1] : vector<8x32xf32> to vector<8xf32>
    %108 = vector.shape_cast %107 : vector<8xf32> to vector<8x1xf32>
    %cst_59 = arith.constant 3.200000e+01 : f32
    %109 = vector.broadcast %cst_59 : f32 to vector<8x1xf32>
    %110 = arith.divf %108, %109 : vector<8x1xf32>
    %111 = vector.broadcast %110 : vector<8x1xf32> to vector<8x32xf32>
    %112 = arith.subf %102, %111 : vector<8x32xf32>
    %113 = arith.mulf %112, %112 : vector<8x32xf32>
    %cst_60 = arith.constant dense<0.000000e+00> : vector<8xf32>
    %114 = vector.multi_reduction <add>, %113, %cst_60 [1] : vector<8x32xf32> to vector<8xf32>
    %115 = vector.shape_cast %114 : vector<8xf32> to vector<8x1xf32>
    %cst_61 = arith.constant 3.200000e+01 : f32
    %116 = vector.broadcast %cst_61 : f32 to vector<8x1xf32>
    %117 = arith.divf %115, %116 : vector<8x1xf32>
    %118 = vector.broadcast %110 : vector<8x1xf32> to vector<8x32xf32>
    %119 = arith.subf %102, %118 : vector<8x32xf32>
    %cst_62 = arith.constant 9.99999996E-13 : f32
    %120 = vector.broadcast %cst_62 : f32 to vector<8x1xf32>
    %121 = arith.addf %117, %120 : vector<8x1xf32>
    %122 = math.rsqrt %121 : vector<8x1xf32>
    %123 = vector.broadcast %122 : vector<8x1xf32> to vector<8x32xf32>
    %124 = arith.mulf %119, %123 : vector<8x32xf32>
    %125 = vector.broadcast %104 : vector<1x32xf32> to vector<8x32xf32>
    %126 = arith.mulf %124, %125 : vector<8x32xf32>
    %127 = vector.broadcast %106 : vector<1x32xf32> to vector<8x32xf32>
    %128 = arith.addf %126, %127 : vector<8x32xf32>
    %c0_63 = arith.constant 0 : index
    %c0_64 = arith.constant 0 : index
    %129 = vector.load %arg23[%c0_63, %c0_64] : memref<8x32xf32, #tpu.memory_space<vmem>>, vector<8x32xf32>
    tpu.vector_store %arg23[%c0_63, %c0_64], %128 {strides = array<i32>} : memref<8x32xf32, #tpu.memory_space<vmem>>, vector<8x32xf32>,
    %c1_i32 = arith.constant 1 : i32
    %130 = arith.cmpi eq, %arg1, %c1_i32 : i32
    %131 = arith.extui %130 : i1 to i32
    %c0_i32_65 = arith.constant 0 : i32
    %132 = arith.cmpi ne, %131, %c0_i32_65 : i32
    scf.if %132 {
      %133 = vector.extract_strided_slice %128 {offsets = [0, 0], sizes = [1, 32], strides = [1, 1]} : vector<8x32xf32> to vector<1x32xf32>
      %134 = arith.truncf %133 : vector<1x32xf32> to vector<1x32xbf16>
      %c0_66 = arith.constant 0 : index
      %c0_67 = arith.constant 0 : index
      %135 = vector.load %arg18[%c0_66, %c0_67] : memref<32x32xbf16, #tpu.memory_space<vmem>>, vector<32x32xbf16>
      %cst_68 = arith.constant dense<0.000000e+00> : vector<1x32xf32>
      %136 = tpu.matmul %134, %135, %cst_68 {dimension_numbers = #tpu.dot_dimension_numbers<[1], [0], [0], [1], [0, 0, 1, 1], [], []>} : vector<1x32xbf16>, vector<32x32xbf16>, vector<1x32xf32> -> vector<1x32xf32>
      %c0_69 = arith.constant 0 : index
      %c0_70 = arith.constant 0 : index
      %137 = vector.load %arg19[%c0_69, %c0_70] : memref<1x32xf32, #tpu.memory_space<vmem>>, vector<1x32xf32>
      %138 = arith.addf %136, %137 : vector<1x32xf32>
      %139 = math.tanh %138 : vector<1x32xf32>
      %140 = arith.truncf %139 : vector<1x32xf32> to vector<1x32xbf16>
      %c0_71 = arith.constant 0 : index
      %c0_72 = arith.constant 0 : index
      %141 = vector.load %arg20[%c0_71, %c0_72] : memref<32x128xbf16, #tpu.memory_space<vmem>>, vector<32x128xbf16>
      %cst_73 = arith.constant dense<0.000000e+00> : vector<1x128xf32>
      %142 = tpu.matmul %140, %141, %cst_73 {dimension_numbers = #tpu.dot_dimension_numbers<[1], [0], [0], [1], [0, 0, 1, 1], [], []>} : vector<1x32xbf16>, vector<32x128xbf16>, vector<1x128xf32> -> vector<1x128xf32>
      %c0_74 = arith.constant 0 : index
      %c0_75 = arith.constant 0 : index
      %143 = vector.load %arg21[%c0_74, %c0_75] : memref<1x128xf32, #tpu.memory_space<vmem>>, vector<1x128xf32>
      %144 = arith.addf %142, %143 : vector<1x128xf32>
      %145 = vector.shape_cast %144 : vector<1x128xf32> to vector<1x1x128xf32>
      %c0_76 = arith.constant 0 : index
      %c0_77 = arith.constant 0 : index
      %c0_78 = arith.constant 0 : index
      %146 = vector.load %arg22[%c0_76, %c0_77, %c0_78] : memref<1x1x128xf32, #tpu.memory_space<vmem>>, vector<1x1x128xf32>
      tpu.vector_store %arg22[%c0_76, %c0_77, %c0_78], %145 {strides = array<i32>} : memref<1x1x128xf32, #tpu.memory_space<vmem>>, vector<1x1x128xf32>,
    } else {
    }
    return
  }
  func.func @transform_0(%arg0: i32, %arg1: i32) -> (i32, i32) {
    %c0_i32 = arith.constant 0 : i32
    %c0_i32_0 = arith.constant 0 : i32
    return %arg0, %c0_i32 : i32, i32
  }
  func.func @transform_1(%arg0: i32, %arg1: i32) -> (i32, i32, i32) {
    %c0_i32 = arith.constant 0 : i32
    %c0_i32_0 = arith.constant 0 : i32
    %c0_i32_1 = arith.constant 0 : i32
    return %arg0, %c0_i32, %c0_i32_0 : i32, i32, i32
  }
  func.func @transform_2(%arg0: i32, %arg1: i32) -> (i32, i32) {
    %c0_i32 = arith.constant 0 : i32
    %c0_i32_0 = arith.constant 0 : i32
    %c0_i32_1 = arith.constant 0 : i32
    return %c0_i32, %c0_i32_0 : i32, i32
  }
  func.func @transform_3(%arg0: i32, %arg1: i32) -> (i32, i32) {
    %c0_i32 = arith.constant 0 : i32
    %c0_i32_0 = arith.constant 0 : i32
    %c0_i32_1 = arith.constant 0 : i32
    return %c0_i32, %c0_i32_0 : i32, i32
  }
  func.func @transform_4(%arg0: i32, %arg1: i32) -> (i32, i32, i32) {
    %c0_i32 = arith.constant 0 : i32
    %c0_i32_0 = arith.constant 0 : i32
    %c0_i32_1 = arith.constant 0 : i32
    return %arg1, %c0_i32, %c0_i32_0 : i32, i32, i32
  }
  func.func @transform_5(%arg0: i32, %arg1: i32) -> (i32, i32, i32) {
    %c0_i32 = arith.constant 0 : i32
    %c0_i32_0 = arith.constant 0 : i32
    %c0_i32_1 = arith.constant 0 : i32
    return %arg1, %c0_i32, %c0_i32_0 : i32, i32, i32
  }
  func.func @transform_6(%arg0: i32, %arg1: i32) -> (i32, i32, i32) {
    %c0_i32 = arith.constant 0 : i32
    %c0_i32_0 = arith.constant 0 : i32
    %c0_i32_1 = arith.constant 0 : i32
    return %arg1, %c0_i32, %c0_i32_0 : i32, i32, i32
  }
  func.func @transform_7(%arg0: i32, %arg1: i32) -> (i32, i32, i32) {
    %c0_i32 = arith.constant 0 : i32
    %c0_i32_0 = arith.constant 0 : i32
    %c0_i32_1 = arith.constant 0 : i32
    return %arg1, %c0_i32, %c0_i32_0 : i32, i32, i32
  }
  func.func @transform_8(%arg0: i32, %arg1: i32) -> (i32, i32, i32) {
    %c0_i32 = arith.constant 0 : i32
    %c0_i32_0 = arith.constant 0 : i32
    %c0_i32_1 = arith.constant 0 : i32
    return %arg1, %c0_i32, %c0_i32_0 : i32, i32, i32
  }
  func.func @transform_9(%arg0: i32, %arg1: i32) -> (i32, i32, i32) {
    %c0_i32 = arith.constant 0 : i32
    %c0_i32_0 = arith.constant 0 : i32
    %c0_i32_1 = arith.constant 0 : i32
    return %arg1, %c0_i32, %c0_i32_0 : i32, i32, i32
  }
  func.func @transform_10(%arg0: i32, %arg1: i32) -> (i32, i32, i32) {
    %c0_i32 = arith.constant 0 : i32
    %c0_i32_0 = arith.constant 0 : i32
    %c0_i32_1 = arith.constant 0 : i32
    return %arg1, %c0_i32, %c0_i32_0 : i32, i32, i32
  }
  func.func @transform_11(%arg0: i32, %arg1: i32) -> (i32, i32, i32) {
    %c0_i32 = arith.constant 0 : i32
    %c0_i32_0 = arith.constant 0 : i32
    %c0_i32_1 = arith.constant 0 : i32
    return %arg1, %c0_i32, %c0_i32_0 : i32, i32, i32
  }
  func.func @transform_12(%arg0: i32, %arg1: i32) -> (i32, i32, i32) {
    %c0_i32 = arith.constant 0 : i32
    %c0_i32_0 = arith.constant 0 : i32
    %c0_i32_1 = arith.constant 0 : i32
    return %arg1, %c0_i32, %c0_i32_0 : i32, i32, i32
  }
  func.func @transform_13(%arg0: i32, %arg1: i32) -> (i32, i32, i32) {
    %c0_i32 = arith.constant 0 : i32
    %c0_i32_0 = arith.constant 0 : i32
    %c0_i32_1 = arith.constant 0 : i32
    return %arg1, %c0_i32, %c0_i32_0 : i32, i32, i32
  }
  func.func @transform_14(%arg0: i32, %arg1: i32) -> (i32, i32, i32) {
    %c0_i32 = arith.constant 0 : i32
    %c0_i32_0 = arith.constant 0 : i32
    %c0_i32_1 = arith.constant 0 : i32
    return %arg1, %c0_i32, %c0_i32_0 : i32, i32, i32
  }
  func.func @transform_15(%arg0: i32, %arg1: i32) -> (i32, i32, i32) {
    %c0_i32 = arith.constant 0 : i32
    %c0_i32_0 = arith.constant 0 : i32
    %c0_i32_1 = arith.constant 0 : i32
    return %arg1, %c0_i32, %c0_i32_0 : i32, i32, i32
  }
  func.func @transform_16(%arg0: i32, %arg1: i32) -> (i32, i32) {
    %c0_i32 = arith.constant 0 : i32
    %c0_i32_0 = arith.constant 0 : i32
    %c0_i32_1 = arith.constant 0 : i32
    return %c0_i32, %c0_i32_0 : i32, i32
  }
  func.func @transform_17(%arg0: i32, %arg1: i32) -> (i32, i32) {
    %c0_i32 = arith.constant 0 : i32
    %c0_i32_0 = arith.constant 0 : i32
    %c0_i32_1 = arith.constant 0 : i32
    return %c0_i32, %c0_i32_0 : i32, i32
  }
  func.func @transform_18(%arg0: i32, %arg1: i32) -> (i32, i32) {
    %c0_i32 = arith.constant 0 : i32
    %c0_i32_0 = arith.constant 0 : i32
    %c0_i32_1 = arith.constant 0 : i32
    return %c0_i32, %c0_i32_0 : i32, i32
  }
  func.func @transform_19(%arg0: i32, %arg1: i32) -> (i32, i32) {
    %c0_i32 = arith.constant 0 : i32
    %c0_i32_0 = arith.constant 0 : i32
    %c0_i32_1 = arith.constant 0 : i32
    return %c0_i32, %c0_i32_0 : i32, i32
  }
  func.func @transform_20(%arg0: i32, %arg1: i32) -> (i32, i32, i32) {
    %c0_i32 = arith.constant 0 : i32
    %c0_i32_0 = arith.constant 0 : i32
    %c0_i32_1 = arith.constant 0 : i32
    return %arg0, %c0_i32, %c0_i32_0 : i32, i32, i32
  }
}

</mosaic_0001>

<llo_original>
// kernel: tpu_custom_call.1
$region0: #{tpu_custom_call.1}
  #allocation0 [shape = 'u32[]', space=smem, size = 0x4, offset = 0x4, fixed_abs, tag = 'smem constant byte address 0x4 - core index']
  #allocation1 [shape = 'u32[144,128]{1,0:T(1,128)}', space=vmem, size = 0x12000, scoped, tag = 'internal scratch']
  #allocation2 [shape = 'f32[8,32]{1,0:T(8,128)}', space=vmem, size = 0x1000, scoped, tag = 'scratch operand']
  %s0 = inlined_call_operand.hbm [shape: f32[16,32], index: 0, kind: input, shape index: {}]
  %s1 = inlined_call_operand.hbm [shape: f32[2,1,8], index: 1, kind: input, shape index: {}]
  %s2 = inlined_call_operand.hbm [shape: f32[1,32], index: 2, kind: input, shape index: {}]
  %s3 = inlined_call_operand.hbm [shape: f32[1,32], index: 3, kind: input, shape index: {}]
  %s4 = inlined_call_operand.vmem [shape: bf16[2,32,96], index: 4, kind: input, shape index: {}]
  %s5 = inlined_call_operand.hbm [shape: f32[2,1,96], index: 5, kind: input, shape index: {}]
  %s6 = inlined_call_operand.vmem [shape: bf16[2,32,32], index: 6, kind: input, shape index: {}]
  %s7 = inlined_call_operand.hbm [shape: f32[2,1,32], index: 7, kind: input, shape index: {}]
  %s8 = inlined_call_operand.hbm [shape: f32[2,1,32], index: 8, kind: input, shape index: {}]
  %s9 = inlined_call_operand.hbm [shape: f32[2,1,32], index: 9, kind: input, shape index: {}]
  %s10 = inlined_call_operand.vmem [shape: bf16[2,32,64], index: 10, kind: input, shape index: {}]
  %s11 = inlined_call_operand.hbm [shape: f32[2,1,64], index: 11, kind: input, shape index: {}]
  %s12 = inlined_call_operand.vmem [shape: bf16[2,64,32], index: 12, kind: input, shape index: {}]
  %s13 = inlined_call_operand.hbm [shape: f32[2,1,32], index: 13, kind: input, shape index: {}]
  %s14 = inlined_call_operand.hbm [shape: f32[2,1,32], index: 14, kind: input, shape index: {}]
  %s15 = inlined_call_operand.hbm [shape: f32[2,1,32], index: 15, kind: input, shape index: {}]
  %s16 = inlined_call_operand.vmem [shape: bf16[32,32], index: 16, kind: input, shape index: {}]
  %s17 = inlined_call_operand.hbm [shape: f32[1,32], index: 17, kind: input, shape index: {}]
  %s18 = inlined_call_operand.vmem [shape: bf16[32,128], index: 18, kind: input, shape index: {}]
  %s19 = inlined_call_operand.vmem [shape: f32[1,128], index: 19, kind: input, shape index: {}]
  %s20 = inlined_call_operand.hbm [shape: f32[2,1,128], index: 20, kind: output, shape index: {}]
  %s21 = sld [smem:[#allocation0]]
  $region173: #{tpu_custom_call.1} parent=0
    _
  %s23 = ssub.s32 1, %s21
  %s24 = scalar_select 0, %s23, %s21
  $region1: #{tpu_custom_call.1} parent=0
    #allocation3 [shape = 'u8[8192]{0}', space=vmem, size = 0x2000, scoped, tag = 'input window, operand 0']
    #allocation4 [shape = 's32[2]{0}', space=sflag, size = 0x8, scoped, tag = 'scoped memory for tpu_custom_call.1']
    #allocation5 [shape = 's32[2]{0}', space=sflag, size = 0x8, scoped, tag = 'scoped memory for tpu_custom_call.1']
    #allocation6 [shape = 'u8[1024]{0}', space=vmem, size = 0x400, scoped, tag = 'input window, operand 1']
    #allocation7 [shape = 's32[2]{0}', space=sflag, size = 0x8, scoped, tag = 'scoped memory for tpu_custom_call.1']
    #allocation8 [shape = 'u8[512]{0}', space=vmem, size = 0x400, scoped, tag = 'input window, operand 2, single buffered']
    #allocation9 [shape = 'u8[512]{0}', space=vmem, size = 0x400, scoped, tag = 'input window, operand 3, single buffered']
    #allocation10 [shape = 's32[1]{0}', space=sflag, size = 0x4, scoped, tag = 'scoped memory for tpu_custom_call.1']
    #allocation11 [shape = 'u8[1024]{0}', space=vmem, size = 0x400, scoped, tag = 'input window, operand 5']
    #allocation12 [shape = 'u8[1024]{0}', space=vmem, size = 0x400, scoped, tag = 'input window, operand 7']
    #allocation13 [shape = 'u8[1024]{0}', space=vmem, size = 0x400, scoped, tag = 'input window, operand 8']
    #allocation14 [shape = 'u8[1024]{0}', space=vmem, size = 0x400, scoped, tag = 'input window, operand 9']
    #allocation15 [shape = 'u8[1024]{0}', space=vmem, size = 0x400, scoped, tag = 'input window, operand 11']
    #allocation16 [shape = 'u8[1024]{0}', space=vmem, size = 0x400, scoped, tag = 'input window, operand 13']
    #allocation17 [shape = 'u8[1024]{0}', space=vmem, size = 0x400, scoped, tag = 'input window, operand 14']
    #allocation18 [shape = 'u8[1024]{0}', space=vmem, size = 0x400, scoped, tag = 'input window, operand 15']
    #allocation19 [shape = 'u8[512]{0}', space=vmem, size = 0x400, scoped, tag = 'input window, operand 17, single buffered']
    #allocation20 [shape = 'u8[1024]{0}', space=vmem, size = 0x400, scoped, tag = 'output window, operand 0']
    %25 = vsyncpa [#allocation4], 0
    %s26 = scalar_lea.sflag [#allocation4], 1
    %27 = vsyncpa %s26, 0
    %28 = vsyncpa [#allocation7], 0
    %s29 = scalar_lea.sflag [#allocation7], 1
    %30 = vsyncpa %s29, 0
    %31 = vsyncpa [#allocation10], 0
    %32 = vsyncpa [#allocation5], 0
    %s33 = scalar_lea.sflag [#allocation5], 1
    %34 = vsyncpa %s33, 0
    loop: start=0, step=1, limit=6
    $region2: #{tpu_custom_call.1} parent=1 // loop_pre_header
      _
    $region3: #{tpu_custom_call.1} parent=1 // loop_header
      %s36 = sphi 0, %s40
      %p37 = scmp.ge.s32.totalorder %s36, 6
      %s43 = sphi 0, %s55
      %s44 = sphi 0, %s51
      %s45 = sphi 0, %s43
      %s46 = sphi 0, %s44
      %s47 = sphi 0, %s45
      %s48 = sphi 0, %s46
      %s58 = sphi 0, %s60
      %s61 = sphi 0, %s58
      %s62 = sphi 0, %s61
      %s78 = sphi 0, %s62
      %s84 = sphi 0, %s86
      %s87 = sphi 0, %s84
      %s88 = sphi 0, %s87
      %s104 = sphi 0, %s88
      %s108 = sphi 0, %s108
      %s110 = sphi 0, %s108
      %s111 = sphi 0, %s110
      %s125 = sphi 0, %s111
      %s129 = sphi 0, %s129
      %s131 = sphi 0, %s129
      %s132 = sphi 0, %s131
      %s146 = sphi 0, %s132
      %s152 = sphi 0, %s154
      %s155 = sphi 0, %s152
      %s156 = sphi 0, %s155
      %s172 = sphi 0, %s156
      %s178 = sphi 0, %s180
      %s181 = sphi 0, %s178
      %s182 = sphi 0, %s181
      %s198 = sphi 0, %s182
      %s204 = sphi 0, %s206
      %s207 = sphi 0, %s204
      %s208 = sphi 0, %s207
      %s224 = sphi 0, %s208
      %s230 = sphi 0, %s232
      %s233 = sphi 0, %s230
      %s234 = sphi 0, %s233
      %s250 = sphi 0, %s234
      %s256 = sphi 0, %s258
      %s259 = sphi 0, %s256
      %s260 = sphi 0, %s259
      %s276 = sphi 0, %s260
      %s282 = sphi 0, %s284
      %s285 = sphi 0, %s282
      %s286 = sphi 0, %s285
      %s302 = sphi 0, %s286
      %s308 = sphi 0, %s310
      %s311 = sphi 0, %s308
      %s312 = sphi 0, %s311
      %s328 = sphi 0, %s312
      %s334 = sphi 0, %s336
      %s337 = sphi 0, %s334
      %s338 = sphi 0, %s337
      %s354 = sphi 0, %s338
      %s360 = sphi 0, %s362
      %s363 = sphi 0, %s360
      %s364 = sphi 0, %s363
      %s380 = sphi 0, %s364
      %s386 = sphi 0, %s388
      %s389 = sphi 0, %s386
      %s390 = sphi 0, %s389
      %s406 = sphi 0, %s390
      %s412 = sphi 0, %s414
      %s415 = sphi 0, %s412
      %s416 = sphi 0, %s415
      %s432 = sphi 0, %s416
      %s438 = sphi 0, %s440
      %s441 = sphi 0, %s438
      %s442 = sphi 0, %s441
      %s458 = sphi 0, %s442
      %s462 = sphi 0, %s462
      %s464 = sphi 0, %s462
      %s465 = sphi 0, %s464
      %s479 = sphi 0, %s465
      %s483 = sphi 0, %s483
      %s485 = sphi 0, %s483
      %s486 = sphi 0, %s485
      %s500 = sphi 0, %s486
      %s504 = sphi 0, %s504
      %s506 = sphi 0, %s504
      %s507 = sphi 0, %s506
      %s521 = sphi 0, %s507
      %s525 = sphi 0, %s525
      %s527 = sphi 0, %s525
      %s528 = sphi 0, %s527
      %s542 = sphi 0, %s528
      %s548 = sphi 0, %s550
      %s551 = sphi 0, %s548
      %s552 = sphi 0, %s551
      %s568 = sphi 0, %s552
    $region4: #{tpu_custom_call.1} parent=1 // loop_header_branch
      %39 = sbr.rel (%p37) target = $region8
    $region5: #{tpu_custom_call.1} parent=1 // loop_body
      %s41 = ssub.s32 %s36, 1
      %s42 = ssub.s32 %s36, 2
      %s49 = sadd.s32 1, %s44
      %p50 = scmp.ge.s32.totalorder %s49, 2
      %s51 = scalar_select %p50, 0, %s49
      %s52 = sadd.s32 1, %s43
      %s53 = scalar_select %p50, %s52, %s43
      %p54 = scmp.ge.s32.totalorder %s53, 2
      %s55 = scalar_select %p54, 0, %s53
      %s56 = ssub.s32 %s43, %s55
      %p57 = scmp.eq.s32.totalorder %s56, 0
      %s59 = sadd.s32 %s58, 1
      %s60 = scalar_select %p57, %s58, %s59
      %p63 = pneg %p57
      %p64 = scmp.eq.s32.totalorder %s36, 3
      %p65 = por %p63, %p64
      %p66 = scmp.ne.s32.totalorder %s58, %s61
      %p67 = scmp.eq.s32.totalorder %s36, 0
      %p68 = por %p66, %p67
      %p69 = scmp.ne.s32.totalorder %s58, %s61
      %p70 = scmp.eq.s32.totalorder %s41, 3
      %p71 = por %p69, %p70
      %p72 = scmp.ne.s32.totalorder %s61, %s62
      %p73 = scmp.eq.s32.totalorder %s41, 0
      %p74 = por %p72, %p73
      %p75 = scmp.ne.s32.totalorder %s61, %s62
      %p76 = scmp.eq.s32.totalorder %s42, 3
      %p77 = por %p75, %p76
      %p79 = scmp.ne.s32.totalorder %s62, %s78
      %p80 = scmp.eq.s32.totalorder %s42, 0
      %p81 = por %p79, %p80
      %s82 = ssub.s32 %s43, %s55
      %p83 = scmp.eq.s32.totalorder %s82, 0
      %s85 = sadd.s32 %s84, 1
      %s86 = scalar_select %p83, %s84, %s85
      %p89 = pneg %p83
      %p90 = scmp.eq.s32.totalorder %s36, 3
      %p91 = por %p89, %p90
      %p92 = scmp.ne.s32.totalorder %s84, %s87
      %p93 = scmp.eq.s32.totalorder %s36, 0
      %p94 = por %p92, %p93
      %p95 = scmp.ne.s32.totalorder %s84, %s87
      %p96 = scmp.eq.s32.totalorder %s41, 3
      %p97 = por %p95, %p96
      %p98 = scmp.ne.s32.totalorder %s87, %s88
      %p99 = scmp.eq.s32.totalorder %s41, 0
      %p100 = por %p98, %p99
      %p101 = scmp.ne.s32.totalorder %s87, %s88
      %p102 = scmp.eq.s32.totalorder %s42, 3
      %p103 = por %p101, %p102
      %p105 = scmp.ne.s32.totalorder %s88, %s104
      %p106 = scmp.eq.s32.totalorder %s42, 0
      %p107 = por %p105, %p106
      %s109 = sadd.s32 %s108, 1
      %p112 = scmp.eq.s32.totalorder %s36, 3
      %p113 = scmp.ne.s32.totalorder %s108, %s110
      %p114 = scmp.eq.s32.totalorder %s36, 0
      %p115 = por %p113, %p114
      %p116 = scmp.ne.s32.totalorder %s108, %s110
      %p117 = scmp.eq.s32.totalorder %s41, 3
      %p118 = por %p116, %p117
      %p119 = scmp.ne.s32.totalorder %s110, %s111
      %p120 = scmp.eq.s32.totalorder %s41, 0
      %p121 = por %p119, %p120
      %p122 = scmp.ne.s32.totalorder %s110, %s111
      %p123 = scmp.eq.s32.totalorder %s42, 3
      %p124 = por %p122, %p123
      %p126 = scmp.ne.s32.totalorder %s111, %s125
      %p127 = scmp.eq.s32.totalorder %s42, 0
      %p128 = por %p126, %p127
      %s130 = sadd.s32 %s129, 1
      %p133 = scmp.eq.s32.totalorder %s36, 3
      %p134 = scmp.ne.s32.totalorder %s129, %s131
      %p135 = scmp.eq.s32.totalorder %s36, 0
      %p136 = por %p134, %p135
      %p137 = scmp.ne.s32.totalorder %s129, %s131
      %p138 = scmp.eq.s32.totalorder %s41, 3
      %p139 = por %p137, %p138
      %p140 = scmp.ne.s32.totalorder %s131, %s132
      %p141 = scmp.eq.s32.totalorder %s41, 0
      %p142 = por %p140, %p141
      %p143 = scmp.ne.s32.totalorder %s131, %s132
      %p144 = scmp.eq.s32.totalorder %s42, 3
      %p145 = por %p143, %p144
      %p147 = scmp.ne.s32.totalorder %s132, %s146
      %p148 = scmp.eq.s32.totalorder %s42, 0
      %p149 = por %p147, %p148
      %s150 = ssub.s32 %s44, %s51
      %p151 = scmp.eq.s32.totalorder %s150, 0
      %s153 = sadd.s32 %s152, 1
      %s154 = scalar_select %p151, %s152, %s153
      %p157 = pneg %p151
      %p158 = scmp.eq.s32.totalorder %s36, 3
      %p159 = por %p157, %p158
      %p160 = scmp.ne.s32.totalorder %s152, %s155
      %p161 = scmp.eq.s32.totalorder %s36, 0
      %p162 = por %p160, %p161
      %p163 = scmp.ne.s32.totalorder %s152, %s155
      %p164 = scmp.eq.s32.totalorder %s41, 3
      %p165 = por %p163, %p164
      %p166 = scmp.ne.s32.totalorder %s155, %s156
      %p167 = scmp.eq.s32.totalorder %s41, 0
      %p168 = por %p166, %p167
      %p169 = scmp.ne.s32.totalorder %s155, %s156
      %p170 = scmp.eq.s32.totalorder %s42, 3
      %p171 = por %p169, %p170
      %p173 = scmp.ne.s32.totalorder %s156, %s172
      %p174 = scmp.eq.s32.totalorder %s42, 0
      %p175 = por %p173, %p174
      %s176 = ssub.s32 %s44, %s51
      %p177 = scmp.eq.s32.totalorder %s176, 0
      %s179 = sadd.s32 %s178, 1
      %s180 = scalar_select %p177, %s178, %s179
      %p183 = pneg %p177
      %p184 = scmp.eq.s32.totalorder %s36, 3
      %p185 = por %p183, %p184
      %p186 = scmp.ne.s32.totalorder %s178, %s181
      %p187 = scmp.eq.s32.totalorder %s36, 0
      %p188 = por %p186, %p187
      %p189 = scmp.ne.s32.totalorder %s178, %s181
      %p190 = scmp.eq.s32.totalorder %s41, 3
      %p191 = por %p189, %p190
      %p192 = scmp.ne.s32.totalorder %s181, %s182
      %p193 = scmp.eq.s32.totalorder %s41, 0
      %p194 = por %p192, %p193
      %p195 = scmp.ne.s32.totalorder %s181, %s182
      %p196 = scmp.eq.s32.totalorder %s42, 3
      %p197 = por %p195, %p196
      %p199 = scmp.ne.s32.totalorder %s182, %s198
      %p200 = scmp.eq.s32.totalorder %s42, 0
      %p201 = por %p199, %p200
      %s202 = ssub.s32 %s44, %s51
      %p203 = scmp.eq.s32.totalorder %s202, 0
      %s205 = sadd.s32 %s204, 1
      %s206 = scalar_select %p203, %s204, %s205
      %p209 = pneg %p203
      %p210 = scmp.eq.s32.totalorder %s36, 3
      %p211 = por %p209, %p210
      %p212 = scmp.ne.s32.totalorder %s204, %s207
      %p213 = scmp.eq.s32.totalorder %s36, 0
      %p214 = por %p212, %p213
      %p215 = scmp.ne.s32.totalorder %s204, %s207
      %p216 = scmp.eq.s32.totalorder %s41, 3
      %p217 = por %p215, %p216
      %p218 = scmp.ne.s32.totalorder %s207, %s208
      %p219 = scmp.eq.s32.totalorder %s41, 0
      %p220 = por %p218, %p219
      %p221 = scmp.ne.s32.totalorder %s207, %s208
      %p222 = scmp.eq.s32.totalorder %s42, 3
      %p223 = por %p221, %p222
      %p225 = scmp.ne.s32.totalorder %s208, %s224
      %p226 = scmp.eq.s32.totalorder %s42, 0
      %p227 = por %p225, %p226
      %s228 = ssub.s32 %s44, %s51
      %p229 = scmp.eq.s32.totalorder %s228, 0
      %s231 = sadd.s32 %s230, 1
      %s232 = scalar_select %p229, %s230, %s231
      %p235 = pneg %p229
      %p236 = scmp.eq.s32.totalorder %s36, 3
      %p237 = por %p235, %p236
      %p238 = scmp.ne.s32.totalorder %s230, %s233
      %p239 = scmp.eq.s32.totalorder %s36, 0
      %p240 = por %p238, %p239
      %p241 = scmp.ne.s32.totalorder %s230, %s233
      %p242 = scmp.eq.s32.totalorder %s41, 3
      %p243 = por %p241, %p242
      %p244 = scmp.ne.s32.totalorder %s233, %s234
      %p245 = scmp.eq.s32.totalorder %s41, 0
      %p246 = por %p244, %p245
      %p247 = scmp.ne.s32.totalorder %s233, %s234
      %p248 = scmp.eq.s32.totalorder %s42, 3
      %p249 = por %p247, %p248
      %p251 = scmp.ne.s32.totalorder %s234, %s250
      %p252 = scmp.eq.s32.totalorder %s42, 0
      %p253 = por %p251, %p252
      %s254 = ssub.s32 %s44, %s51
      %p255 = scmp.eq.s32.totalorder %s254, 0
      %s257 = sadd.s32 %s256, 1
      %s258 = scalar_select %p255, %s256, %s257
      %p261 = pneg %p255
      %p262 = scmp.eq.s32.totalorder %s36, 3
      %p263 = por %p261, %p262
      %p264 = scmp.ne.s32.totalorder %s256, %s259
      %p265 = scmp.eq.s32.totalorder %s36, 0
      %p266 = por %p264, %p265
      %p267 = scmp.ne.s32.totalorder %s256, %s259
      %p268 = scmp.eq.s32.totalorder %s41, 3
      %p269 = por %p267, %p268
      %p270 = scmp.ne.s32.totalorder %s259, %s260
      %p271 = scmp.eq.s32.totalorder %s41, 0
      %p272 = por %p270, %p271
      %p273 = scmp.ne.s32.totalorder %s259, %s260
      %p274 = scmp.eq.s32.totalorder %s42, 3
      %p275 = por %p273, %p274
      %p277 = scmp.ne.s32.totalorder %s260, %s276
      %p278 = scmp.eq.s32.totalorder %s42, 0
      %p279 = por %p277, %p278
      %s280 = ssub.s32 %s44, %s51
      %p281 = scmp.eq.s32.totalorder %s280, 0
      %s283 = sadd.s32 %s282, 1
      %s284 = scalar_select %p281, %s282, %s283
      %p287 = pneg %p281
      %p288 = scmp.eq.s32.totalorder %s36, 3
      %p289 = por %p287, %p288
      %p290 = scmp.ne.s32.totalorder %s282, %s285
      %p291 = scmp.eq.s32.totalorder %s36, 0
      %p292 = por %p290, %p291
      %p293 = scmp.ne.s32.totalorder %s282, %s285
      %p294 = scmp.eq.s32.totalorder %s41, 3
      %p295 = por %p293, %p294
      %p296 = scmp.ne.s32.totalorder %s285, %s286
      %p297 = scmp.eq.s32.totalorder %s41, 0
      %p298 = por %p296, %p297
      %p299 = scmp.ne.s32.totalorder %s285, %s286
      %p300 = scmp.eq.s32.totalorder %s42, 3
      %p301 = por %p299, %p300
      %p303 = scmp.ne.s32.totalorder %s286, %s302
      %p304 = scmp.eq.s32.totalorder %s42, 0
      %p305 = por %p303, %p304
      %s306 = ssub.s32 %s44, %s51
      %p307 = scmp.eq.s32.totalorder %s306, 0
      %s309 = sadd.s32 %s308, 1
      %s310 = scalar_select %p307, %s308, %s309
      %p313 = pneg %p307
      %p314 = scmp.eq.s32.totalorder %s36, 3
      %p315 = por %p313, %p314
      %p316 = scmp.ne.s32.totalorder %s308, %s311
      %p317 = scmp.eq.s32.totalorder %s36, 0
      %p318 = por %p316, %p317
      %p319 = scmp.ne.s32.totalorder %s308, %s311
      %p320 = scmp.eq.s32.totalorder %s41, 3
      %p321 = por %p319, %p320
      %p322 = scmp.ne.s32.totalorder %s311, %s312
      %p323 = scmp.eq.s32.totalorder %s41, 0
      %p324 = por %p322, %p323
      %p325 = scmp.ne.s32.totalorder %s311, %s312
      %p326 = scmp.eq.s32.totalorder %s42, 3
      %p327 = por %p325, %p326
      %p329 = scmp.ne.s32.totalorder %s312, %s328
      %p330 = scmp.eq.s32.totalorder %s42, 0
      %p331 = por %p329, %p330
      %s332 = ssub.s32 %s44, %s51
      %p333 = scmp.eq.s32.totalorder %s332, 0
      %s335 = sadd.s32 %s334, 1
      %s336 = scalar_select %p333, %s334, %s335
      %p339 = pneg %p333
      %p340 = scmp.eq.s32.totalorder %s36, 3
      %p341 = por %p339, %p340
      %p342 = scmp.ne.s32.totalorder %s334, %s337
      %p343 = scmp.eq.s32.totalorder %s36, 0
      %p344 = por %p342, %p343
      %p345 = scmp.ne.s32.totalorder %s334, %s337
      %p346 = scmp.eq.s32.totalorder %s41, 3
      %p347 = por %p345, %p346
      %p348 = scmp.ne.s32.totalorder %s337, %s338
      %p349 = scmp.eq.s32.totalorder %s41, 0
      %p350 = por %p348, %p349
      %p351 = scmp.ne.s32.totalorder %s337, %s338
      %p352 = scmp.eq.s32.totalorder %s42, 3
      %p353 = por %p351, %p352
      %p355 = scmp.ne.s32.totalorder %s338, %s354
      %p356 = scmp.eq.s32.totalorder %s42, 0
      %p357 = por %p355, %p356
      %s358 = ssub.s32 %s44, %s51
      %p359 = scmp.eq.s32.totalorder %s358, 0
      %s361 = sadd.s32 %s360, 1
      %s362 = scalar_select %p359, %s360, %s361
      %p365 = pneg %p359
      %p366 = scmp.eq.s32.totalorder %s36, 3
      %p367 = por %p365, %p366
      %p368 = scmp.ne.s32.totalorder %s360, %s363
      %p369 = scmp.eq.s32.totalorder %s36, 0
      %p370 = por %p368, %p369
      %p371 = scmp.ne.s32.totalorder %s360, %s363
      %p372 = scmp.eq.s32.totalorder %s41, 3
      %p373 = por %p371, %p372
      %p374 = scmp.ne.s32.totalorder %s363, %s364
      %p375 = scmp.eq.s32.totalorder %s41, 0
      %p376 = por %p374, %p375
      %p377 = scmp.ne.s32.totalorder %s363, %s364
      %p378 = scmp.eq.s32.totalorder %s42, 3
      %p379 = por %p377, %p378
      %p381 = scmp.ne.s32.totalorder %s364, %s380
      %p382 = scmp.eq.s32.totalorder %s42, 0
      %p383 = por %p381, %p382
      %s384 = ssub.s32 %s44, %s51
      %p385 = scmp.eq.s32.totalorder %s384, 0
      %s387 = sadd.s32 %s386, 1
      %s388 = scalar_select %p385, %s386, %s387
      %p391 = pneg %p385
      %p392 = scmp.eq.s32.totalorder %s36, 3
      %p393 = por %p391, %p392
      %p394 = scmp.ne.s32.totalorder %s386, %s389
      %p395 = scmp.eq.s32.totalorder %s36, 0
      %p396 = por %p394, %p395
      %p397 = scmp.ne.s32.totalorder %s386, %s389
      %p398 = scmp.eq.s32.totalorder %s41, 3
      %p399 = por %p397, %p398
      %p400 = scmp.ne.s32.totalorder %s389, %s390
      %p401 = scmp.eq.s32.totalorder %s41, 0
      %p402 = por %p400, %p401
      %p403 = scmp.ne.s32.totalorder %s389, %s390
      %p404 = scmp.eq.s32.totalorder %s42, 3
      %p405 = por %p403, %p404
      %p407 = scmp.ne.s32.totalorder %s390, %s406
      %p408 = scmp.eq.s32.totalorder %s42, 0
      %p409 = por %p407, %p408
      %s410 = ssub.s32 %s44, %s51
      %p411 = scmp.eq.s32.totalorder %s410, 0
      %s413 = sadd.s32 %s412, 1
      %s414 = scalar_select %p411, %s412, %s413
      %p417 = pneg %p411
      %p418 = scmp.eq.s32.totalorder %s36, 3
      %p419 = por %p417, %p418
      %p420 = scmp.ne.s32.totalorder %s412, %s415
      %p421 = scmp.eq.s32.totalorder %s36, 0
      %p422 = por %p420, %p421
      %p423 = scmp.ne.s32.totalorder %s412, %s415
      %p424 = scmp.eq.s32.totalorder %s41, 3
      %p425 = por %p423, %p424
      %p426 = scmp.ne.s32.totalorder %s415, %s416
      %p427 = scmp.eq.s32.totalorder %s41, 0
      %p428 = por %p426, %p427
      %p429 = scmp.ne.s32.totalorder %s415, %s416
      %p430 = scmp.eq.s32.totalorder %s42, 3
      %p431 = por %p429, %p430
      %p433 = scmp.ne.s32.totalorder %s416, %s432
      %p434 = scmp.eq.s32.totalorder %s42, 0
      %p435 = por %p433, %p434
      %s436 = ssub.s32 %s44, %s51
      %p437 = scmp.eq.s32.totalorder %s436, 0
      %s439 = sadd.s32 %s438, 1
      %s440 = scalar_select %p437, %s438, %s439
      %p443 = pneg %p437
      %p444 = scmp.eq.s32.totalorder %s36, 3
      %p445 = por %p443, %p444
      %p446 = scmp.ne.s32.totalorder %s438, %s441
      %p447 = scmp.eq.s32.totalorder %s36, 0
      %p448 = por %p446, %p447
      %p449 = scmp.ne.s32.totalorder %s438, %s441
      %p450 = scmp.eq.s32.totalorder %s41, 3
      %p451 = por %p449, %p450
      %p452 = scmp.ne.s32.totalorder %s441, %s442
      %p453 = scmp.eq.s32.totalorder %s41, 0
      %p454 = por %p452, %p453
      %p455 = scmp.ne.s32.totalorder %s441, %s442
      %p456 = scmp.eq.s32.totalorder %s42, 3
      %p457 = por %p455, %p456
      %p459 = scmp.ne.s32.totalorder %s442, %s458
      %p460 = scmp.eq.s32.totalorder %s42, 0
      %p461 = por %p459, %p460
      %s463 = sadd.s32 %s462, 1
      %p466 = scmp.eq.s32.totalorder %s36, 3
      %p467 = scmp.ne.s32.totalorder %s462, %s464
      %p468 = scmp.eq.s32.totalorder %s36, 0
      %p469 = por %p467, %p468
      %p470 = scmp.ne.s32.totalorder %s462, %s464
      %p471 = scmp.eq.s32.totalorder %s41, 3
      %p472 = por %p470, %p471
      %p473 = scmp.ne.s32.totalorder %s464, %s465
      %p474 = scmp.eq.s32.totalorder %s41, 0
      %p475 = por %p473, %p474
      %p476 = scmp.ne.s32.totalorder %s464, %s465
      %p477 = scmp.eq.s32.totalorder %s42, 3
      %p478 = por %p476, %p477
      %p480 = scmp.ne.s32.totalorder %s465, %s479
      %p481 = scmp.eq.s32.totalorder %s42, 0
      %p482 = por %p480, %p481
      %s484 = sadd.s32 %s483, 1
      %p487 = scmp.eq.s32.totalorder %s36, 3
      %p488 = scmp.ne.s32.totalorder %s483, %s485
      %p489 = scmp.eq.s32.totalorder %s36, 0
      %p490 = por %p488, %p489
      %p491 = scmp.ne.s32.totalorder %s483, %s485
      %p492 = scmp.eq.s32.totalorder %s41, 3
      %p493 = por %p491, %p492
      %p494 = scmp.ne.s32.totalorder %s485, %s486
      %p495 = scmp.eq.s32.totalorder %s41, 0
      %p496 = por %p494, %p495
      %p497 = scmp.ne.s32.totalorder %s485, %s486
      %p498 = scmp.eq.s32.totalorder %s42, 3
      %p499 = por %p497, %p498
      %p501 = scmp.ne.s32.totalorder %s486, %s500
      %p502 = scmp.eq.s32.totalorder %s42, 0
      %p503 = por %p501, %p502
      %s505 = sadd.s32 %s504, 1
      %p508 = scmp.eq.s32.totalorder %s36, 3
      %p509 = scmp.ne.s32.totalorder %s504, %s506
      %p510 = scmp.eq.s32.totalorder %s36, 0
      %p511 = por %p509, %p510
      %p512 = scmp.ne.s32.totalorder %s504, %s506
      %p513 = scmp.eq.s32.totalorder %s41, 3
      %p514 = por %p512, %p513
      %p515 = scmp.ne.s32.totalorder %s506, %s507
      %p516 = scmp.eq.s32.totalorder %s41, 0
      %p517 = por %p515, %p516
      %p518 = scmp.ne.s32.totalorder %s506, %s507
      %p519 = scmp.eq.s32.totalorder %s42, 3
      %p520 = por %p518, %p519
      %p522 = scmp.ne.s32.totalorder %s507, %s521
      %p523 = scmp.eq.s32.totalorder %s42, 0
      %p524 = por %p522, %p523
      %s526 = sadd.s32 %s525, 1
      %p529 = scmp.eq.s32.totalorder %s36, 3
      %p530 = scmp.ne.s32.totalorder %s525, %s527
      %p531 = scmp.eq.s32.totalorder %s36, 0
      %p532 = por %p530, %p531
      %p533 = scmp.ne.s32.totalorder %s525, %s527
      %p534 = scmp.eq.s32.totalorder %s41, 3
      %p535 = por %p533, %p534
      %p536 = scmp.ne.s32.totalorder %s527, %s528
      %p537 = scmp.eq.s32.totalorder %s41, 0
      %p538 = por %p536, %p537
      %p539 = scmp.ne.s32.totalorder %s527, %s528
      %p540 = scmp.eq.s32.totalorder %s42, 3
      %p541 = por %p539, %p540
      %p543 = scmp.ne.s32.totalorder %s528, %s542
      %p544 = scmp.eq.s32.totalorder %s42, 0
      %p545 = por %p543, %p544
      %s546 = ssub.s32 %s43, %s55
      %p547 = scmp.eq.s32.totalorder %s546, 0
      %s549 = sadd.s32 %s548, 1
      %s550 = scalar_select %p547, %s548, %s549
      %p553 = pneg %p547
      %p554 = scmp.eq.s32.totalorder %s36, 3
      %p555 = por %p553, %p554
      %p556 = scmp.ne.s32.totalorder %s548, %s551
      %p557 = scmp.eq.s32.totalorder %s36, 0
      %p558 = por %p556, %p557
      %p559 = scmp.ne.s32.totalorder %s548, %s551
      %p560 = scmp.eq.s32.totalorder %s41, 3
      %p561 = por %p559, %p560
      %p562 = scmp.ne.s32.totalorder %s551, %s552
      %p563 = scmp.eq.s32.totalorder %s41, 0
      %p564 = por %p562, %p563
      %p565 = scmp.ne.s32.totalorder %s551, %s552
      %p566 = scmp.eq.s32.totalorder %s42, 3
      %p567 = por %p565, %p566
      %p569 = scmp.ne.s32.totalorder %s552, %s568
      %p570 = scmp.eq.s32.totalorder %s42, 0
      %p571 = por %p569, %p570
      %p572 = scmp.le.s32.totalorder 1, %s36
      %p573 = scmp.lt.s32.totalorder %s36, 5
      %p574 = pnand %p572, %p573
      %p575 = pneg %p574
      // Predicated region
      $region9: #{tpu_custom_call.1} parent=5 // pred_check
        _
      $region10: #{tpu_custom_call.1} parent=5 // pred_check_branch
        %577 = sbr.rel (%p574) target = $region12
      $region11: #{tpu_custom_call.1} parent=5 // pred_region
        %s578 = ssub.s32 %s36, 1
        // Predicated region
        $region13: #{tpu_custom_call.1} parent=11 // pred_check
          %p579 = pneg %p121
        $region14: #{tpu_custom_call.1} parent=11 // pred_check_branch
          %581 = sbr.rel (%p579) target = $region16
        $region15: #{tpu_custom_call.1} parent=11 // pred_region
          %s583 = ssub.s32 16, 16
          %584 = vsyncadd [#allocation7], %s583
          %s586 = sshll.u32 [#allocation8], 4
          %s587 = int_to_ptr.vmem [resolvable:$true] %s586
          %589 = dma.hbm_to_vmem [thread:$0]  %s2, 16, %s587, [#allocation7]
        $region16: #{tpu_custom_call.1} parent=11 // pred_fallthru
          _
        // Predicated region
        $region17: #{tpu_custom_call.1} parent=11 // pred_check
          %p590 = pneg %p142
        $region18: #{tpu_custom_call.1} parent=11 // pred_check_branch
          %592 = sbr.rel (%p590) target = $region20
        $region19: #{tpu_custom_call.1} parent=11 // pred_region
          %s594 = ssub.s32 16, 16
          %595 = vsyncadd [#allocation10], %s594
          %s597 = sshll.u32 [#allocation9], 4
          %s598 = int_to_ptr.vmem [resolvable:$true] %s597
          %600 = dma.hbm_to_vmem [thread:$0]  %s3, 16, %s598, [#allocation10]
        $region20: #{tpu_custom_call.1} parent=11 // pred_fallthru
          _
        // Predicated region
        $region21: #{tpu_custom_call.1} parent=11 // pred_check
          %p601 = pneg %p475
        $region22: #{tpu_custom_call.1} parent=11 // pred_check_branch
          %603 = sbr.rel (%p601) target = $region24
        $region23: #{tpu_custom_call.1} parent=11 // pred_region
          _
        $region24: #{tpu_custom_call.1} parent=11 // pred_fallthru
          _
        // Predicated region
        $region25: #{tpu_custom_call.1} parent=11 // pred_check
          %p604 = pneg %p496
        $region26: #{tpu_custom_call.1} parent=11 // pred_check_branch
          %606 = sbr.rel (%p604) target = $region28
        $region27: #{tpu_custom_call.1} parent=11 // pred_region
          %s608 = ssub.s32 16, 16
          %609 = vsyncadd [#allocation10], %s608
          %s611 = sshll.u32 [#allocation19], 4
          %s612 = int_to_ptr.vmem [resolvable:$true] %s611
          %614 = dma.hbm_to_vmem [thread:$0]  %s17, 16, %s612, [#allocation10]
        $region28: #{tpu_custom_call.1} parent=11 // pred_fallthru
          _
        // Predicated region
        $region29: #{tpu_custom_call.1} parent=11 // pred_check
          %p615 = pneg %p517
        $region30: #{tpu_custom_call.1} parent=11 // pred_check_branch
          %617 = sbr.rel (%p615) target = $region32
        $region31: #{tpu_custom_call.1} parent=11 // pred_region
          _
        $region32: #{tpu_custom_call.1} parent=11 // pred_fallthru
          _
        // Predicated region
        $region33: #{tpu_custom_call.1} parent=11 // pred_check
          %p618 = pneg %p538
        $region34: #{tpu_custom_call.1} parent=11 // pred_check_branch
          %620 = sbr.rel (%p618) target = $region36
        $region35: #{tpu_custom_call.1} parent=11 // pred_region
          _
        $region36: #{tpu_custom_call.1} parent=11 // pred_fallthru
          _
      $region12: #{tpu_custom_call.1} parent=5 // pred_fallthru
        _
      %p621 = scmp.lt.s32.totalorder %s36, 4
      // Predicated region
      $region37: #{tpu_custom_call.1} parent=5 // pred_check
        %p622 = pneg %p621
      $region38: #{tpu_custom_call.1} parent=5 // pred_check_branch
        %624 = sbr.rel (%p622) target = $region40
      $region39: #{tpu_custom_call.1} parent=5 // pred_region
        // Predicated region
        $region41: #{tpu_custom_call.1} parent=39 // pred_check
          %p625 = pneg %p68
        $region42: #{tpu_custom_call.1} parent=39 // pred_check_branch
          %627 = sbr.rel (%p625) target = $region44
        $region43: #{tpu_custom_call.1} parent=39 // pred_region
          %s628 = sand.u32 %s36, 1
          %s629 = scalar_lea.sflag [#allocation4], %s628
          %s630 = sand.u32 %s58, 1
          %s631 = smul.addr %s630, 8
          %s632 = scalar_lea.vmem [#allocation3], %s631
          %s634 = ssub.s32 128, 128
          %635 = vsyncadd %s629, %s634
          %s636 = smul.addr %s43, 128
          %s637 = scalar_lea.hbm %s0, %s636
          %s639 = sshll.u32 %s632, 4
          %s640 = int_to_ptr.vmem [resolvable:$true] %s639
          %642 = dma.hbm_to_vmem [thread:$0]  %s637, 128, %s640, %s629
        $region44: #{tpu_custom_call.1} parent=39 // pred_fallthru
          _
        // Predicated region
        $region45: #{tpu_custom_call.1} parent=39 // pred_check
          %p643 = pneg %p94
        $region46: #{tpu_custom_call.1} parent=39 // pred_check_branch
          %645 = sbr.rel (%p643) target = $region48
        $region47: #{tpu_custom_call.1} parent=39 // pred_region
          %s646 = sand.u32 %s36, 1
          %s647 = scalar_lea.sflag [#allocation7], %s646
          %s648 = sand.u32 %s84, 1
          %s649 = scalar_lea.vmem [#allocation6], %s648
          %s651 = ssub.s32 16, 16
          %652 = vsyncadd %s647, %s651
          %s653 = smul.addr %s43, 16
          %s654 = scalar_lea.hbm %s1, %s653
          %s656 = sshll.u32 %s649, 4
          %s657 = int_to_ptr.vmem [resolvable:$true] %s656
          %659 = dma.hbm_to_vmem [thread:$0]  %s654, 16, %s657, %s647
        $region48: #{tpu_custom_call.1} parent=39 // pred_fallthru
          _
        // Predicated region
        $region49: #{tpu_custom_call.1} parent=39 // pred_check
          %p660 = pneg %p162
        $region50: #{tpu_custom_call.1} parent=39 // pred_check_branch
          %662 = sbr.rel (%p660) target = $region52
        $region51: #{tpu_custom_call.1} parent=39 // pred_region
          %p663 = scmp.lt.s32.totalorder %s44, 1
          %s664 = scalar_select %p663, %s44, 1
          %s665 = smul.addr %s664, 4
          %s666 = smul.addr %s665, 4
          %s667 = scalar_lea.vmem %s4, %s666
        $region52: #{tpu_custom_call.1} parent=39 // pred_fallthru
          _
        // Predicated region
        $region53: #{tpu_custom_call.1} parent=39 // pred_check
          %p668 = pneg %p188
        $region54: #{tpu_custom_call.1} parent=39 // pred_check_branch
          %670 = sbr.rel (%p668) target = $region56
        $region55: #{tpu_custom_call.1} parent=39 // pred_region
          %s671 = sand.u32 %s36, 1
          %s672 = scalar_lea.sflag [#allocation4], %s671
          %s673 = sand.u32 %s178, 1
          %s674 = scalar_lea.vmem [#allocation11], %s673
          %s676 = ssub.s32 16, 16
          %677 = vsyncadd %s672, %s676
          %s678 = smul.addr %s44, 16
          %s679 = scalar_lea.hbm %s5, %s678
          %s681 = sshll.u32 %s674, 4
          %s682 = int_to_ptr.vmem [resolvable:$true] %s681
          %684 = dma.hbm_to_vmem [thread:$0]  %s679, 16, %s682, %s672
        $region56: #{tpu_custom_call.1} parent=39 // pred_fallthru
          _
        // Predicated region
        $region57: #{tpu_custom_call.1} parent=39 // pred_check
          %p685 = pneg %p214
        $region58: #{tpu_custom_call.1} parent=39 // pred_check_branch
          %687 = sbr.rel (%p685) target = $region60
        $region59: #{tpu_custom_call.1} parent=39 // pred_region
          %p688 = scmp.lt.s32.totalorder %s44, 1
          %s689 = scalar_select %p688, %s44, 1
          %s690 = smul.addr %s689, 4
          %s691 = smul.addr %s690, 4
          %s692 = scalar_lea.vmem %s6, %s691
        $region60: #{tpu_custom_call.1} parent=39 // pred_fallthru
          _
        // Predicated region
        $region61: #{tpu_custom_call.1} parent=39 // pred_check
          %p693 = pneg %p240
        $region62: #{tpu_custom_call.1} parent=39 // pred_check_branch
          %695 = sbr.rel (%p693) target = $region64
        $region63: #{tpu_custom_call.1} parent=39 // pred_region
          %s696 = sand.u32 %s36, 1
          %s697 = scalar_lea.sflag [#allocation7], %s696
          %s698 = sand.u32 %s230, 1
          %s699 = scalar_lea.vmem [#allocation12], %s698
          %s701 = ssub.s32 16, 16
          %702 = vsyncadd %s697, %s701
          %s703 = smul.addr %s44, 16
          %s704 = scalar_lea.hbm %s7, %s703
          %s706 = sshll.u32 %s699, 4
          %s707 = int_to_ptr.vmem [resolvable:$true] %s706
          %709 = dma.hbm_to_vmem [thread:$0]  %s704, 16, %s707, %s697
        $region64: #{tpu_custom_call.1} parent=39 // pred_fallthru
          _
        // Predicated region
        $region65: #{tpu_custom_call.1} parent=39 // pred_check
          %p710 = pneg %p266
        $region66: #{tpu_custom_call.1} parent=39 // pred_check_branch
          %712 = sbr.rel (%p710) target = $region68
        $region67: #{tpu_custom_call.1} parent=39 // pred_region
          %s713 = sand.u32 %s36, 1
          %s714 = scalar_lea.sflag [#allocation4], %s713
          %s715 = sand.u32 %s256, 1
          %s716 = scalar_lea.vmem [#allocation13], %s715
          %s718 = ssub.s32 16, 16
          %719 = vsyncadd %s714, %s718
          %s720 = smul.addr %s44, 16
          %s721 = scalar_lea.hbm %s8, %s720
          %s723 = sshll.u32 %s716, 4
          %s724 = int_to_ptr.vmem [resolvable:$true] %s723
          %726 = dma.hbm_to_vmem [thread:$0]  %s721, 16, %s724, %s714
        $region68: #{tpu_custom_call.1} parent=39 // pred_fallthru
          _
        // Predicated region
        $region69: #{tpu_custom_call.1} parent=39 // pred_check
          %p727 = pneg %p292
        $region70: #{tpu_custom_call.1} parent=39 // pred_check_branch
          %729 = sbr.rel (%p727) target = $region72
        $region71: #{tpu_custom_call.1} parent=39 // pred_region
          %s730 = sand.u32 %s36, 1
          %s731 = scalar_lea.sflag [#allocation7], %s730
          %s732 = sand.u32 %s282, 1
          %s733 = scalar_lea.vmem [#allocation14], %s732
          %s735 = ssub.s32 16, 16
          %736 = vsyncadd %s731, %s735
          %s737 = smul.addr %s44, 16
          %s738 = scalar_lea.hbm %s9, %s737
          %s740 = sshll.u32 %s733, 4
          %s741 = int_to_ptr.vmem [resolvable:$true] %s740
          %743 = dma.hbm_to_vmem [thread:$0]  %s738, 16, %s741, %s731
        $region72: #{tpu_custom_call.1} parent=39 // pred_fallthru
          _
        // Predicated region
        $region73: #{tpu_custom_call.1} parent=39 // pred_check
          %p744 = pneg %p318
        $region74: #{tpu_custom_call.1} parent=39 // pred_check_branch
          %746 = sbr.rel (%p744) target = $region76
        $region75: #{tpu_custom_call.1} parent=39 // pred_region
          %p747 = scmp.lt.s32.totalorder %s44, 1
          %s748 = scalar_select %p747, %s44, 1
          %s749 = smul.addr %s748, 4
          %s750 = smul.addr %s749, 4
          %s751 = scalar_lea.vmem %s10, %s750
        $region76: #{tpu_custom_call.1} parent=39 // pred_fallthru
          _
        // Predicated region
        $region77: #{tpu_custom_call.1} parent=39 // pred_check
          %p752 = pneg %p344
        $region78: #{tpu_custom_call.1} parent=39 // pred_check_branch
          %754 = sbr.rel (%p752) target = $region80
        $region79: #{tpu_custom_call.1} parent=39 // pred_region
          %s755 = sand.u32 %s36, 1
          %s756 = scalar_lea.sflag [#allocation4], %s755
          %s757 = sand.u32 %s334, 1
          %s758 = scalar_lea.vmem [#allocation15], %s757
          %s760 = ssub.s32 16, 16
          %761 = vsyncadd %s756, %s760
          %s762 = smul.addr %s44, 16
          %s763 = scalar_lea.hbm %s11, %s762
          %s765 = sshll.u32 %s758, 4
          %s766 = int_to_ptr.vmem [resolvable:$true] %s765
          %768 = dma.hbm_to_vmem [thread:$0]  %s763, 16, %s766, %s756
        $region80: #{tpu_custom_call.1} parent=39 // pred_fallthru
          _
        // Predicated region
        $region81: #{tpu_custom_call.1} parent=39 // pred_check
          %p769 = pneg %p370
        $region82: #{tpu_custom_call.1} parent=39 // pred_check_branch
          %771 = sbr.rel (%p769) target = $region84
        $region83: #{tpu_custom_call.1} parent=39 // pred_region
          %p772 = scmp.lt.s32.totalorder %s44, 1
          %s773 = scalar_select %p772, %s44, 1
          %s774 = smul.addr %s773, 8
          %s775 = smul.addr %s774, 4
          %s776 = scalar_lea.vmem %s12, %s775
        $region84: #{tpu_custom_call.1} parent=39 // pred_fallthru
          _
        // Predicated region
        $region85: #{tpu_custom_call.1} parent=39 // pred_check
          %p777 = pneg %p396
        $region86: #{tpu_custom_call.1} parent=39 // pred_check_branch
          %779 = sbr.rel (%p777) target = $region88
        $region87: #{tpu_custom_call.1} parent=39 // pred_region
          %s780 = sand.u32 %s36, 1
          %s781 = scalar_lea.sflag [#allocation7], %s780
          %s782 = sand.u32 %s386, 1
          %s783 = scalar_lea.vmem [#allocation16], %s782
          %s785 = ssub.s32 16, 16
          %786 = vsyncadd %s781, %s785
          %s787 = smul.addr %s44, 16
          %s788 = scalar_lea.hbm %s13, %s787
          %s790 = sshll.u32 %s783, 4
          %s791 = int_to_ptr.vmem [resolvable:$true] %s790
          %793 = dma.hbm_to_vmem [thread:$0]  %s788, 16, %s791, %s781
        $region88: #{tpu_custom_call.1} parent=39 // pred_fallthru
          _
        // Predicated region
        $region89: #{tpu_custom_call.1} parent=39 // pred_check
          %p794 = pneg %p422
        $region90: #{tpu_custom_call.1} parent=39 // pred_check_branch
          %796 = sbr.rel (%p794) target = $region92
        $region91: #{tpu_custom_call.1} parent=39 // pred_region
          %s797 = sand.u32 %s36, 1
          %s798 = scalar_lea.sflag [#allocation4], %s797
          %s799 = sand.u32 %s412, 1
          %s800 = scalar_lea.vmem [#allocation17], %s799
          %s802 = ssub.s32 16, 16
          %803 = vsyncadd %s798, %s802
          %s804 = smul.addr %s44, 16
          %s805 = scalar_lea.hbm %s14, %s804
          %s807 = sshll.u32 %s800, 4
          %s808 = int_to_ptr.vmem [resolvable:$true] %s807
          %810 = dma.hbm_to_vmem [thread:$0]  %s805, 16, %s808, %s798
        $region92: #{tpu_custom_call.1} parent=39 // pred_fallthru
          _
        // Predicated region
        $region93: #{tpu_custom_call.1} parent=39 // pred_check
          %p811 = pneg %p448
        $region94: #{tpu_custom_call.1} parent=39 // pred_check_branch
          %813 = sbr.rel (%p811) target = $region96
        $region95: #{tpu_custom_call.1} parent=39 // pred_region
          %s814 = sand.u32 %s36, 1
          %s815 = scalar_lea.sflag [#allocation7], %s814
          %s816 = sand.u32 %s438, 1
          %s817 = scalar_lea.vmem [#allocation18], %s816
          %s819 = ssub.s32 16, 16
          %820 = vsyncadd %s815, %s819
          %s821 = smul.addr %s44, 16
          %s822 = scalar_lea.hbm %s15, %s821
          %s824 = sshll.u32 %s817, 4
          %s825 = int_to_ptr.vmem [resolvable:$true] %s824
          %827 = dma.hbm_to_vmem [thread:$0]  %s822, 16, %s825, %s815
        $region96: #{tpu_custom_call.1} parent=39 // pred_fallthru
          _
      $region40: #{tpu_custom_call.1} parent=5 // pred_fallthru
        _
      %p828 = scmp.le.s32.totalorder 1, %s36
      %p829 = scmp.lt.s32.totalorder %s36, 5
      %p830 = pnand %p828, %p829
      %p831 = pneg %p830
      // Predicated region
      $region97: #{tpu_custom_call.1} parent=5 // pred_check
        _
      $region98: #{tpu_custom_call.1} parent=5 // pred_check_branch
        %833 = sbr.rel (%p830) target = $region100
      $region99: #{tpu_custom_call.1} parent=5 // pred_region
        %s834 = ssub.s32 %s36, 1
        %s835 = sand.u32 %s41, 1
        %s836 = scalar_lea.sflag [#allocation4], %s835
        %s837 = sand.u32 %s61, 1
        %s838 = smul.addr %s837, 8
        %s839 = scalar_lea.vmem [#allocation3], %s838
        // Predicated region
        $region101: #{tpu_custom_call.1} parent=99 // pred_check
          %p840 = pneg %p74
        $region102: #{tpu_custom_call.1} parent=99 // pred_check_branch
          %842 = sbr.rel (%p840) target = $region104
        $region103: #{tpu_custom_call.1} parent=99 // pred_region
          %843 = dma.done %s836, 128
        $region104: #{tpu_custom_call.1} parent=99 // pred_fallthru
          _
        %s844 = sand.u32 %s41, 1
        %s845 = scalar_lea.sflag [#allocation7], %s844
        %s846 = sand.u32 %s87, 1
        %s847 = scalar_lea.vmem [#allocation6], %s846
        // Predicated region
        $region105: #{tpu_custom_call.1} parent=99 // pred_check
          %p848 = pneg %p100
        $region106: #{tpu_custom_call.1} parent=99 // pred_check_branch
          %850 = sbr.rel (%p848) target = $region108
        $region107: #{tpu_custom_call.1} parent=99 // pred_region
          %851 = dma.done %s845, 16
        $region108: #{tpu_custom_call.1} parent=99 // pred_fallthru
          _
        // Predicated region
        $region109: #{tpu_custom_call.1} parent=99 // pred_check
          %p852 = pneg %p121
        $region110: #{tpu_custom_call.1} parent=99 // pred_check_branch
          %854 = sbr.rel (%p852) target = $region112
        $region111: #{tpu_custom_call.1} parent=99 // pred_region
          %855 = dma.done [#allocation7], 16
        $region112: #{tpu_custom_call.1} parent=99 // pred_fallthru
          _
        // Predicated region
        $region113: #{tpu_custom_call.1} parent=99 // pred_check
          %p856 = pneg %p142
        $region114: #{tpu_custom_call.1} parent=99 // pred_check_branch
          %858 = sbr.rel (%p856) target = $region116
        $region115: #{tpu_custom_call.1} parent=99 // pred_region
          %859 = dma.done [#allocation10], 16
        $region116: #{tpu_custom_call.1} parent=99 // pred_fallthru
          _
        %s860 = sand.u32 %s41, 1
        %s861 = scalar_lea.sflag [#allocation4], %s860
        %s862 = sand.u32 %s181, 1
        %s863 = scalar_lea.vmem [#allocation11], %s862
        // Predicated region
        $region117: #{tpu_custom_call.1} parent=99 // pred_check
          %p864 = pneg %p194
        $region118: #{tpu_custom_call.1} parent=99 // pred_check_branch
          %866 = sbr.rel (%p864) target = $region120
        $region119: #{tpu_custom_call.1} parent=99 // pred_region
          %867 = dma.done %s861, 16
        $region120: #{tpu_custom_call.1} parent=99 // pred_fallthru
          _
        %s868 = sand.u32 %s41, 1
        %s869 = scalar_lea.sflag [#allocation7], %s868
        %s870 = sand.u32 %s233, 1
        %s871 = scalar_lea.vmem [#allocation12], %s870
        // Predicated region
        $region121: #{tpu_custom_call.1} parent=99 // pred_check
          %p872 = pneg %p246
        $region122: #{tpu_custom_call.1} parent=99 // pred_check_branch
          %874 = sbr.rel (%p872) target = $region124
        $region123: #{tpu_custom_call.1} parent=99 // pred_region
          %875 = dma.done %s869, 16
        $region124: #{tpu_custom_call.1} parent=99 // pred_fallthru
          _
        %s876 = sand.u32 %s41, 1
        %s877 = scalar_lea.sflag [#allocation4], %s876
        %s878 = sand.u32 %s259, 1
        %s879 = scalar_lea.vmem [#allocation13], %s878
        // Predicated region
        $region125: #{tpu_custom_call.1} parent=99 // pred_check
          %p880 = pneg %p272
        $region126: #{tpu_custom_call.1} parent=99 // pred_check_branch
          %882 = sbr.rel (%p880) target = $region128
        $region127: #{tpu_custom_call.1} parent=99 // pred_region
          %883 = dma.done %s877, 16
        $region128: #{tpu_custom_call.1} parent=99 // pred_fallthru
          _
        %s884 = sand.u32 %s41, 1
        %s885 = scalar_lea.sflag [#allocation7], %s884
        %s886 = sand.u32 %s285, 1
        %s887 = scalar_lea.vmem [#allocation14], %s886
        // Predicated region
        $region129: #{tpu_custom_call.1} parent=99 // pred_check
          %p888 = pneg %p298
        $region130: #{tpu_custom_call.1} parent=99 // pred_check_branch
          %890 = sbr.rel (%p888) target = $region132
        $region131: #{tpu_custom_call.1} parent=99 // pred_region
          %891 = dma.done %s885, 16
        $region132: #{tpu_custom_call.1} parent=99 // pred_fallthru
          _
        %s892 = sand.u32 %s41, 1
        %s893 = scalar_lea.sflag [#allocation4], %s892
        %s894 = sand.u32 %s337, 1
        %s895 = scalar_lea.vmem [#allocation15], %s894
        // Predicated region
        $region133: #{tpu_custom_call.1} parent=99 // pred_check
          %p896 = pneg %p350
        $region134: #{tpu_custom_call.1} parent=99 // pred_check_branch
          %898 = sbr.rel (%p896) target = $region136
        $region135: #{tpu_custom_call.1} parent=99 // pred_region
          %899 = dma.done %s893, 16
        $region136: #{tpu_custom_call.1} parent=99 // pred_fallthru
          _
        %s900 = sand.u32 %s41, 1
        %s901 = scalar_lea.sflag [#allocation7], %s900
        %s902 = sand.u32 %s389, 1
        %s903 = scalar_lea.vmem [#allocation16], %s902
        // Predicated region
        $region137: #{tpu_custom_call.1} parent=99 // pred_check
          %p904 = pneg %p402
        $region138: #{tpu_custom_call.1} parent=99 // pred_check_branch
          %906 = sbr.rel (%p904) target = $region140
        $region139: #{tpu_custom_call.1} parent=99 // pred_region
          %907 = dma.done %s901, 16
        $region140: #{tpu_custom_call.1} parent=99 // pred_fallthru
          _
        %s908 = sand.u32 %s41, 1
        %s909 = scalar_lea.sflag [#allocation4], %s908
        %s910 = sand.u32 %s415, 1
        %s911 = scalar_lea.vmem [#allocation17], %s910
        // Predicated region
        $region141: #{tpu_custom_call.1} parent=99 // pred_check
          %p912 = pneg %p428
        $region142: #{tpu_custom_call.1} parent=99 // pred_check_branch
          %914 = sbr.rel (%p912) target = $region144
        $region143: #{tpu_custom_call.1} parent=99 // pred_region
          %915 = dma.done %s909, 16
        $region144: #{tpu_custom_call.1} parent=99 // pred_fallthru
          _
        %s916 = sand.u32 %s41, 1
        %s917 = scalar_lea.sflag [#allocation7], %s916
        %s918 = sand.u32 %s441, 1
        %s919 = scalar_lea.vmem [#allocation18], %s918
        // Predicated region
        $region145: #{tpu_custom_call.1} parent=99 // pred_check
          %p920 = pneg %p454
        $region146: #{tpu_custom_call.1} parent=99 // pred_check_branch
          %922 = sbr.rel (%p920) target = $region148
        $region147: #{tpu_custom_call.1} parent=99 // pred_region
          %923 = dma.done %s917, 16
        $region148: #{tpu_custom_call.1} parent=99 // pred_fallthru
          _
        // Predicated region
        $region149: #{tpu_custom_call.1} parent=99 // pred_check
          %p924 = pneg %p496
        $region150: #{tpu_custom_call.1} parent=99 // pred_check_branch
          %926 = sbr.rel (%p924) target = $region152
        $region151: #{tpu_custom_call.1} parent=99 // pred_region
          %927 = dma.done [#allocation10], 16
        $region152: #{tpu_custom_call.1} parent=99 // pred_fallthru
          _
        %s928 = sand.u32 %s41, 1
        %s929 = scalar_lea.sflag [#allocation4], %s928
        %s930 = sand.u32 %s61, 1
        %s931 = smul.addr %s930, 8
        %s932 = scalar_lea.vmem [#allocation3], %s931
        %p933 = pneg %p74
        %p934 = pneg %p71
        %s935 = sand.u32 %s41, 1
        %s936 = scalar_lea.sflag [#allocation7], %s935
        %s937 = sand.u32 %s87, 1
        %s938 = scalar_lea.vmem [#allocation6], %s937
        %p939 = pneg %p100
        %p940 = pneg %p97
        %p941 = pneg %p121
        %p942 = pneg %p118
        %p943 = pneg %p142
        %p944 = pneg %p139
        %p945 = scmp.lt.s32.totalorder %s46, 1
        %s946 = scalar_select %p945, %s46, 1
        %s947 = smul.addr %s946, 4
        %s948 = smul.addr %s947, 4
        %s949 = scalar_lea.vmem %s4, %s948
        %p950 = pneg %p168
        %p951 = pneg %p165
        %s952 = sand.u32 %s41, 1
        %s953 = scalar_lea.sflag [#allocation4], %s952
        %s954 = sand.u32 %s181, 1
        %s955 = scalar_lea.vmem [#allocation11], %s954
        %p956 = pneg %p194
        %p957 = pneg %p191
        %p958 = scmp.lt.s32.totalorder %s46, 1
        %s959 = scalar_select %p958, %s46, 1
        %s960 = smul.addr %s959, 4
        %s961 = smul.addr %s960, 4
        %s962 = scalar_lea.vmem %s6, %s961
        %p963 = pneg %p220
        %p964 = pneg %p217
        %s965 = sand.u32 %s41, 1
        %s966 = scalar_lea.sflag [#allocation7], %s965
        %s967 = sand.u32 %s233, 1
        %s968 = scalar_lea.vmem [#allocation12], %s967
        %p969 = pneg %p246
        %p970 = pneg %p243
        %s971 = sand.u32 %s41, 1
        %s972 = scalar_lea.sflag [#allocation4], %s971
        %s973 = sand.u32 %s259, 1
        %s974 = scalar_lea.vmem [#allocation13], %s973
        %p975 = pneg %p272
        %p976 = pneg %p269
        %s977 = sand.u32 %s41, 1
        %s978 = scalar_lea.sflag [#allocation7], %s977
        %s979 = sand.u32 %s285, 1
        %s980 = scalar_lea.vmem [#allocation14], %s979
        %p981 = pneg %p298
        %p982 = pneg %p295
        %p983 = scmp.lt.s32.totalorder %s46, 1
        %s984 = scalar_select %p983, %s46, 1
        %s985 = smul.addr %s984, 4
        %s986 = smul.addr %s985, 4
        %s987 = scalar_lea.vmem %s10, %s986
        %p988 = pneg %p324
        %p989 = pneg %p321
        %s990 = sand.u32 %s41, 1
        %s991 = scalar_lea.sflag [#allocation4], %s990
        %s992 = sand.u32 %s337, 1
        %s993 = scalar_lea.vmem [#allocation15], %s992
        %p994 = pneg %p350
        %p995 = pneg %p347
        %p996 = scmp.lt.s32.totalorder %s46, 1
        %s997 = scalar_select %p996, %s46, 1
        %s998 = smul.addr %s997, 8
        %s999 = smul.addr %s998, 4
        %s1000 = scalar_lea.vmem %s12, %s999
        %p1001 = pneg %p376
        %p1002 = pneg %p373
        %s1003 = sand.u32 %s41, 1
        %s1004 = scalar_lea.sflag [#allocation7], %s1003
        %s1005 = sand.u32 %s389, 1
        %s1006 = scalar_lea.vmem [#allocation16], %s1005
        %p1007 = pneg %p402
        %p1008 = pneg %p399
        %s1009 = sand.u32 %s41, 1
        %s1010 = scalar_lea.sflag [#allocation4], %s1009
        %s1011 = sand.u32 %s415, 1
        %s1012 = scalar_lea.vmem [#allocation17], %s1011
        %p1013 = pneg %p428
        %p1014 = pneg %p425
        %s1015 = sand.u32 %s41, 1
        %s1016 = scalar_lea.sflag [#allocation7], %s1015
        %s1017 = sand.u32 %s441, 1
        %s1018 = scalar_lea.vmem [#allocation18], %s1017
        %p1019 = pneg %p454
        %p1020 = pneg %p451
        %p1021 = pneg %p475
        %p1022 = pneg %p472
        %p1023 = pneg %p496
        %p1024 = pneg %p493
        %p1025 = pneg %p517
        %p1026 = pneg %p514
        %p1027 = pneg %p538
        %p1028 = pneg %p535
        %p1029 = pneg %p564
        %p1030 = pneg %p561
        %s1031 = sand.u32 %s551, 1
        %s1032 = scalar_lea.sflag [#allocation5], %s1031
        %s1033 = sand.u32 %s551, 1
        %s1034 = scalar_lea.vmem [#allocation20], %s1033
        %p1035 = scmp.lt.s32.totalorder %s46, 1
        %s1036 = scalar_select %p1035, %s46, 1
        %s1037 = smul.addr %s1036, 4
        %s1038 = smul.addr %s1037, 4
        %s1039 = scalar_lea.vmem %s4, %s1038
        %p1040 = scmp.lt.s32.totalorder %s46, 1
        %s1041 = scalar_select %p1040, %s46, 1
        %s1042 = smul.addr %s1041, 4
        %s1043 = smul.addr %s1042, 4
        %s1044 = scalar_lea.vmem %s6, %s1043
        %p1045 = scmp.lt.s32.totalorder %s46, 1
        %s1046 = scalar_select %p1045, %s46, 1
        %s1047 = smul.addr %s1046, 4
        %s1048 = smul.addr %s1047, 4
        %s1049 = scalar_lea.vmem %s10, %s1048
        %p1050 = scmp.lt.s32.totalorder %s46, 1
        %s1051 = scalar_select %p1050, %s46, 1
        %s1052 = smul.addr %s1051, 8
        %s1053 = smul.addr %s1052, 4
        %s1054 = scalar_lea.vmem %s12, %s1053
        %p1056 = scmp.eq.s32.totalorder %s46, 0
        // Predicated region
        $region153: #{tpu_custom_call.1} parent=99 // pred_check
          %p1057 = pneg %p1056
        $region154: #{tpu_custom_call.1} parent=99 // pred_check_branch
          %1059 = sbr.rel (%p1057) target = $region156
        $region155: #{tpu_custom_call.1} parent=99 // pred_region
          %v1060 = vld [vmem:[%s839] sm:$0xff]
          %v1061 = vld [vmem:[#allocation8] sm:$0x1]
          %v1062 = vld [vmem:[#allocation9] sm:$0x1]
          %vm1063 = vcmask 261120
          %v1064 = vsel %vm1063, %v1060, 0.0
          %1065 = vadd.xlane.f32.xlu0 %v1064
          %v1066 = vpop.xlane.xlu0 %1065
          %v1067 = vrcp.pop 32.0
          %v1068 = vmul.f32 %v1066, %v1067
          %v1069 = vsub.f32 %v1060, %v1068
          %v1070 = vmul.f32 %v1069, %v1069
          %v1071 = vsel %vm1063, %v1070, 0.0
          %1072 = vadd.xlane.f32.xlu0 %v1071
          %v1073 = vpop.xlane.xlu0 %1072
          %v1074 = vmul.f32 %v1073, %v1067
          %v1075 = vadd.f32 %v1074, 1e-12
          %v1076 = vrsqrt.pop %v1075
          %v1077 = vmul.f32 %v1069, %v1076
          %v1079 = vlaneseq
          %v1080 = vshrl.u32 %v1079, 7
          %v1081 = vsub.s32 0, %v1080
          %v1082 = vrot.slane %v1061, %v1081
          %v1084 = vmul.f32 %v1077, %v1082
          %v1086 = vlaneseq
          %v1087 = vshrl.u32 %v1086, 7
          %v1088 = vsub.s32 0, %v1087
          %v1089 = vrot.slane %v1062, %v1088
          %v1091 = vadd.f32 %v1084, %v1089
          %1092 = vst.msk [vmem:[#allocation2] sm:$0xff] %vm1063, %v1091
        $region156: #{tpu_custom_call.1} parent=99 // pred_fallthru
          _
        %v1093 = vld [vmem:[#allocation2] sm:$0xff]
        %v1094 = vpack.c.bf16 %v1093, %v1093
        %v1095 = vld [vmem:[%s1039] sm:$0xf]
        %v1096 = vld [vmem:[%s1039 + $0x4] sm:$0xf]
        %v1097 = vld [vmem:[%s1039 + $0x8] sm:$0xf]
        %v1098 = vld [vmem:[%s1039 + $0xc] sm:$0xf]
        %v1099 = vld [vmem:[%s863] sm:$0x1]
        %v1101 = vlaneseq
        %v1102 = vshrl.u32 %v1101, 7
        %v1103 = vsub.s32 0, %v1102
        %v1104 = vrot.slane %v1099, %v1103
        %v1110 = vunpack.c.l.b16 %v1095
        %v1111 = vunpack.c.l.b16 %v1096
        %v1112 = vunpack.c.l.b16 %v1097
        %v1113 = vunpack.c.l.b16 %v1098
        %v1114 = vpack.c.b16 %v1111, %v1110
        %v1115 = vpack.c.b16 %v1113, %v1112
        %vm1118 = vcmask 261120
        %v1120 = vsel %vm1118, %v1094, 0
        %1122 = vmatprep.subr.bf16.mxu0 0
        %1123 = vmatpush1.bf16.msra.mxu0 0
        %1124 = vmatprep.subr.bf16.mxu0 0
        %1125 = vmatpush1.bf16.msra.mxu0 0
        %1126 = vmatprep.subr.bf16.mxu0 0
        %1127 = vmatpush1.bf16.msra.mxu0 0
        %1128 = vmatprep.subr.bf16.mxu0 0
        %1129 = vmatpush1.bf16.msra.mxu0 0
        %1130 = vmatprep.subr.bf16.mxu0 0
        %1131 = vmatpush1.bf16.msra.mxu0 0
        %1132 = vmatprep.subr.bf16.mxu0 0
        %1133 = vmatpush1.bf16.msra.mxu0 0
        %1134 = vmatprep.subr.bf16.mxu0 0
        %1135 = vmatpush1.bf16.msra.mxu0 %v1115
        %1136 = vmatprep.subr.bf16.mxu0 0
        %1137 = vmatpush1.bf16.msra.mxu0 %v1114
        %1138 = vmatprep.subr.bf16.mxu0 0
        %1139 = vmatpush2.bf16.msra.mxu0 0
        %1140 = vmatprep.subr.bf16.mxu0 0
        %1141 = vmatpush2.bf16.msra.mxu0 0
        %1142 = vmatprep.subr.bf16.mxu0 0
        %1143 = vmatpush2.bf16.msra.mxu0 0
        %1144 = vmatprep.subr.bf16.mxu0 0
        %1145 = vmatpush2.bf16.msra.mxu0 0
        %1146 = vmatprep.subr.bf16.mxu0 0
        %1147 = vmatpush2.bf16.msra.mxu0 0
        %1148 = vmatprep.subr.bf16.mxu0 0
        %1149 = vmatpush2.bf16.msra.mxu0 0
        %1150 = vmatprep.subr.bf16.mxu0 0
        %1151 = vmatpush2.bf16.msra.mxu0 0
        %1152 = vmatprep.subr.bf16.mxu0 0
        %1153 = vmatpush2.bf16.msra.mxu0 0
        %1154 = vmatprep.mubr.bf16.mxu0 0
        %1155 = vmatmul.mubr.bf16.gmra.mxu0 %v1120
        %v1156 = vpop.f32.mrf.mxu0
        %v1157 = vadd.f32 %v1104, %v1156
        %v1158 = vpop.f32.mrf.mxu0
        %v1159 = vpop.f32.mrf.mxu0
        %v1160 = vpop.f32.mrf.mxu0
        %1161 = vdwg.mxu0
        %1163 = vrot.lane.b32.xlu0 %v1157, 120
        %v1164 = vpop.permute.xlu0 %1163
        %1165 = vrot.lane.b32.xlu0 %v1157, 112
        %v1166 = vpop.permute.xlu0 %1165
        %1167 = vrot.lane.b32.xlu0 %v1157, 104
        %v1168 = vpop.permute.xlu0 %1167
        %1169 = vrot.lane.b32.xlu0 %v1157, 96
        %v1170 = vpop.permute.xlu0 %1169
        %1171 = vrot.lane.b32.xlu0 %v1164, 96
        %v1172 = vpop.permute.xlu0 %1171
        %1173 = vrot.lane.b32.xlu0 %v1166, 96
        %v1174 = vpop.permute.xlu0 %1173
        %1175 = vrot.lane.b32.xlu0 %v1168, 96
        %v1176 = vpop.permute.xlu0 %1175
        %1181 = vxpose.xlu0.b32.start [1/16] %v1170, 128
        %1182 = vxpose.xlu0.b32.cont [2/16] 0.0, 128
        %1183 = vxpose.xlu0.b32.cont [3/16] 0.0, 128
        %1184 = vxpose.xlu0.b32.cont [4/16] 0.0, 128
        %1185 = vxpose.xlu0.b32.cont [5/16] 0.0, 128
        %1186 = vxpose.xlu0.b32.cont [6/16] 0.0, 128
        %1187 = vxpose.xlu0.b32.cont [7/16] 0.0, 128
        %1188 = vxpose.xlu0.b32.cont [8/16] 0.0, 128
        %1189 = vxpose.xlu0.b32.cont [9/16] 0.0, 128
        %1190 = vxpose.xlu0.b32.cont [10/16] 0.0, 128
        %1191 = vxpose.xlu0.b32.cont [11/16] 0.0, 128
        %1192 = vxpose.xlu0.b32.cont [12/16] 0.0, 128
        %1193 = vxpose.xlu0.b32.cont [13/16] 0.0, 128
        %1194 = vxpose.xlu0.b32.cont [14/16] 0.0, 128
        %1195 = vxpose.xlu0.b32.cont [15/16] 0.0, 128
        %1196 = vxpose.xlu0.b32.end [16/16] 0.0, 128
        %v1197 = vpop.trf.xlu0
        %v1198 = vpop.trf.xlu0
        %v1199 = vpop.trf.xlu0
        %v1200 = vpop.trf.xlu0
        %v1201 = vpop.trf.xlu0
        %v1202 = vpop.trf.xlu0
        %v1203 = vpop.trf.xlu0
        %v1204 = vpop.trf.xlu0
        %v1205 = vpop.trf.xlu0
        %v1206 = vpop.trf.xlu0
        %v1207 = vpop.trf.xlu0
        %v1208 = vpop.trf.xlu0
        %v1209 = vpop.trf.xlu0
        %v1210 = vpop.trf.xlu0
        %v1211 = vpop.trf.xlu0
        %v1212 = vpop.trf.xlu0
        %1213 = vxpose.xlu0.b32.start [1/16] %v1172, 128
        %1214 = vxpose.xlu0.b32.cont [2/16] 0.0, 128
        %1215 = vxpose.xlu0.b32.cont [3/16] 0.0, 128
        %1216 = vxpose.xlu0.b32.cont [4/16] 0.0, 128
        %1217 = vxpose.xlu0.b32.cont [5/16] 0.0, 128
        %1218 = vxpose.xlu0.b32.cont [6/16] 0.0, 128
        %1219 = vxpose.xlu0.b32.cont [7/16] 0.0, 128
        %1220 = vxpose.xlu0.b32.cont [8/16] 0.0, 128
        %1221 = vxpose.xlu0.b32.cont [9/16] 0.0, 128
        %1222 = vxpose.xlu0.b32.cont [10/16] 0.0, 128
        %1223 = vxpose.xlu0.b32.cont [11/16] 0.0, 128
        %1224 = vxpose.xlu0.b32.cont [12/16] 0.0, 128
        %1225 = vxpose.xlu0.b32.cont [13/16] 0.0, 128
        %1226 = vxpose.xlu0.b32.cont [14/16] 0.0, 128
        %1227 = vxpose.xlu0.b32.cont [15/16] 0.0, 128
        %1228 = vxpose.xlu0.b32.end [16/16] 0.0, 128
        %v1229 = vpop.trf.xlu0
        %v1230 = vpop.trf.xlu0
        %v1231 = vpop.trf.xlu0
        %v1232 = vpop.trf.xlu0
        %v1233 = vpop.trf.xlu0
        %v1234 = vpop.trf.xlu0
        %v1235 = vpop.trf.xlu0
        %v1236 = vpop.trf.xlu0
        %v1237 = vpop.trf.xlu0
        %v1238 = vpop.trf.xlu0
        %v1239 = vpop.trf.xlu0
        %v1240 = vpop.trf.xlu0
        %v1241 = vpop.trf.xlu0
        %v1242 = vpop.trf.xlu0
        %v1243 = vpop.trf.xlu0
        %v1244 = vpop.trf.xlu0
        %1245 = vxpose.xlu0.b32.start [1/16] %v1174, 128
        %1246 = vxpose.xlu0.b32.cont [2/16] 0.0, 128
        %1247 = vxpose.xlu0.b32.cont [3/16] 0.0, 128
        %1248 = vxpose.xlu0.b32.cont [4/16] 0.0, 128
        %1249 = vxpose.xlu0.b32.cont [5/16] 0.0, 128
        %1250 = vxpose.xlu0.b32.cont [6/16] 0.0, 128
        %1251 = vxpose.xlu0.b32.cont [7/16] 0.0, 128
        %1252 = vxpose.xlu0.b32.cont [8/16] 0.0, 128
        %1253 = vxpose.xlu0.b32.cont [9/16] 0.0, 128
        %1254 = vxpose.xlu0.b32.cont [10/16] 0.0, 128
        %1255 = vxpose.xlu0.b32.cont [11/16] 0.0, 128
        %1256 = vxpose.xlu0.b32.cont [12/16] 0.0, 128
        %1257 = vxpose.xlu0.b32.cont [13/16] 0.0, 128
        %1258 = vxpose.xlu0.b32.cont [14/16] 0.0, 128
        %1259 = vxpose.xlu0.b32.cont [15/16] 0.0, 128
        %1260 = vxpose.xlu0.b32.end [16/16] 0.0, 128
        %v1261 = vpop.trf.xlu0
        %v1262 = vpop.trf.xlu0
        %v1263 = vpop.trf.xlu0
        %v1264 = vpop.trf.xlu0
        %v1265 = vpop.trf.xlu0
        %v1266 = vpop.trf.xlu0
        %v1267 = vpop.trf.xlu0
        %v1268 = vpop.trf.xlu0
        %v1269 = vpop.trf.xlu0
        %v1270 = vpop.trf.xlu0
        %v1271 = vpop.trf.xlu0
        %v1272 = vpop.trf.xlu0
        %v1273 = vpop.trf.xlu0
        %v1274 = vpop.trf.xlu0
        %v1275 = vpop.trf.xlu0
        %v1276 = vpop.trf.xlu0
        %1277 = vxpose.xlu0.b32.start [1/16] %v1176, 128
        %1278 = vxpose.xlu0.b32.cont [2/16] 0.0, 128
        %1279 = vxpose.xlu0.b32.cont [3/16] 0.0, 128
        %1280 = vxpose.xlu0.b32.cont [4/16] 0.0, 128
        %1281 = vxpose.xlu0.b32.cont [5/16] 0.0, 128
        %1282 = vxpose.xlu0.b32.cont [6/16] 0.0, 128
        %1283 = vxpose.xlu0.b32.cont [7/16] 0.0, 128
        %1284 = vxpose.xlu0.b32.cont [8/16] 0.0, 128
        %1285 = vxpose.xlu0.b32.cont [9/16] 0.0, 128
        %1286 = vxpose.xlu0.b32.cont [10/16] 0.0, 128
        %1287 = vxpose.xlu0.b32.cont [11/16] 0.0, 128
        %1288 = vxpose.xlu0.b32.cont [12/16] 0.0, 128
        %1289 = vxpose.xlu0.b32.cont [13/16] 0.0, 128
        %1290 = vxpose.xlu0.b32.cont [14/16] 0.0, 128
        %1291 = vxpose.xlu0.b32.cont [15/16] 0.0, 128
        %1292 = vxpose.xlu0.b32.end [16/16] 0.0, 128
        %v1293 = vpop.trf.xlu0
        %v1294 = vpop.trf.xlu0
        %v1295 = vpop.trf.xlu0
        %v1296 = vpop.trf.xlu0
        %v1297 = vpop.trf.xlu0
        %v1298 = vpop.trf.xlu0
        %v1299 = vpop.trf.xlu0
        %v1300 = vpop.trf.xlu0
        %v1301 = vpop.trf.xlu0
        %v1302 = vpop.trf.xlu0
        %v1303 = vpop.trf.xlu0
        %v1304 = vpop.trf.xlu0
        %v1305 = vpop.trf.xlu0
        %v1306 = vpop.trf.xlu0
        %v1307 = vpop.trf.xlu0
        %v1308 = vpop.trf.xlu0
        %vm1309 = vcmask 64512
        %v1310 = vsel %vm1309, %v1157, 0
        %1312 = vmatprep.subr.mxu0 0.0
        %1313 = vmatpush1.msra.mxu0 0.0
        %1314 = vmatprep.subr.mxu0 0.0
        %1315 = vmatpush1.msra.mxu0 0.0
        %1316 = vmatprep.subr.mxu0 0.0
        %1317 = vmatpush1.msra.mxu0 0.0
        %1318 = vmatprep.subr.mxu0 0.0
        %1319 = vmatpush1.msra.mxu0 0.0
        %1320 = vmatprep.subr.mxu0 0.0
        %1321 = vmatpush1.msra.mxu0 0.0
        %1322 = vmatprep.subr.mxu0 0.0
        %1323 = vmatpush1.msra.mxu0 0.0
        %1324 = vmatprep.subr.mxu0 0.0
        %1325 = vmatpush1.msra.mxu0 0.0
        %1326 = vmatprep.subr.mxu0 0.0
        %1327 = vmatpush1.msra.mxu0 0.0
        %1328 = vmatprep.subr.mxu0 0.0
        %1329 = vmatpush1.msra.mxu0 0.0
        %1330 = vmatprep.subr.mxu0 0.0
        %1331 = vmatpush1.msra.mxu0 0.0
        %1332 = vmatprep.subr.mxu0 0.0
        %1333 = vmatpush1.msra.mxu0 0.0
        %1334 = vmatprep.subr.mxu0 0.0
        %1335 = vmatpush1.msra.mxu0 0.0
        %1336 = vmatprep.subr.mxu0 0.0
        %1337 = vmatpush1.msra.mxu0 0.0
        %1338 = vmatprep.subr.mxu0 0.0
        %1339 = vmatpush1.msra.mxu0 0.0
        %1340 = vmatprep.subr.mxu0 0.0
        %1341 = vmatpush1.msra.mxu0 0.0
        %1342 = vmatprep.subr.mxu0 0.0
        %1343 = vmatpush1.msra.mxu0 %v1197
        %1344 = vmatprep.subr.mxu0 0.0
        %1345 = vmatpush2.msra.mxu0 0.0
        %1346 = vmatprep.subr.mxu0 0.0
        %1347 = vmatpush2.msra.mxu0 0.0
        %1348 = vmatprep.subr.mxu0 0.0
        %1349 = vmatpush2.msra.mxu0 0.0
        %1350 = vmatprep.subr.mxu0 0.0
        %1351 = vmatpush2.msra.mxu0 0.0
        %1352 = vmatprep.subr.mxu0 0.0
        %1353 = vmatpush2.msra.mxu0 0.0
        %1354 = vmatprep.subr.mxu0 0.0
        %1355 = vmatpush2.msra.mxu0 0.0
        %1356 = vmatprep.subr.mxu0 0.0
        %1357 = vmatpush2.msra.mxu0 0.0
        %1358 = vmatprep.subr.mxu0 0.0
        %1359 = vmatpush2.msra.mxu0 0.0
        %1360 = vmatprep.subr.mxu0 0.0
        %1361 = vmatpush2.msra.mxu0 0.0
        %1362 = vmatprep.subr.mxu0 0.0
        %1363 = vmatpush2.msra.mxu0 0.0
        %1364 = vmatprep.subr.mxu0 0.0
        %1365 = vmatpush2.msra.mxu0 0.0
        %1366 = vmatprep.subr.mxu0 0.0
        %1367 = vmatpush2.msra.mxu0 0.0
        %1368 = vmatprep.subr.mxu0 0.0
        %1369 = vmatpush2.msra.mxu0 0.0
        %1370 = vmatprep.subr.mxu0 0.0
        %1371 = vmatpush2.msra.mxu0 0.0
        %1372 = vmatprep.subr.mxu0 0.0
        %1373 = vmatpush2.msra.mxu0 0.0
        %1374 = vmatprep.subr.mxu0 0.0
        %1375 = vmatpush2.msra.mxu0 0.0
        %1376 = vmatprep.mubr.f32.mxu0 0.0
        %1377 = vmatmul.mubr.f32.gmra.mxu0 %v1310
        %v1378 = vpop.f32.mrf.mxu0
        %v1379 = vadd.f32 0.0, %v1378
        %v1380 = vpop.f32.mrf.mxu0
        %1381 = vdwg.mxu0
        %v1382 = vsel %vm1309, %v1164, 0
        %1384 = vmatprep.subr.mxu0 0.0
        %1385 = vmatpush1.msra.mxu0 0.0
        %1386 = vmatprep.subr.mxu0 0.0
        %1387 = vmatpush1.msra.mxu0 0.0
        %1388 = vmatprep.subr.mxu0 0.0
        %1389 = vmatpush1.msra.mxu0 0.0
        %1390 = vmatprep.subr.mxu0 0.0
        %1391 = vmatpush1.msra.mxu0 0.0
        %1392 = vmatprep.subr.mxu0 0.0
        %1393 = vmatpush1.msra.mxu0 0.0
        %1394 = vmatprep.subr.mxu0 0.0
        %1395 = vmatpush1.msra.mxu0 0.0
        %1396 = vmatprep.subr.mxu0 0.0
        %1397 = vmatpush1.msra.mxu0 0.0
        %1398 = vmatprep.subr.mxu0 0.0
        %1399 = vmatpush1.msra.mxu0 0.0
        %1400 = vmatprep.subr.mxu0 0.0
        %1401 = vmatpush1.msra.mxu0 0.0
        %1402 = vmatprep.subr.mxu0 0.0
        %1403 = vmatpush1.msra.mxu0 0.0
        %1404 = vmatprep.subr.mxu0 0.0
        %1405 = vmatpush1.msra.mxu0 0.0
        %1406 = vmatprep.subr.mxu0 0.0
        %1407 = vmatpush1.msra.mxu0 0.0
        %1408 = vmatprep.subr.mxu0 0.0
        %1409 = vmatpush1.msra.mxu0 0.0
        %1410 = vmatprep.subr.mxu0 0.0
        %1411 = vmatpush1.msra.mxu0 0.0
        %1412 = vmatprep.subr.mxu0 0.0
        %1413 = vmatpush1.msra.mxu0 0.0
        %1414 = vmatprep.subr.mxu0 0.0
        %1415 = vmatpush1.msra.mxu0 %v1229
        %1416 = vmatprep.subr.mxu0 0.0
        %1417 = vmatpush2.msra.mxu0 0.0
        %1418 = vmatprep.subr.mxu0 0.0
        %1419 = vmatpush2.msra.mxu0 0.0
        %1420 = vmatprep.subr.mxu0 0.0
        %1421 = vmatpush2.msra.mxu0 0.0
        %1422 = vmatprep.subr.mxu0 0.0
        %1423 = vmatpush2.msra.mxu0 0.0
        %1424 = vmatprep.subr.mxu0 0.0
        %1425 = vmatpush2.msra.mxu0 0.0
        %1426 = vmatprep.subr.mxu0 0.0
        %1427 = vmatpush2.msra.mxu0 0.0
        %1428 = vmatprep.subr.mxu0 0.0
        %1429 = vmatpush2.msra.mxu0 0.0
        %1430 = vmatprep.subr.mxu0 0.0
        %1431 = vmatpush2.msra.mxu0 0.0
        %1432 = vmatprep.subr.mxu0 0.0
        %1433 = vmatpush2.msra.mxu0 0.0
        %1434 = vmatprep.subr.mxu0 0.0
        %1435 = vmatpush2.msra.mxu0 0.0
        %1436 = vmatprep.subr.mxu0 0.0
        %1437 = vmatpush2.msra.mxu0 0.0
        %1438 = vmatprep.subr.mxu0 0.0
        %1439 = vmatpush2.msra.mxu0 0.0
        %1440 = vmatprep.subr.mxu0 0.0
        %1441 = vmatpush2.msra.mxu0 0.0
        %1442 = vmatprep.subr.mxu0 0.0
        %1443 = vmatpush2.msra.mxu0 0.0
        %1444 = vmatprep.subr.mxu0 0.0
        %1445 = vmatpush2.msra.mxu0 0.0
        %1446 = vmatprep.subr.mxu0 0.0
        %1447 = vmatpush2.msra.mxu0 0.0
        %1448 = vmatprep.mubr.f32.mxu0 0.0
        %1449 = vmatmul.mubr.f32.gmra.mxu0 %v1382
        %v1450 = vpop.f32.mrf.mxu0
        %v1451 = vadd.f32 0.0, %v1450
        %v1452 = vpop.f32.mrf.mxu0
        %1453 = vdwg.mxu0
        %v1454 = vsel %vm1309, %v1166, 0
        %1456 = vmatprep.subr.mxu0 0.0
        %1457 = vmatpush1.msra.mxu0 0.0
        %1458 = vmatprep.subr.mxu0 0.0
        %1459 = vmatpush1.msra.mxu0 0.0
        %1460 = vmatprep.subr.mxu0 0.0
        %1461 = vmatpush1.msra.mxu0 0.0
        %1462 = vmatprep.subr.mxu0 0.0
        %1463 = vmatpush1.msra.mxu0 0.0
        %1464 = vmatprep.subr.mxu0 0.0
        %1465 = vmatpush1.msra.mxu0 0.0
        %1466 = vmatprep.subr.mxu0 0.0
        %1467 = vmatpush1.msra.mxu0 0.0
        %1468 = vmatprep.subr.mxu0 0.0
        %1469 = vmatpush1.msra.mxu0 0.0
        %1470 = vmatprep.subr.mxu0 0.0
        %1471 = vmatpush1.msra.mxu0 0.0
        %1472 = vmatprep.subr.mxu0 0.0
        %1473 = vmatpush1.msra.mxu0 0.0
        %1474 = vmatprep.subr.mxu0 0.0
        %1475 = vmatpush1.msra.mxu0 0.0
        %1476 = vmatprep.subr.mxu0 0.0
        %1477 = vmatpush1.msra.mxu0 0.0
        %1478 = vmatprep.subr.mxu0 0.0
        %1479 = vmatpush1.msra.mxu0 0.0
        %1480 = vmatprep.subr.mxu0 0.0
        %1481 = vmatpush1.msra.mxu0 0.0
        %1482 = vmatprep.subr.mxu0 0.0
        %1483 = vmatpush1.msra.mxu0 0.0
        %1484 = vmatprep.subr.mxu0 0.0
        %1485 = vmatpush1.msra.mxu0 0.0
        %1486 = vmatprep.subr.mxu0 0.0
        %1487 = vmatpush1.msra.mxu0 %v1261
        %1488 = vmatprep.subr.mxu0 0.0
        %1489 = vmatpush2.msra.mxu0 0.0
        %1490 = vmatprep.subr.mxu0 0.0
        %1491 = vmatpush2.msra.mxu0 0.0
        %1492 = vmatprep.subr.mxu0 0.0
        %1493 = vmatpush2.msra.mxu0 0.0
        %1494 = vmatprep.subr.mxu0 0.0
        %1495 = vmatpush2.msra.mxu0 0.0
        %1496 = vmatprep.subr.mxu0 0.0
        %1497 = vmatpush2.msra.mxu0 0.0
        %1498 = vmatprep.subr.mxu0 0.0
        %1499 = vmatpush2.msra.mxu0 0.0
        %1500 = vmatprep.subr.mxu0 0.0
        %1501 = vmatpush2.msra.mxu0 0.0
        %1502 = vmatprep.subr.mxu0 0.0
        %1503 = vmatpush2.msra.mxu0 0.0
        %1504 = vmatprep.subr.mxu0 0.0
        %1505 = vmatpush2.msra.mxu0 0.0
        %1506 = vmatprep.subr.mxu0 0.0
        %1507 = vmatpush2.msra.mxu0 0.0
        %1508 = vmatprep.subr.mxu0 0.0
        %1509 = vmatpush2.msra.mxu0 0.0
        %1510 = vmatprep.subr.mxu0 0.0
        %1511 = vmatpush2.msra.mxu0 0.0
        %1512 = vmatprep.subr.mxu0 0.0
        %1513 = vmatpush2.msra.mxu0 0.0
        %1514 = vmatprep.subr.mxu0 0.0
        %1515 = vmatpush2.msra.mxu0 0.0
        %1516 = vmatprep.subr.mxu0 0.0
        %1517 = vmatpush2.msra.mxu0 0.0
        %1518 = vmatprep.subr.mxu0 0.0
        %1519 = vmatpush2.msra.mxu0 0.0
        %1520 = vmatprep.mubr.f32.mxu0 0.0
        %1521 = vmatmul.mubr.f32.gmra.mxu0 %v1454
        %v1522 = vpop.f32.mrf.mxu0
        %v1523 = vadd.f32 0.0, %v1522
        %v1524 = vpop.f32.mrf.mxu0
        %1525 = vdwg.mxu0
        %v1526 = vsel %vm1309, %v1168, 0
        %1528 = vmatprep.subr.mxu0 0.0
        %1529 = vmatpush1.msra.mxu0 0.0
        %1530 = vmatprep.subr.mxu0 0.0
        %1531 = vmatpush1.msra.mxu0 0.0
        %1532 = vmatprep.subr.mxu0 0.0
        %1533 = vmatpush1.msra.mxu0 0.0
        %1534 = vmatprep.subr.mxu0 0.0
        %1535 = vmatpush1.msra.mxu0 0.0
        %1536 = vmatprep.subr.mxu0 0.0
        %1537 = vmatpush1.msra.mxu0 0.0
        %1538 = vmatprep.subr.mxu0 0.0
        %1539 = vmatpush1.msra.mxu0 0.0
        %1540 = vmatprep.subr.mxu0 0.0
        %1541 = vmatpush1.msra.mxu0 0.0
        %1542 = vmatprep.subr.mxu0 0.0
        %1543 = vmatpush1.msra.mxu0 0.0
        %1544 = vmatprep.subr.mxu0 0.0
        %1545 = vmatpush1.msra.mxu0 0.0
        %1546 = vmatprep.subr.mxu0 0.0
        %1547 = vmatpush1.msra.mxu0 0.0
        %1548 = vmatprep.subr.mxu0 0.0
        %1549 = vmatpush1.msra.mxu0 0.0
        %1550 = vmatprep.subr.mxu0 0.0
        %1551 = vmatpush1.msra.mxu0 0.0
        %1552 = vmatprep.subr.mxu0 0.0
        %1553 = vmatpush1.msra.mxu0 0.0
        %1554 = vmatprep.subr.mxu0 0.0
        %1555 = vmatpush1.msra.mxu0 0.0
        %1556 = vmatprep.subr.mxu0 0.0
        %1557 = vmatpush1.msra.mxu0 0.0
        %1558 = vmatprep.subr.mxu0 0.0
        %1559 = vmatpush1.msra.mxu0 %v1293
        %1560 = vmatprep.subr.mxu0 0.0
        %1561 = vmatpush2.msra.mxu0 0.0
        %1562 = vmatprep.subr.mxu0 0.0
        %1563 = vmatpush2.msra.mxu0 0.0
        %1564 = vmatprep.subr.mxu0 0.0
        %1565 = vmatpush2.msra.mxu0 0.0
        %1566 = vmatprep.subr.mxu0 0.0
        %1567 = vmatpush2.msra.mxu0 0.0
        %1568 = vmatprep.subr.mxu0 0.0
        %1569 = vmatpush2.msra.mxu0 0.0
        %1570 = vmatprep.subr.mxu0 0.0
        %1571 = vmatpush2.msra.mxu0 0.0
        %1572 = vmatprep.subr.mxu0 0.0
        %1573 = vmatpush2.msra.mxu0 0.0
        %1574 = vmatprep.subr.mxu0 0.0
        %1575 = vmatpush2.msra.mxu0 0.0
        %1576 = vmatprep.subr.mxu0 0.0
        %1577 = vmatpush2.msra.mxu0 0.0
        %1578 = vmatprep.subr.mxu0 0.0
        %1579 = vmatpush2.msra.mxu0 0.0
        %1580 = vmatprep.subr.mxu0 0.0
        %1581 = vmatpush2.msra.mxu0 0.0
        %1582 = vmatprep.subr.mxu0 0.0
        %1583 = vmatpush2.msra.mxu0 0.0
        %1584 = vmatprep.subr.mxu0 0.0
        %1585 = vmatpush2.msra.mxu0 0.0
        %1586 = vmatprep.subr.mxu0 0.0
        %1587 = vmatpush2.msra.mxu0 0.0
        %1588 = vmatprep.subr.mxu0 0.0
        %1589 = vmatpush2.msra.mxu0 0.0
        %1590 = vmatprep.subr.mxu0 0.0
        %1591 = vmatpush2.msra.mxu0 0.0
        %1592 = vmatprep.mubr.f32.mxu0 0.0
        %1593 = vmatmul.mubr.f32.gmra.mxu0 %v1526
        %v1594 = vpop.f32.mrf.mxu0
        %v1595 = vadd.f32 0.0, %v1594
        %v1596 = vpop.f32.mrf.mxu0
        %1597 = vdwg.mxu0
        %v1598 = vmul.f32 %v1379, 0.35355338
        %v1599 = vmul.f32 %v1451, 0.35355338
        %v1600 = vmul.f32 %v1523, 0.35355338
        %v1601 = vmul.f32 %v1595, 0.35355338
        %v1602 = vld [vmem:[%s847] sm:$0x1]
        %v1604 = vlaneseq
        %v1605 = vshrl.u32 %v1604, 7
        %v1606 = vsub.s32 0, %v1605
        %v1607 = vrot.slane %v1602, %v1606
        %v1609 = vadd.f32 %v1598, %v1607
        %v1610 = vadd.f32 %v1599, %v1607
        %v1611 = vadd.f32 %v1600, %v1607
        %v1612 = vadd.f32 %v1601, %v1607
        %v1613 = vsel %vm1309, %v1609, -inf
        %1614 = vmax.xlane.f32.xlu0 %v1613
        %v1615 = vpop.xlane.xlu0 %1614
        %v1616 = vsel %vm1309, %v1610, -inf
        %1617 = vmax.xlane.f32.xlu0 %v1616
        %v1618 = vpop.xlane.xlu0 %1617
        %v1619 = vsel %vm1309, %v1611, -inf
        %1620 = vmax.xlane.f32.xlu0 %v1619
        %v1621 = vpop.xlane.xlu0 %1620
        %v1622 = vsel %vm1309, %v1612, -inf
        %1623 = vmax.xlane.f32.xlu0 %v1622
        %v1624 = vpop.xlane.xlu0 %1623
        %v1625 = vsub.f32 %v1609, %v1615
        %v1626 = vsub.f32 %v1610, %v1618
        %v1627 = vsub.f32 %v1611, %v1621
        %v1628 = vsub.f32 %v1612, %v1624
        %v1629 = vmul.f32 %v1625, 1.442695
        %v1630 = vpow.pop %v1629
        %v1631 = vmul.f32 %v1626, 1.442695
        %v1632 = vpow.pop %v1631
        %v1633 = vmul.f32 %v1627, 1.442695
        %v1634 = vpow.pop %v1633
        %v1635 = vmul.f32 %v1628, 1.442695
        %v1636 = vpow.pop %v1635
        %v1637 = vsel %vm1309, %v1630, 0.0
        %1638 = vadd.xlane.f32.xlu0 %v1637
        %v1639 = vpop.xlane.xlu0 %1638
        %v1640 = vsel %vm1309, %v1632, 0.0
        %1641 = vadd.xlane.f32.xlu0 %v1640
        %v1642 = vpop.xlane.xlu0 %1641
        %v1643 = vsel %vm1309, %v1634, 0.0
        %1644 = vadd.xlane.f32.xlu0 %v1643
        %v1645 = vpop.xlane.xlu0 %1644
        %v1646 = vsel %vm1309, %v1636, 0.0
        %1647 = vadd.xlane.f32.xlu0 %v1646
        %v1648 = vpop.xlane.xlu0 %1647
        %v1649 = vrcp.pop %v1639
        %v1650 = vmul.f32 %v1630, %v1649
        %v1651 = vrcp.pop %v1642
        %v1652 = vmul.f32 %v1632, %v1651
        %v1653 = vrcp.pop %v1645
        %v1654 = vmul.f32 %v1634, %v1653
        %v1655 = vrcp.pop %v1648
        %v1656 = vmul.f32 %v1636, %v1655
        %1657 = vrot.lane.b32.xlu0 %v1157, 64
        %v1658 = vpop.permute.xlu0 %1657
        %1659 = vrot.lane.b32.xlu0 %v1164, 64
        %v1660 = vpop.permute.xlu0 %1659
        %1661 = vrot.lane.b32.xlu0 %v1166, 64
        %v1662 = vpop.permute.xlu0 %1661
        %1663 = vrot.lane.b32.xlu0 %v1168, 64
        %v1664 = vpop.permute.xlu0 %1663
        %1669 = vxpose.xlu0.b32.start [1/16] %v1658, 128
        %1670 = vxpose.xlu0.b32.cont [2/16] 0.0, 128
        %1671 = vxpose.xlu0.b32.cont [3/16] 0.0, 128
        %1672 = vxpose.xlu0.b32.cont [4/16] 0.0, 128
        %1673 = vxpose.xlu0.b32.cont [5/16] 0.0, 128
        %1674 = vxpose.xlu0.b32.cont [6/16] 0.0, 128
        %1675 = vxpose.xlu0.b32.cont [7/16] 0.0, 128
        %1676 = vxpose.xlu0.b32.cont [8/16] 0.0, 128
        %1677 = vxpose.xlu0.b32.cont [9/16] 0.0, 128
        %1678 = vxpose.xlu0.b32.cont [10/16] 0.0, 128
        %1679 = vxpose.xlu0.b32.cont [11/16] 0.0, 128
        %1680 = vxpose.xlu0.b32.cont [12/16] 0.0, 128
        %1681 = vxpose.xlu0.b32.cont [13/16] 0.0, 128
        %1682 = vxpose.xlu0.b32.cont [14/16] 0.0, 128
        %1683 = vxpose.xlu0.b32.cont [15/16] 0.0, 128
        %1684 = vxpose.xlu0.b32.end [16/16] 0.0, 128
        %v1685 = vpop.trf.xlu0
        %v1686 = vpop.trf.xlu0
        %v1687 = vpop.trf.xlu0
        %v1688 = vpop.trf.xlu0
        %v1689 = vpop.trf.xlu0
        %v1690 = vpop.trf.xlu0
        %v1691 = vpop.trf.xlu0
        %v1692 = vpop.trf.xlu0
        %v1693 = vpop.trf.xlu0
        %v1694 = vpop.trf.xlu0
        %v1695 = vpop.trf.xlu0
        %v1696 = vpop.trf.xlu0
        %v1697 = vpop.trf.xlu0
        %v1698 = vpop.trf.xlu0
        %v1699 = vpop.trf.xlu0
        %v1700 = vpop.trf.xlu0
        %1701 = vxpose.xlu0.b32.start [1/16] %v1660, 128
        %1702 = vxpose.xlu0.b32.cont [2/16] 0.0, 128
        %1703 = vxpose.xlu0.b32.cont [3/16] 0.0, 128
        %1704 = vxpose.xlu0.b32.cont [4/16] 0.0, 128
        %1705 = vxpose.xlu0.b32.cont [5/16] 0.0, 128
        %1706 = vxpose.xlu0.b32.cont [6/16] 0.0, 128
        %1707 = vxpose.xlu0.b32.cont [7/16] 0.0, 128
        %1708 = vxpose.xlu0.b32.cont [8/16] 0.0, 128
        %1709 = vxpose.xlu0.b32.cont [9/16] 0.0, 128
        %1710 = vxpose.xlu0.b32.cont [10/16] 0.0, 128
        %1711 = vxpose.xlu0.b32.cont [11/16] 0.0, 128
        %1712 = vxpose.xlu0.b32.cont [12/16] 0.0, 128
        %1713 = vxpose.xlu0.b32.cont [13/16] 0.0, 128
        %1714 = vxpose.xlu0.b32.cont [14/16] 0.0, 128
        %1715 = vxpose.xlu0.b32.cont [15/16] 0.0, 128
        %1716 = vxpose.xlu0.b32.end [16/16] 0.0, 128
        %v1717 = vpop.trf.xlu0
        %v1718 = vpop.trf.xlu0
        %v1719 = vpop.trf.xlu0
        %v1720 = vpop.trf.xlu0
        %v1721 = vpop.trf.xlu0
        %v1722 = vpop.trf.xlu0
        %v1723 = vpop.trf.xlu0
        %v1724 = vpop.trf.xlu0
        %v1725 = vpop.trf.xlu0
        %v1726 = vpop.trf.xlu0
        %v1727 = vpop.trf.xlu0
        %v1728 = vpop.trf.xlu0
        %v1729 = vpop.trf.xlu0
        %v1730 = vpop.trf.xlu0
        %v1731 = vpop.trf.xlu0
        %v1732 = vpop.trf.xlu0
        %1733 = vxpose.xlu0.b32.start [1/16] %v1662, 128
        %1734 = vxpose.xlu0.b32.cont [2/16] 0.0, 128
        %1735 = vxpose.xlu0.b32.cont [3/16] 0.0, 128
        %1736 = vxpose.xlu0.b32.cont [4/16] 0.0, 128
        %1737 = vxpose.xlu0.b32.cont [5/16] 0.0, 128
        %1738 = vxpose.xlu0.b32.cont [6/16] 0.0, 128
        %1739 = vxpose.xlu0.b32.cont [7/16] 0.0, 128
        %1740 = vxpose.xlu0.b32.cont [8/16] 0.0, 128
        %1741 = vxpose.xlu0.b32.cont [9/16] 0.0, 128
        %1742 = vxpose.xlu0.b32.cont [10/16] 0.0, 128
        %1743 = vxpose.xlu0.b32.cont [11/16] 0.0, 128
        %1744 = vxpose.xlu0.b32.cont [12/16] 0.0, 128
        %1745 = vxpose.xlu0.b32.cont [13/16] 0.0, 128
        %1746 = vxpose.xlu0.b32.cont [14/16] 0.0, 128
        %1747 = vxpose.xlu0.b32.cont [15/16] 0.0, 128
        %1748 = vxpose.xlu0.b32.end [16/16] 0.0, 128
        %v1749 = vpop.trf.xlu0
        %v1750 = vpop.trf.xlu0
        %v1751 = vpop.trf.xlu0
        %v1752 = vpop.trf.xlu0
        %v1753 = vpop.trf.xlu0
        %v1754 = vpop.trf.xlu0
        %v1755 = vpop.trf.xlu0
        %v1756 = vpop.trf.xlu0
        %v1757 = vpop.trf.xlu0
        %v1758 = vpop.trf.xlu0
        %v1759 = vpop.trf.xlu0
        %v1760 = vpop.trf.xlu0
        %v1761 = vpop.trf.xlu0
        %v1762 = vpop.trf.xlu0
        %v1763 = vpop.trf.xlu0
        %v1764 = vpop.trf.xlu0
        %1765 = vxpose.xlu0.b32.start [1/16] %v1664, 128
        %1766 = vxpose.xlu0.b32.cont [2/16] 0.0, 128
        %1767 = vxpose.xlu0.b32.cont [3/16] 0.0, 128
        %1768 = vxpose.xlu0.b32.cont [4/16] 0.0, 128
        %1769 = vxpose.xlu0.b32.cont [5/16] 0.0, 128
        %1770 = vxpose.xlu0.b32.cont [6/16] 0.0, 128
        %1771 = vxpose.xlu0.b32.cont [7/16] 0.0, 128
        %1772 = vxpose.xlu0.b32.cont [8/16] 0.0, 128
        %1773 = vxpose.xlu0.b32.cont [9/16] 0.0, 128
        %1774 = vxpose.xlu0.b32.cont [10/16] 0.0, 128
        %1775 = vxpose.xlu0.b32.cont [11/16] 0.0, 128
        %1776 = vxpose.xlu0.b32.cont [12/16] 0.0, 128
        %1777 = vxpose.xlu0.b32.cont [13/16] 0.0, 128
        %1778 = vxpose.xlu0.b32.cont [14/16] 0.0, 128
        %1779 = vxpose.xlu0.b32.cont [15/16] 0.0, 128
        %1780 = vxpose.xlu0.b32.end [16/16] 0.0, 128
        %v1781 = vpop.trf.xlu0
        %v1782 = vpop.trf.xlu0
        %v1783 = vpop.trf.xlu0
        %v1784 = vpop.trf.xlu0
        %v1785 = vpop.trf.xlu0
        %v1786 = vpop.trf.xlu0
        %v1787 = vpop.trf.xlu0
        %v1788 = vpop.trf.xlu0
        %v1789 = vpop.trf.xlu0
        %v1790 = vpop.trf.xlu0
        %v1791 = vpop.trf.xlu0
        %v1792 = vpop.trf.xlu0
        %v1793 = vpop.trf.xlu0
        %v1794 = vpop.trf.xlu0
        %v1795 = vpop.trf.xlu0
        %v1796 = vpop.trf.xlu0
        %v1798 = vsel %vm1309, %v1685, 0
        %v1801 = vsel %vm1309, %v1650, 0
        %1803 = vmatprep.subr.mxu0 0.0
        %1804 = vmatpush1.xpose.msra.mxu0 0.0
        %1805 = vmatprep.subr.mxu0 0.0
        %1806 = vmatpush1.xpose.msra.mxu0 0.0
        %1807 = vmatprep.subr.mxu0 0.0
        %1808 = vmatpush1.xpose.msra.mxu0 0.0
        %1809 = vmatprep.subr.mxu0 0.0
        %1810 = vmatpush1.xpose.msra.mxu0 0.0
        %1811 = vmatprep.subr.mxu0 0.0
        %1812 = vmatpush1.xpose.msra.mxu0 0.0
        %1813 = vmatprep.subr.mxu0 0.0
        %1814 = vmatpush1.xpose.msra.mxu0 0.0
        %1815 = vmatprep.subr.mxu0 0.0
        %1816 = vmatpush1.xpose.msra.mxu0 0.0
        %1817 = vmatprep.subr.mxu0 0.0
        %1818 = vmatpush1.xpose.msra.mxu0 0.0
        %1819 = vmatprep.subr.mxu0 0.0
        %1820 = vmatpush1.xpose.msra.mxu0 0.0
        %1821 = vmatprep.subr.mxu0 0.0
        %1822 = vmatpush1.xpose.msra.mxu0 0.0
        %1823 = vmatprep.subr.mxu0 0.0
        %1824 = vmatpush1.xpose.msra.mxu0 0.0
        %1825 = vmatprep.subr.mxu0 0.0
        %1826 = vmatpush1.xpose.msra.mxu0 0.0
        %1827 = vmatprep.subr.mxu0 0.0
        %1828 = vmatpush1.xpose.msra.mxu0 0.0
        %1829 = vmatprep.subr.mxu0 0.0
        %1830 = vmatpush1.xpose.msra.mxu0 0.0
        %1831 = vmatprep.subr.mxu0 0.0
        %1832 = vmatpush1.xpose.msra.mxu0 0.0
        %1833 = vmatprep.subr.mxu0 0.0
        %1834 = vmatpush1.xpose.msra.mxu0 %v1801
        %1835 = vmatprep.subr.mxu0 0.0
        %1836 = vmatpush2.xpose.msra.mxu0 0.0
        %1837 = vmatprep.subr.mxu0 0.0
        %1838 = vmatpush2.xpose.msra.mxu0 0.0
        %1839 = vmatprep.subr.mxu0 0.0
        %1840 = vmatpush2.xpose.msra.mxu0 0.0
        %1841 = vmatprep.subr.mxu0 0.0
        %1842 = vmatpush2.xpose.msra.mxu0 0.0
        %1843 = vmatprep.subr.mxu0 0.0
        %1844 = vmatpush2.xpose.msra.mxu0 0.0
        %1845 = vmatprep.subr.mxu0 0.0
        %1846 = vmatpush2.xpose.msra.mxu0 0.0
        %1847 = vmatprep.subr.mxu0 0.0
        %1848 = vmatpush2.xpose.msra.mxu0 0.0
        %1849 = vmatprep.subr.mxu0 0.0
        %1850 = vmatpush2.xpose.msra.mxu0 0.0
        %1851 = vmatprep.subr.mxu0 0.0
        %1852 = vmatpush2.xpose.msra.mxu0 0.0
        %1853 = vmatprep.subr.mxu0 0.0
        %1854 = vmatpush2.xpose.msra.mxu0 0.0
        %1855 = vmatprep.subr.mxu0 0.0
        %1856 = vmatpush2.xpose.msra.mxu0 0.0
        %1857 = vmatprep.subr.mxu0 0.0
        %1858 = vmatpush2.xpose.msra.mxu0 0.0
        %1859 = vmatprep.subr.mxu0 0.0
        %1860 = vmatpush2.xpose.msra.mxu0 0.0
        %1861 = vmatprep.subr.mxu0 0.0
        %1862 = vmatpush2.xpose.msra.mxu0 0.0
        %1863 = vmatprep.subr.mxu0 0.0
        %1864 = vmatpush2.xpose.msra.mxu0 0.0
        %1865 = vmatprep.subr.mxu0 0.0
        %1866 = vmatpush2.xpose.msra.mxu0 0.0
        %1867 = vmatprep.mubr.f32.mxu0 0.0
        %1868 = vmatmul.mubr.f32.gmra.mxu0 %v1798
        %v1869 = vpop.f32.mrf.mxu0
        %v1870 = vadd.f32 0.0, %v1869
        %v1871 = vpop.f32.mrf.mxu0
        %1872 = vdwg.mxu0
        %v1874 = vsel %vm1309, %v1717, 0
        %v1877 = vsel %vm1309, %v1652, 0
        %1879 = vmatprep.subr.mxu0 0.0
        %1880 = vmatpush1.xpose.msra.mxu0 0.0
        %1881 = vmatprep.subr.mxu0 0.0
        %1882 = vmatpush1.xpose.msra.mxu0 0.0
        %1883 = vmatprep.subr.mxu0 0.0
        %1884 = vmatpush1.xpose.msra.mxu0 0.0
        %1885 = vmatprep.subr.mxu0 0.0
        %1886 = vmatpush1.xpose.msra.mxu0 0.0
        %1887 = vmatprep.subr.mxu0 0.0
        %1888 = vmatpush1.xpose.msra.mxu0 0.0
        %1889 = vmatprep.subr.mxu0 0.0
        %1890 = vmatpush1.xpose.msra.mxu0 0.0
        %1891 = vmatprep.subr.mxu0 0.0
        %1892 = vmatpush1.xpose.msra.mxu0 0.0
        %1893 = vmatprep.subr.mxu0 0.0
        %1894 = vmatpush1.xpose.msra.mxu0 0.0
        %1895 = vmatprep.subr.mxu0 0.0
        %1896 = vmatpush1.xpose.msra.mxu0 0.0
        %1897 = vmatprep.subr.mxu0 0.0
        %1898 = vmatpush1.xpose.msra.mxu0 0.0
        %1899 = vmatprep.subr.mxu0 0.0
        %1900 = vmatpush1.xpose.msra.mxu0 0.0
        %1901 = vmatprep.subr.mxu0 0.0
        %1902 = vmatpush1.xpose.msra.mxu0 0.0
        %1903 = vmatprep.subr.mxu0 0.0
        %1904 = vmatpush1.xpose.msra.mxu0 0.0
        %1905 = vmatprep.subr.mxu0 0.0
        %1906 = vmatpush1.xpose.msra.mxu0 0.0
        %1907 = vmatprep.subr.mxu0 0.0
        %1908 = vmatpush1.xpose.msra.mxu0 0.0
        %1909 = vmatprep.subr.mxu0 0.0
        %1910 = vmatpush1.xpose.msra.mxu0 %v1877
        %1911 = vmatprep.subr.mxu0 0.0
        %1912 = vmatpush2.xpose.msra.mxu0 0.0
        %1913 = vmatprep.subr.mxu0 0.0
        %1914 = vmatpush2.xpose.msra.mxu0 0.0
        %1915 = vmatprep.subr.mxu0 0.0
        %1916 = vmatpush2.xpose.msra.mxu0 0.0
        %1917 = vmatprep.subr.mxu0 0.0
        %1918 = vmatpush2.xpose.msra.mxu0 0.0
        %1919 = vmatprep.subr.mxu0 0.0
        %1920 = vmatpush2.xpose.msra.mxu0 0.0
        %1921 = vmatprep.subr.mxu0 0.0
        %1922 = vmatpush2.xpose.msra.mxu0 0.0
        %1923 = vmatprep.subr.mxu0 0.0
        %1924 = vmatpush2.xpose.msra.mxu0 0.0
        %1925 = vmatprep.subr.mxu0 0.0
        %1926 = vmatpush2.xpose.msra.mxu0 0.0
        %1927 = vmatprep.subr.mxu0 0.0
        %1928 = vmatpush2.xpose.msra.mxu0 0.0
        %1929 = vmatprep.subr.mxu0 0.0
        %1930 = vmatpush2.xpose.msra.mxu0 0.0
        %1931 = vmatprep.subr.mxu0 0.0
        %1932 = vmatpush2.xpose.msra.mxu0 0.0
        %1933 = vmatprep.subr.mxu0 0.0
        %1934 = vmatpush2.xpose.msra.mxu0 0.0
        %1935 = vmatprep.subr.mxu0 0.0
        %1936 = vmatpush2.xpose.msra.mxu0 0.0
        %1937 = vmatprep.subr.mxu0 0.0
        %1938 = vmatpush2.xpose.msra.mxu0 0.0
        %1939 = vmatprep.subr.mxu0 0.0
        %1940 = vmatpush2.xpose.msra.mxu0 0.0
        %1941 = vmatprep.subr.mxu0 0.0
        %1942 = vmatpush2.xpose.msra.mxu0 0.0
        %1943 = vmatprep.mubr.f32.mxu0 0.0
        %1944 = vmatmul.mubr.f32.gmra.mxu0 %v1874
        %v1945 = vpop.f32.mrf.mxu0
        %v1946 = vadd.f32 0.0, %v1945
        %v1947 = vpop.f32.mrf.mxu0
        %1948 = vdwg.mxu0
        %v1950 = vsel %vm1309, %v1749, 0
        %v1953 = vsel %vm1309, %v1654, 0
        %1955 = vmatprep.subr.mxu0 0.0
        %1956 = vmatpush1.xpose.msra.mxu0 0.0
        %1957 = vmatprep.subr.mxu0 0.0
        %1958 = vmatpush1.xpose.msra.mxu0 0.0
        %1959 = vmatprep.subr.mxu0 0.0
        %1960 = vmatpush1.xpose.msra.mxu0 0.0
        %1961 = vmatprep.subr.mxu0 0.0
        %1962 = vmatpush1.xpose.msra.mxu0 0.0
        %1963 = vmatprep.subr.mxu0 0.0
        %1964 = vmatpush1.xpose.msra.mxu0 0.0
        %1965 = vmatprep.subr.mxu0 0.0
        %1966 = vmatpush1.xpose.msra.mxu0 0.0
        %1967 = vmatprep.subr.mxu0 0.0
        %1968 = vmatpush1.xpose.msra.mxu0 0.0
        %1969 = vmatprep.subr.mxu0 0.0
        %1970 = vmatpush1.xpose.msra.mxu0 0.0
        %1971 = vmatprep.subr.mxu0 0.0
        %1972 = vmatpush1.xpose.msra.mxu0 0.0
        %1973 = vmatprep.subr.mxu0 0.0
        %1974 = vmatpush1.xpose.msra.mxu0 0.0
        %1975 = vmatprep.subr.mxu0 0.0
        %1976 = vmatpush1.xpose.msra.mxu0 0.0
        %1977 = vmatprep.subr.mxu0 0.0
        %1978 = vmatpush1.xpose.msra.mxu0 0.0
        %1979 = vmatprep.subr.mxu0 0.0
        %1980 = vmatpush1.xpose.msra.mxu0 0.0
        %1981 = vmatprep.subr.mxu0 0.0
        %1982 = vmatpush1.xpose.msra.mxu0 0.0
        %1983 = vmatprep.subr.mxu0 0.0
        %1984 = vmatpush1.xpose.msra.mxu0 0.0
        %1985 = vmatprep.subr.mxu0 0.0
        %1986 = vmatpush1.xpose.msra.mxu0 %v1953
        %1987 = vmatprep.subr.mxu0 0.0
        %1988 = vmatpush2.xpose.msra.mxu0 0.0
        %1989 = vmatprep.subr.mxu0 0.0
        %1990 = vmatpush2.xpose.msra.mxu0 0.0
        %1991 = vmatprep.subr.mxu0 0.0
        %1992 = vmatpush2.xpose.msra.mxu0 0.0
        %1993 = vmatprep.subr.mxu0 0.0
        %1994 = vmatpush2.xpose.msra.mxu0 0.0
        %1995 = vmatprep.subr.mxu0 0.0
        %1996 = vmatpush2.xpose.msra.mxu0 0.0
        %1997 = vmatprep.subr.mxu0 0.0
        %1998 = vmatpush2.xpose.msra.mxu0 0.0
        %1999 = vmatprep.subr.mxu0 0.0
        %2000 = vmatpush2.xpose.msra.mxu0 0.0
        %2001 = vmatprep.subr.mxu0 0.0
        %2002 = vmatpush2.xpose.msra.mxu0 0.0
        %2003 = vmatprep.subr.mxu0 0.0
        %2004 = vmatpush2.xpose.msra.mxu0 0.0
        %2005 = vmatprep.subr.mxu0 0.0
        %2006 = vmatpush2.xpose.msra.mxu0 0.0
        %2007 = vmatprep.subr.mxu0 0.0
        %2008 = vmatpush2.xpose.msra.mxu0 0.0
        %2009 = vmatprep.subr.mxu0 0.0
        %2010 = vmatpush2.xpose.msra.mxu0 0.0
        %2011 = vmatprep.subr.mxu0 0.0
        %2012 = vmatpush2.xpose.msra.mxu0 0.0
        %2013 = vmatprep.subr.mxu0 0.0
        %2014 = vmatpush2.xpose.msra.mxu0 0.0
        %2015 = vmatprep.subr.mxu0 0.0
        %2016 = vmatpush2.xpose.msra.mxu0 0.0
        %2017 = vmatprep.subr.mxu0 0.0
        %2018 = vmatpush2.xpose.msra.mxu0 0.0
        %2019 = vmatprep.mubr.f32.mxu0 0.0
        %2020 = vmatmul.mubr.f32.gmra.mxu0 %v1950
        %v2021 = vpop.f32.mrf.mxu0
        %v2022 = vadd.f32 0.0, %v2021
        %v2023 = vpop.f32.mrf.mxu0
        %2024 = vdwg.mxu0
        %v2026 = vsel %vm1309, %v1781, 0
        %v2029 = vsel %vm1309, %v1656, 0
        %2031 = vmatprep.subr.mxu0 0.0
        %2032 = vmatpush1.xpose.msra.mxu0 0.0
        %2033 = vmatprep.subr.mxu0 0.0
        %2034 = vmatpush1.xpose.msra.mxu0 0.0
        %2035 = vmatprep.subr.mxu0 0.0
        %2036 = vmatpush1.xpose.msra.mxu0 0.0
        %2037 = vmatprep.subr.mxu0 0.0
        %2038 = vmatpush1.xpose.msra.mxu0 0.0
        %2039 = vmatprep.subr.mxu0 0.0
        %2040 = vmatpush1.xpose.msra.mxu0 0.0
        %2041 = vmatprep.subr.mxu0 0.0
        %2042 = vmatpush1.xpose.msra.mxu0 0.0
        %2043 = vmatprep.subr.mxu0 0.0
        %2044 = vmatpush1.xpose.msra.mxu0 0.0
        %2045 = vmatprep.subr.mxu0 0.0
        %2046 = vmatpush1.xpose.msra.mxu0 0.0
        %2047 = vmatprep.subr.mxu0 0.0
        %2048 = vmatpush1.xpose.msra.mxu0 0.0
        %2049 = vmatprep.subr.mxu0 0.0
        %2050 = vmatpush1.xpose.msra.mxu0 0.0
        %2051 = vmatprep.subr.mxu0 0.0
        %2052 = vmatpush1.xpose.msra.mxu0 0.0
        %2053 = vmatprep.subr.mxu0 0.0
        %2054 = vmatpush1.xpose.msra.mxu0 0.0
        %2055 = vmatprep.subr.mxu0 0.0
        %2056 = vmatpush1.xpose.msra.mxu0 0.0
        %2057 = vmatprep.subr.mxu0 0.0
        %2058 = vmatpush1.xpose.msra.mxu0 0.0
        %2059 = vmatprep.subr.mxu0 0.0
        %2060 = vmatpush1.xpose.msra.mxu0 0.0
        %2061 = vmatprep.subr.mxu0 0.0
        %2062 = vmatpush1.xpose.msra.mxu0 %v2029
        %2063 = vmatprep.subr.mxu0 0.0
        %2064 = vmatpush2.xpose.msra.mxu0 0.0
        %2065 = vmatprep.subr.mxu0 0.0
        %2066 = vmatpush2.xpose.msra.mxu0 0.0
        %2067 = vmatprep.subr.mxu0 0.0
        %2068 = vmatpush2.xpose.msra.mxu0 0.0
        %2069 = vmatprep.subr.mxu0 0.0
        %2070 = vmatpush2.xpose.msra.mxu0 0.0
        %2071 = vmatprep.subr.mxu0 0.0
        %2072 = vmatpush2.xpose.msra.mxu0 0.0
        %2073 = vmatprep.subr.mxu0 0.0
        %2074 = vmatpush2.xpose.msra.mxu0 0.0
        %2075 = vmatprep.subr.mxu0 0.0
        %2076 = vmatpush2.xpose.msra.mxu0 0.0
        %2077 = vmatprep.subr.mxu0 0.0
        %2078 = vmatpush2.xpose.msra.mxu0 0.0
        %2079 = vmatprep.subr.mxu0 0.0
        %2080 = vmatpush2.xpose.msra.mxu0 0.0
        %2081 = vmatprep.subr.mxu0 0.0
        %2082 = vmatpush2.xpose.msra.mxu0 0.0
        %2083 = vmatprep.subr.mxu0 0.0
        %2084 = vmatpush2.xpose.msra.mxu0 0.0
        %2085 = vmatprep.subr.mxu0 0.0
        %2086 = vmatpush2.xpose.msra.mxu0 0.0
        %2087 = vmatprep.subr.mxu0 0.0
        %2088 = vmatpush2.xpose.msra.mxu0 0.0
        %2089 = vmatprep.subr.mxu0 0.0
        %2090 = vmatpush2.xpose.msra.mxu0 0.0
        %2091 = vmatprep.subr.mxu0 0.0
        %2092 = vmatpush2.xpose.msra.mxu0 0.0
        %2093 = vmatprep.subr.mxu0 0.0
        %2094 = vmatpush2.xpose.msra.mxu0 0.0
        %2095 = vmatprep.mubr.f32.mxu0 0.0
        %2096 = vmatmul.mubr.f32.gmra.mxu0 %v2026
        %v2097 = vpop.f32.mrf.mxu0
        %v2098 = vadd.f32 0.0, %v2097
        %v2099 = vpop.f32.mrf.mxu0
        %2100 = vdwg.mxu0
        %2101 = vxpose.xlu0.b32.start [1/16] %v1870, 128
        %2102 = vxpose.xlu0.b32.cont [2/16] 0.0, 128
        %2103 = vxpose.xlu0.b32.cont [3/16] 0.0, 128
        %2104 = vxpose.xlu0.b32.cont [4/16] 0.0, 128
        %2105 = vxpose.xlu0.b32.cont [5/16] 0.0, 128
        %2106 = vxpose.xlu0.b32.cont [6/16] 0.0, 128
        %2107 = vxpose.xlu0.b32.cont [7/16] 0.0, 128
        %2108 = vxpose.xlu0.b32.cont [8/16] 0.0, 128
        %2109 = vxpose.xlu0.b32.cont [9/16] 0.0, 128
        %2110 = vxpose.xlu0.b32.cont [10/16] 0.0, 128
        %2111 = vxpose.xlu0.b32.cont [11/16] 0.0, 128
        %2112 = vxpose.xlu0.b32.cont [12/16] 0.0, 128
        %2113 = vxpose.xlu0.b32.cont [13/16] 0.0, 128
        %2114 = vxpose.xlu0.b32.cont [14/16] 0.0, 128
        %2115 = vxpose.xlu0.b32.cont [15/16] 0.0, 128
        %2116 = vxpose.xlu0.b32.end [16/16] 0.0, 128
        %v2117 = vpop.trf.xlu0
        %v2118 = vpop.trf.xlu0
        %v2119 = vpop.trf.xlu0
        %v2120 = vpop.trf.xlu0
        %v2121 = vpop.trf.xlu0
        %v2122 = vpop.trf.xlu0
        %v2123 = vpop.trf.xlu0
        %v2124 = vpop.trf.xlu0
        %v2125 = vpop.trf.xlu0
        %v2126 = vpop.trf.xlu0
        %v2127 = vpop.trf.xlu0
        %v2128 = vpop.trf.xlu0
        %v2129 = vpop.trf.xlu0
        %v2130 = vpop.trf.xlu0
        %v2131 = vpop.trf.xlu0
        %v2132 = vpop.trf.xlu0
        %2133 = vxpose.xlu0.b32.start [1/16] %v1946, 128
        %2134 = vxpose.xlu0.b32.cont [2/16] 0.0, 128
        %2135 = vxpose.xlu0.b32.cont [3/16] 0.0, 128
        %2136 = vxpose.xlu0.b32.cont [4/16] 0.0, 128
        %2137 = vxpose.xlu0.b32.cont [5/16] 0.0, 128
        %2138 = vxpose.xlu0.b32.cont [6/16] 0.0, 128
        %2139 = vxpose.xlu0.b32.cont [7/16] 0.0, 128
        %2140 = vxpose.xlu0.b32.cont [8/16] 0.0, 128
        %2141 = vxpose.xlu0.b32.cont [9/16] 0.0, 128
        %2142 = vxpose.xlu0.b32.cont [10/16] 0.0, 128
        %2143 = vxpose.xlu0.b32.cont [11/16] 0.0, 128
        %2144 = vxpose.xlu0.b32.cont [12/16] 0.0, 128
        %2145 = vxpose.xlu0.b32.cont [13/16] 0.0, 128
        %2146 = vxpose.xlu0.b32.cont [14/16] 0.0, 128
        %2147 = vxpose.xlu0.b32.cont [15/16] 0.0, 128
        %2148 = vxpose.xlu0.b32.end [16/16] 0.0, 128
        %v2149 = vpop.trf.xlu0
        %v2150 = vpop.trf.xlu0
        %v2151 = vpop.trf.xlu0
        %v2152 = vpop.trf.xlu0
        %v2153 = vpop.trf.xlu0
        %v2154 = vpop.trf.xlu0
        %v2155 = vpop.trf.xlu0
        %v2156 = vpop.trf.xlu0
        %v2157 = vpop.trf.xlu0
        %v2158 = vpop.trf.xlu0
        %v2159 = vpop.trf.xlu0
        %v2160 = vpop.trf.xlu0
        %v2161 = vpop.trf.xlu0
        %v2162 = vpop.trf.xlu0
        %v2163 = vpop.trf.xlu0
        %v2164 = vpop.trf.xlu0
        %2165 = vxpose.xlu0.b32.start [1/16] %v2022, 128
        %2166 = vxpose.xlu0.b32.cont [2/16] 0.0, 128
        %2167 = vxpose.xlu0.b32.cont [3/16] 0.0, 128
        %2168 = vxpose.xlu0.b32.cont [4/16] 0.0, 128
        %2169 = vxpose.xlu0.b32.cont [5/16] 0.0, 128
        %2170 = vxpose.xlu0.b32.cont [6/16] 0.0, 128
        %2171 = vxpose.xlu0.b32.cont [7/16] 0.0, 128
        %2172 = vxpose.xlu0.b32.cont [8/16] 0.0, 128
        %2173 = vxpose.xlu0.b32.cont [9/16] 0.0, 128
        %2174 = vxpose.xlu0.b32.cont [10/16] 0.0, 128
        %2175 = vxpose.xlu0.b32.cont [11/16] 0.0, 128
        %2176 = vxpose.xlu0.b32.cont [12/16] 0.0, 128
        %2177 = vxpose.xlu0.b32.cont [13/16] 0.0, 128
        %2178 = vxpose.xlu0.b32.cont [14/16] 0.0, 128
        %2179 = vxpose.xlu0.b32.cont [15/16] 0.0, 128
        %2180 = vxpose.xlu0.b32.end [16/16] 0.0, 128
        %v2181 = vpop.trf.xlu0
        %v2182 = vpop.trf.xlu0
        %v2183 = vpop.trf.xlu0
        %v2184 = vpop.trf.xlu0
        %v2185 = vpop.trf.xlu0
        %v2186 = vpop.trf.xlu0
        %v2187 = vpop.trf.xlu0
        %v2188 = vpop.trf.xlu0
        %v2189 = vpop.trf.xlu0
        %v2190 = vpop.trf.xlu0
        %v2191 = vpop.trf.xlu0
        %v2192 = vpop.trf.xlu0
        %v2193 = vpop.trf.xlu0
        %v2194 = vpop.trf.xlu0
        %v2195 = vpop.trf.xlu0
        %v2196 = vpop.trf.xlu0
        %2197 = vxpose.xlu0.b32.start [1/16] %v2098, 128
        %2198 = vxpose.xlu0.b32.cont [2/16] 0.0, 128
        %2199 = vxpose.xlu0.b32.cont [3/16] 0.0, 128
        %2200 = vxpose.xlu0.b32.cont [4/16] 0.0, 128
        %2201 = vxpose.xlu0.b32.cont [5/16] 0.0, 128
        %2202 = vxpose.xlu0.b32.cont [6/16] 0.0, 128
        %2203 = vxpose.xlu0.b32.cont [7/16] 0.0, 128
        %2204 = vxpose.xlu0.b32.cont [8/16] 0.0, 128
        %2205 = vxpose.xlu0.b32.cont [9/16] 0.0, 128
        %2206 = vxpose.xlu0.b32.cont [10/16] 0.0, 128
        %2207 = vxpose.xlu0.b32.cont [11/16] 0.0, 128
        %2208 = vxpose.xlu0.b32.cont [12/16] 0.0, 128
        %2209 = vxpose.xlu0.b32.cont [13/16] 0.0, 128
        %2210 = vxpose.xlu0.b32.cont [14/16] 0.0, 128
        %2211 = vxpose.xlu0.b32.cont [15/16] 0.0, 128
        %2212 = vxpose.xlu0.b32.end [16/16] 0.0, 128
        %v2213 = vpop.trf.xlu0
        %v2214 = vpop.trf.xlu0
        %v2215 = vpop.trf.xlu0
        %v2216 = vpop.trf.xlu0
        %v2217 = vpop.trf.xlu0
        %v2218 = vpop.trf.xlu0
        %v2219 = vpop.trf.xlu0
        %v2220 = vpop.trf.xlu0
        %v2221 = vpop.trf.xlu0
        %v2222 = vpop.trf.xlu0
        %v2223 = vpop.trf.xlu0
        %v2224 = vpop.trf.xlu0
        %v2225 = vpop.trf.xlu0
        %v2226 = vpop.trf.xlu0
        %v2227 = vpop.trf.xlu0
        %v2228 = vpop.trf.xlu0
        %v2229 = vcombine.low %v2117, %v2181
        %v2230 = vcombine.high %v2117, %v2181
        %v2232 = vunpack.c.l.s4 1983009808
        %v2233 = vunpack.c.0.s8 %v2232
        %v2234 = vlaneseq
        %v2235 = vshrl.u32 %v2234, 7
        %v2236 = vsub.s32 %v2233, %v2235
        %v2237 = vrot.slane %v2229, %v2236
        %v2239 = vunpack.c.l.s4 1983009808
        %v2240 = vunpack.c.0.s8 %v2239
        %v2241 = vlaneseq
        %v2242 = vshrl.u32 %v2241, 7
        %v2243 = vsub.s32 %v2240, %v2242
        %v2244 = vrot.slane %v2230, %v2243
        %v2245 = vcombine.low %v2149, %v2213
        %v2246 = vcombine.high %v2149, %v2213
        %v2248 = vunpack.c.l.s4 1983009808
        %v2249 = vunpack.c.0.s8 %v2248
        %v2250 = vlaneseq
        %v2251 = vshrl.u32 %v2250, 7
        %v2252 = vsub.s32 %v2249, %v2251
        %v2253 = vrot.slane %v2245, %v2252
        %v2255 = vunpack.c.l.s4 1983009808
        %v2256 = vunpack.c.0.s8 %v2255
        %v2257 = vlaneseq
        %v2258 = vshrl.u32 %v2257, 7
        %v2259 = vsub.s32 %v2256, %v2258
        %v2260 = vrot.slane %v2246, %v2259
        %v2261 = vcombine.low %v2237, %v2253
        %v2262 = vcombine.high %v2237, %v2253
        %v2264 = vunpack.c.l.s4 1934713408
        %v2265 = vunpack.c.0.s8 %v2264
        %v2266 = vlaneseq
        %v2267 = vshrl.u32 %v2266, 7
        %v2268 = vsub.s32 %v2265, %v2267
        %v2269 = vrot.slane %v2261, %v2268
        %v2271 = vunpack.c.l.s4 1934713408
        %v2272 = vunpack.c.0.s8 %v2271
        %v2273 = vlaneseq
        %v2274 = vshrl.u32 %v2273, 7
        %v2275 = vsub.s32 %v2272, %v2274
        %v2276 = vrot.slane %v2262, %v2275
        %v2277 = vcombine.low %v2244, %v2260
        %v2278 = vcombine.high %v2244, %v2260
        %v2280 = vunpack.c.l.s4 1934713408
        %v2281 = vunpack.c.0.s8 %v2280
        %v2282 = vlaneseq
        %v2283 = vshrl.u32 %v2282, 7
        %v2284 = vsub.s32 %v2281, %v2283
        %v2285 = vrot.slane %v2277, %v2284
        %v2287 = vunpack.c.l.s4 1934713408
        %v2288 = vunpack.c.0.s8 %v2287
        %v2289 = vlaneseq
        %v2290 = vshrl.u32 %v2289, 7
        %v2291 = vsub.s32 %v2288, %v2290
        %v2292 = vrot.slane %v2278, %v2291
        %v2293 = vcombine.high %v2269, 0.0
        %v2294 = vcombine.high %v2276, 0.0
        %v2295 = vcombine.high %v2285, 0.0
        %v2296 = vcombine.high %v2292, 0.0
        %v2297 = vcombine.low %v2269, %v2276
        %v2299 = vunpack.c.l.s4 1983009808
        %v2300 = vunpack.c.0.s8 %v2299
        %v2301 = vlaneseq
        %v2302 = vshrl.u32 %v2301, 7
        %v2303 = vsub.s32 %v2300, %v2302
        %v2304 = vrot.slane %v2297, %v2303
        %v2305 = vcombine.low %v2293, %v2294
        %v2307 = vunpack.c.l.s4 1983009808
        %v2308 = vunpack.c.0.s8 %v2307
        %v2309 = vlaneseq
        %v2310 = vshrl.u32 %v2309, 7
        %v2311 = vsub.s32 %v2308, %v2310
        %v2312 = vrot.slane %v2305, %v2311
        %v2313 = vcombine.low %v2285, %v2292
        %v2315 = vunpack.c.l.s4 1983009808
        %v2316 = vunpack.c.0.s8 %v2315
        %v2317 = vlaneseq
        %v2318 = vshrl.u32 %v2317, 7
        %v2319 = vsub.s32 %v2316, %v2318
        %v2320 = vrot.slane %v2313, %v2319
        %v2321 = vcombine.low %v2295, %v2296
        %v2323 = vunpack.c.l.s4 1983009808
        %v2324 = vunpack.c.0.s8 %v2323
        %v2325 = vlaneseq
        %v2326 = vshrl.u32 %v2325, 7
        %v2327 = vsub.s32 %v2324, %v2326
        %v2328 = vrot.slane %v2321, %v2327
        %v2329 = vcombine.low %v2304, %v2312
        %v2330 = vcombine.high %v2304, %v2312
        %v2332 = vunpack.c.l.s4 1934713408
        %v2333 = vunpack.c.0.s8 %v2332
        %v2334 = vlaneseq
        %v2335 = vshrl.u32 %v2334, 7
        %v2336 = vsub.s32 %v2333, %v2335
        %v2337 = vrot.slane %v2329, %v2336
        %v2339 = vunpack.c.l.s4 1934713408
        %v2340 = vunpack.c.0.s8 %v2339
        %v2341 = vlaneseq
        %v2342 = vshrl.u32 %v2341, 7
        %v2343 = vsub.s32 %v2340, %v2342
        %v2344 = vrot.slane %v2330, %v2343
        %v2345 = vcombine.low %v2320, %v2328
        %v2346 = vcombine.high %v2320, %v2328
        %v2348 = vunpack.c.l.s4 1934713408
        %v2349 = vunpack.c.0.s8 %v2348
        %v2350 = vlaneseq
        %v2351 = vshrl.u32 %v2350, 7
        %v2352 = vsub.s32 %v2349, %v2351
        %v2353 = vrot.slane %v2345, %v2352
        %v2355 = vunpack.c.l.s4 1934713408
        %v2356 = vunpack.c.0.s8 %v2355
        %v2357 = vlaneseq
        %v2358 = vshrl.u32 %v2357, 7
        %v2359 = vsub.s32 %v2356, %v2358
        %v2360 = vrot.slane %v2346, %v2359
        %v2361 = vcombine.low %v2337, %v2353
        %v2362 = vcombine.high %v2337, %v2353
        %v2363 = vcombine.low %v2344, %v2360
        %v2364 = vcombine.high %v2344, %v2360
        %2366 = vrot.lane.b32.xlu0 %v2362, 8
        %v2367 = vpop.permute.xlu0 %2366
        %2370 = vrot.lane.b32.xlu0 %v2363, 16
        %v2371 = vpop.permute.xlu0 %2370
        %2374 = vrot.lane.b32.xlu0 %v2364, 24
        %v2375 = vpop.permute.xlu0 %2374
        %v2377 = vsel %vm1309, %v2361, %v2367
        %vm2378 = vcmask 130048
        %v2379 = vsel %vm2378, %v2377, %v2371
        %vm2380 = vcmask 195584
        %v2381 = vsel %vm2380, %v2379, %v2375
        %v2382 = vpack.c.bf16 %v2381, %v2381
        %v2383 = vld [vmem:[%s1044] sm:$0xf]
        %v2384 = vld [vmem:[%s1044 + $0x4] sm:$0xf]
        %v2385 = vld [vmem:[%s1044 + $0x8] sm:$0xf]
        %v2386 = vld [vmem:[%s1044 + $0xc] sm:$0xf]
        %v2387 = vld [vmem:[%s871] sm:$0x1]
        %v2389 = vlaneseq
        %v2390 = vshrl.u32 %v2389, 7
        %v2391 = vsub.s32 0, %v2390
        %v2392 = vrot.slane %v2387, %v2391
        %v2398 = vunpack.c.l.b16 %v2383
        %v2399 = vunpack.c.l.b16 %v2384
        %v2400 = vunpack.c.l.b16 %v2385
        %v2401 = vunpack.c.l.b16 %v2386
        %v2402 = vpack.c.b16 %v2399, %v2398
        %v2403 = vpack.c.b16 %v2401, %v2400
        %v2407 = vsel %vm1118, %v2382, 0
        %2409 = vmatprep.subr.bf16.mxu0 0
        %2410 = vmatpush1.bf16.msra.mxu0 0
        %2411 = vmatprep.subr.bf16.mxu0 0
        %2412 = vmatpush1.bf16.msra.mxu0 0
        %2413 = vmatprep.subr.bf16.mxu0 0
        %2414 = vmatpush1.bf16.msra.mxu0 0
        %2415 = vmatprep.subr.bf16.mxu0 0
        %2416 = vmatpush1.bf16.msra.mxu0 0
        %2417 = vmatprep.subr.bf16.mxu0 0
        %2418 = vmatpush1.bf16.msra.mxu0 0
        %2419 = vmatprep.subr.bf16.mxu0 0
        %2420 = vmatpush1.bf16.msra.mxu0 0
        %2421 = vmatprep.subr.bf16.mxu0 0
        %2422 = vmatpush1.bf16.msra.mxu0 %v2403
        %2423 = vmatprep.subr.bf16.mxu0 0
        %2424 = vmatpush1.bf16.msra.mxu0 %v2402
        %2425 = vmatprep.subr.bf16.mxu0 0
        %2426 = vmatpush2.bf16.msra.mxu0 0
        %2427 = vmatprep.subr.bf16.mxu0 0
        %2428 = vmatpush2.bf16.msra.mxu0 0
        %2429 = vmatprep.subr.bf16.mxu0 0
        %2430 = vmatpush2.bf16.msra.mxu0 0
        %2431 = vmatprep.subr.bf16.mxu0 0
        %2432 = vmatpush2.bf16.msra.mxu0 0
        %2433 = vmatprep.subr.bf16.mxu0 0
        %2434 = vmatpush2.bf16.msra.mxu0 0
        %2435 = vmatprep.subr.bf16.mxu0 0
        %2436 = vmatpush2.bf16.msra.mxu0 0
        %2437 = vmatprep.subr.bf16.mxu0 0
        %2438 = vmatpush2.bf16.msra.mxu0 0
        %2439 = vmatprep.subr.bf16.mxu0 0
        %2440 = vmatpush2.bf16.msra.mxu0 0
        %2441 = vmatprep.mubr.bf16.mxu0 0
        %2442 = vmatmul.mubr.bf16.gmra.mxu0 %v2407
        %v2443 = vpop.f32.mrf.mxu0
        %v2444 = vadd.f32 %v2392, %v2443
        %v2445 = vpop.f32.mrf.mxu0
        %v2446 = vpop.f32.mrf.mxu0
        %v2447 = vpop.f32.mrf.mxu0
        %2448 = vdwg.mxu0
        %v2449 = vadd.f32 %v1093, %v2444
        %v2450 = vld [vmem:[%s879] sm:$0x1]
        %v2451 = vld [vmem:[%s887] sm:$0x1]
        %v2452 = vsel %vm1118, %v2449, 0.0
        %2453 = vadd.xlane.f32.xlu0 %v2452
        %v2454 = vpop.xlane.xlu0 %2453
        %v2455 = vrcp.pop 32.0
        %v2456 = vmul.f32 %v2454, %v2455
        %v2457 = vsub.f32 %v2449, %v2456
        %v2458 = vmul.f32 %v2457, %v2457
        %v2459 = vsel %vm1118, %v2458, 0.0
        %2460 = vadd.xlane.f32.xlu0 %v2459
        %v2461 = vpop.xlane.xlu0 %2460
        %v2462 = vmul.f32 %v2461, %v2455
        %v2463 = vadd.f32 %v2462, 1e-12
        %v2464 = vrsqrt.pop %v2463
        %v2465 = vmul.f32 %v2457, %v2464
        %v2467 = vlaneseq
        %v2468 = vshrl.u32 %v2467, 7
        %v2469 = vsub.s32 0, %v2468
        %v2470 = vrot.slane %v2450, %v2469
        %v2472 = vmul.f32 %v2465, %v2470
        %v2474 = vlaneseq
        %v2475 = vshrl.u32 %v2474, 7
        %v2476 = vsub.s32 0, %v2475
        %v2477 = vrot.slane %v2451, %v2476
        %v2479 = vadd.f32 %v2472, %v2477
        %v2480 = vpack.c.bf16 %v2479, %v2479
        %v2481 = vld [vmem:[%s1049] sm:$0xf]
        %v2482 = vld [vmem:[%s1049 + $0x4] sm:$0xf]
        %v2483 = vld [vmem:[%s1049 + $0x8] sm:$0xf]
        %v2484 = vld [vmem:[%s1049 + $0xc] sm:$0xf]
        %v2485 = vld [vmem:[%s895] sm:$0x1]
        %v2487 = vlaneseq
        %v2488 = vshrl.u32 %v2487, 7
        %v2489 = vsub.s32 0, %v2488
        %v2490 = vrot.slane %v2485, %v2489
        %v2496 = vunpack.c.l.b16 %v2481
        %v2497 = vunpack.c.l.b16 %v2482
        %v2498 = vunpack.c.l.b16 %v2483
        %v2499 = vunpack.c.l.b16 %v2484
        %v2500 = vpack.c.b16 %v2497, %v2496
        %v2501 = vpack.c.b16 %v2499, %v2498
        %v2505 = vsel %vm1118, %v2480, 0
        %2507 = vmatprep.subr.bf16.mxu0 0
        %2508 = vmatpush1.bf16.msra.mxu0 0
        %2509 = vmatprep.subr.bf16.mxu0 0
        %2510 = vmatpush1.bf16.msra.mxu0 0
        %2511 = vmatprep.subr.bf16.mxu0 0
        %2512 = vmatpush1.bf16.msra.mxu0 0
        %2513 = vmatprep.subr.bf16.mxu0 0
        %2514 = vmatpush1.bf16.msra.mxu0 0
        %2515 = vmatprep.subr.bf16.mxu0 0
        %2516 = vmatpush1.bf16.msra.mxu0 0
        %2517 = vmatprep.subr.bf16.mxu0 0
        %2518 = vmatpush1.bf16.msra.mxu0 0
        %2519 = vmatprep.subr.bf16.mxu0 0
        %2520 = vmatpush1.bf16.msra.mxu0 %v2501
        %2521 = vmatprep.subr.bf16.mxu0 0
        %2522 = vmatpush1.bf16.msra.mxu0 %v2500
        %2523 = vmatprep.subr.bf16.mxu0 0
        %2524 = vmatpush2.bf16.msra.mxu0 0
        %2525 = vmatprep.subr.bf16.mxu0 0
        %2526 = vmatpush2.bf16.msra.mxu0 0
        %2527 = vmatprep.subr.bf16.mxu0 0
        %2528 = vmatpush2.bf16.msra.mxu0 0
        %2529 = vmatprep.subr.bf16.mxu0 0
        %2530 = vmatpush2.bf16.msra.mxu0 0
        %2531 = vmatprep.subr.bf16.mxu0 0
        %2532 = vmatpush2.bf16.msra.mxu0 0
        %2533 = vmatprep.subr.bf16.mxu0 0
        %2534 = vmatpush2.bf16.msra.mxu0 0
        %2535 = vmatprep.subr.bf16.mxu0 0
        %2536 = vmatpush2.bf16.msra.mxu0 0
        %2537 = vmatprep.subr.bf16.mxu0 0
        %2538 = vmatpush2.bf16.msra.mxu0 0
        %2539 = vmatprep.mubr.bf16.mxu0 0
        %2540 = vmatmul.mubr.bf16.gmra.mxu0 %v2505
        %v2541 = vpop.f32.mrf.mxu0
        %v2542 = vadd.f32 %v2490, %v2541
        %v2543 = vpop.f32.mrf.mxu0
        %v2544 = vpop.f32.mrf.mxu0
        %v2545 = vpop.f32.mrf.mxu0
        %2546 = vdwg.mxu0
        %v2547 = vmul.f32 %v2542, 0.5
        %v2548 = vmul.f32 %v2542, 0.044715
        %v2549 = vmul.f32 %v2548, %v2542
        %v2550 = vmul.f32 %v2549, %v2542
        %v2551 = vadd.f32 %v2542, %v2550
        %v2552 = vmul.f32 %v2551, 0.7978846
        %v2553 = vtanh.pop %v2552
        %v2554 = vadd.f32 %v2553, 1.0
        %v2555 = vmul.f32 %v2547, %v2554
        %v2556 = vpack.c.bf16 %v2555, %v2555
        %v2557 = vld [vmem:[%s1054] sm:$0xf]
        %v2558 = vld [vmem:[%s1054 + $0x4] sm:$0xf]
        %v2559 = vld [vmem:[%s1054 + $0x8] sm:$0xf]
        %v2560 = vld [vmem:[%s1054 + $0xc] sm:$0xf]
        %v2561 = vld [vmem:[%s1054 + $0x10] sm:$0xf]
        %v2562 = vld [vmem:[%s1054 + $0x14] sm:$0xf]
        %v2563 = vld [vmem:[%s1054 + $0x18] sm:$0xf]
        %v2564 = vld [vmem:[%s1054 + $0x1c] sm:$0xf]
        %v2565 = vld [vmem:[%s903] sm:$0x1]
        %v2567 = vlaneseq
        %v2568 = vshrl.u32 %v2567, 7
        %v2569 = vsub.s32 0, %v2568
        %v2570 = vrot.slane %v2565, %v2569
        %v2580 = vunpack.c.l.b16 %v2557
        %v2581 = vunpack.c.l.b16 %v2558
        %v2582 = vunpack.c.l.b16 %v2559
        %v2583 = vunpack.c.l.b16 %v2560
        %v2584 = vunpack.c.l.b16 %v2561
        %v2585 = vunpack.c.l.b16 %v2562
        %v2586 = vunpack.c.l.b16 %v2563
        %v2587 = vunpack.c.l.b16 %v2564
        %v2588 = vpack.c.b16 %v2581, %v2580
        %v2589 = vpack.c.b16 %v2583, %v2582
        %v2590 = vpack.c.b16 %v2585, %v2584
        %v2591 = vpack.c.b16 %v2587, %v2586
        %vm2596 = vcmask 523264
        %v2598 = vsel %vm2596, %v2556, 0
        %2600 = vmatprep.subr.bf16.mxu0 0
        %2601 = vmatpush1.bf16.msra.mxu0 0
        %2602 = vmatprep.subr.bf16.mxu0 0
        %2603 = vmatpush1.bf16.msra.mxu0 0
        %2604 = vmatprep.subr.bf16.mxu0 0
        %2605 = vmatpush1.bf16.msra.mxu0 0
        %2606 = vmatprep.subr.bf16.mxu0 0
        %2607 = vmatpush1.bf16.msra.mxu0 0
        %2608 = vmatprep.subr.bf16.mxu0 0
        %2609 = vmatpush1.bf16.msra.mxu0 %v2591
        %2610 = vmatprep.subr.bf16.mxu0 0
        %2611 = vmatpush1.bf16.msra.mxu0 %v2590
        %2612 = vmatprep.subr.bf16.mxu0 0
        %2613 = vmatpush1.bf16.msra.mxu0 %v2589
        %2614 = vmatprep.subr.bf16.mxu0 0
        %2615 = vmatpush1.bf16.msra.mxu0 %v2588
        %2616 = vmatprep.subr.bf16.mxu0 0
        %2617 = vmatpush2.bf16.msra.mxu0 0
        %2618 = vmatprep.subr.bf16.mxu0 0
        %2619 = vmatpush2.bf16.msra.mxu0 0
        %2620 = vmatprep.subr.bf16.mxu0 0
        %2621 = vmatpush2.bf16.msra.mxu0 0
        %2622 = vmatprep.subr.bf16.mxu0 0
        %2623 = vmatpush2.bf16.msra.mxu0 0
        %2624 = vmatprep.subr.bf16.mxu0 0
        %2625 = vmatpush2.bf16.msra.mxu0 0
        %2626 = vmatprep.subr.bf16.mxu0 0
        %2627 = vmatpush2.bf16.msra.mxu0 0
        %2628 = vmatprep.subr.bf16.mxu0 0
        %2629 = vmatpush2.bf16.msra.mxu0 0
        %2630 = vmatprep.subr.bf16.mxu0 0
        %2631 = vmatpush2.bf16.msra.mxu0 0
        %2632 = vmatprep.mubr.bf16.mxu0 0
        %2633 = vmatmul.mubr.bf16.gmra.mxu0 %v2598
        %v2634 = vpop.f32.mrf.mxu0
        %v2635 = vadd.f32 %v2570, %v2634
        %v2636 = vpop.f32.mrf.mxu0
        %v2637 = vpop.f32.mrf.mxu0
        %v2638 = vpop.f32.mrf.mxu0
        %2639 = vdwg.mxu0
        %v2640 = vadd.f32 %v2479, %v2635
        %v2641 = vld [vmem:[%s911] sm:$0x1]
        %v2642 = vld [vmem:[%s919] sm:$0x1]
        %v2643 = vsel %vm1118, %v2640, 0.0
        %2644 = vadd.xlane.f32.xlu0 %v2643
        %v2645 = vpop.xlane.xlu0 %2644
        %v2646 = vmul.f32 %v2645, %v2455
        %v2647 = vsub.f32 %v2640, %v2646
        %v2648 = vmul.f32 %v2647, %v2647
        %v2649 = vsel %vm1118, %v2648, 0.0
        %2650 = vadd.xlane.f32.xlu0 %v2649
        %v2651 = vpop.xlane.xlu0 %2650
        %v2652 = vmul.f32 %v2651, %v2455
        %v2653 = vadd.f32 %v2652, 1e-12
        %v2654 = vrsqrt.pop %v2653
        %v2655 = vmul.f32 %v2647, %v2654
        %v2657 = vlaneseq
        %v2658 = vshrl.u32 %v2657, 7
        %v2659 = vsub.s32 0, %v2658
        %v2660 = vrot.slane %v2641, %v2659
        %v2662 = vmul.f32 %v2655, %v2660
        %v2664 = vlaneseq
        %v2665 = vshrl.u32 %v2664, 7
        %v2666 = vsub.s32 0, %v2665
        %v2667 = vrot.slane %v2642, %v2666
        %v2669 = vadd.f32 %v2662, %v2667
        %2670 = vst.msk [vmem:[#allocation2] sm:$0xff] %vm1118, %v2669
        %p2671 = scmp.eq.s32.totalorder %s46, 1
        // Predicated region
        $region157: #{tpu_custom_call.1} parent=99 // pred_check
          %p2672 = pneg %p2671
        $region158: #{tpu_custom_call.1} parent=99 // pred_check_branch
          %2674 = sbr.rel (%p2672) target = $region160
        $region159: #{tpu_custom_call.1} parent=99 // pred_region
          %v2675 = vpack.c.bf16 %v2669, %v2669
          %v2676 = vld [vmem:[%s16] sm:$0xf]
          %v2677 = vld [vmem:[%s16 + $0x4] sm:$0xf]
          %v2678 = vld [vmem:[%s16 + $0x8] sm:$0xf]
          %v2679 = vld [vmem:[%s16 + $0xc] sm:$0xf]
          %v2680 = vld [vmem:[#allocation19] sm:$0x1]
          %v2685 = vunpack.c.l.b16 %v2676
          %v2686 = vunpack.c.l.b16 %v2677
          %v2687 = vunpack.c.l.b16 %v2678
          %v2688 = vunpack.c.l.b16 %v2679
          %v2689 = vpack.c.b16 %v2686, %v2685
          %v2690 = vpack.c.b16 %v2688, %v2687
          %v2694 = vsel %vm1118, %v2675, 0
          %2696 = vmatprep.subr.bf16.mxu0 0
          %2697 = vmatpush1.bf16.msra.mxu0 0
          %2698 = vmatprep.subr.bf16.mxu0 0
          %2699 = vmatpush1.bf16.msra.mxu0 0
          %2700 = vmatprep.subr.bf16.mxu0 0
          %2701 = vmatpush1.bf16.msra.mxu0 0
          %2702 = vmatprep.subr.bf16.mxu0 0
          %2703 = vmatpush1.bf16.msra.mxu0 0
          %2704 = vmatprep.subr.bf16.mxu0 0
          %2705 = vmatpush1.bf16.msra.mxu0 0
          %2706 = vmatprep.subr.bf16.mxu0 0
          %2707 = vmatpush1.bf16.msra.mxu0 0
          %2708 = vmatprep.subr.bf16.mxu0 0
          %2709 = vmatpush1.bf16.msra.mxu0 %v2690
          %2710 = vmatprep.subr.bf16.mxu0 0
          %2711 = vmatpush1.bf16.msra.mxu0 %v2689
          %2712 = vmatprep.subr.bf16.mxu0 0
          %2713 = vmatpush2.bf16.msra.mxu0 0
          %2714 = vmatprep.subr.bf16.mxu0 0
          %2715 = vmatpush2.bf16.msra.mxu0 0
          %2716 = vmatprep.subr.bf16.mxu0 0
          %2717 = vmatpush2.bf16.msra.mxu0 0
          %2718 = vmatprep.subr.bf16.mxu0 0
          %2719 = vmatpush2.bf16.msra.mxu0 0
          %2720 = vmatprep.subr.bf16.mxu0 0
          %2721 = vmatpush2.bf16.msra.mxu0 0
          %2722 = vmatprep.subr.bf16.mxu0 0
          %2723 = vmatpush2.bf16.msra.mxu0 0
          %2724 = vmatprep.subr.bf16.mxu0 0
          %2725 = vmatpush2.bf16.msra.mxu0 0
          %2726 = vmatprep.subr.bf16.mxu0 0
          %2727 = vmatpush2.bf16.msra.mxu0 0
          %2728 = vmatprep.mubr.bf16.mxu0 0
          %2729 = vmatmul.mubr.bf16.gmra.mxu0 %v2694
          %v2730 = vpop.f32.mrf.mxu0
          %v2731 = vadd.f32 %v2680, %v2730
          %v2732 = vpop.f32.mrf.mxu0
          %v2733 = vpop.f32.mrf.mxu0
          %v2734 = vpop.f32.mrf.mxu0
          %2735 = vdwg.mxu0
          %v2736 = vtanh.pop %v2731
          %v2737 = vpack.c.bf16 %v2736, %v2736
          %v2738 = vld [vmem:[%s18] sm:$0xf]
          %v2739 = vld [vmem:[%s18 + $0x4] sm:$0xf]
          %v2740 = vld [vmem:[%s18 + $0x8] sm:$0xf]
          %v2741 = vld [vmem:[%s18 + $0xc] sm:$0xf]
          %v2742 = vld [vmem:[%s19] sm:$0x1]
          %v2747 = vunpack.c.l.b16 %v2738
          %v2748 = vunpack.c.l.b16 %v2739
          %v2749 = vunpack.c.l.b16 %v2740
          %v2750 = vunpack.c.l.b16 %v2741
          %v2751 = vpack.c.b16 %v2748, %v2747
          %v2752 = vpack.c.b16 %v2750, %v2749
          %v2756 = vsel %vm1118, %v2737, 0
          %2758 = vmatprep.subr.bf16.mxu0 0
          %2759 = vmatpush1.bf16.msra.mxu0 0
          %2760 = vmatprep.subr.bf16.mxu0 0
          %2761 = vmatpush1.bf16.msra.mxu0 0
          %2762 = vmatprep.subr.bf16.mxu0 0
          %2763 = vmatpush1.bf16.msra.mxu0 0
          %2764 = vmatprep.subr.bf16.mxu0 0
          %2765 = vmatpush1.bf16.msra.mxu0 0
          %2766 = vmatprep.subr.bf16.mxu0 0
          %2767 = vmatpush1.bf16.msra.mxu0 0
          %2768 = vmatprep.subr.bf16.mxu0 0
          %2769 = vmatpush1.bf16.msra.mxu0 0
          %2770 = vmatprep.subr.bf16.mxu0 0
          %2771 = vmatpush1.bf16.msra.mxu0 %v2752
          %2772 = vmatprep.subr.bf16.mxu0 0
          %2773 = vmatpush1.bf16.msra.mxu0 %v2751
          %2774 = vmatprep.subr.bf16.mxu0 0
          %2775 = vmatpush2.bf16.msra.mxu0 0
          %2776 = vmatprep.subr.bf16.mxu0 0
          %2777 = vmatpush2.bf16.msra.mxu0 0
          %2778 = vmatprep.subr.bf16.mxu0 0
          %2779 = vmatpush2.bf16.msra.mxu0 0
          %2780 = vmatprep.subr.bf16.mxu0 0
          %2781 = vmatpush2.bf16.msra.mxu0 0
          %2782 = vmatprep.subr.bf16.mxu0 0
          %2783 = vmatpush2.bf16.msra.mxu0 0
          %2784 = vmatprep.subr.bf16.mxu0 0
          %2785 = vmatpush2.bf16.msra.mxu0 0
          %2786 = vmatprep.subr.bf16.mxu0 0
          %2787 = vmatpush2.bf16.msra.mxu0 0
          %2788 = vmatprep.subr.bf16.mxu0 0
          %2789 = vmatpush2.bf16.msra.mxu0 0
          %2790 = vmatprep.mubr.bf16.mxu0 0
          %2791 = vmatmul.mubr.bf16.gmra.mxu0 %v2756
          %v2792 = vpop.f32.mrf.mxu0
          %v2793 = vadd.f32 %v2742, %v2792
          %v2794 = vpop.f32.mrf.mxu0
          %v2795 = vpop.f32.mrf.mxu0
          %v2796 = vpop.f32.mrf.mxu0
          %2797 = vdwg.mxu0
          %2798 = vst [vmem:[%s1034] sm:$0x1] %v2793
        $region160: #{tpu_custom_call.1} parent=99 // pred_fallthru
          _
        %s2799 = sand.u32 %s551, 1
        %s2800 = scalar_lea.sflag [#allocation5], %s2799
        %s2801 = sand.u32 %s551, 1
        %s2802 = scalar_lea.vmem [#allocation20], %s2801
        // Predicated region
        $region161: #{tpu_custom_call.1} parent=99 // pred_check
          %p2803 = pneg %p561
        $region162: #{tpu_custom_call.1} parent=99 // pred_check_branch
          %2805 = sbr.rel (%p2803) target = $region164
        $region163: #{tpu_custom_call.1} parent=99 // pred_region
          %s2807 = ssub.s32 16, 16
          %2808 = vsyncadd %s2800, %s2807
          %s2809 = smul.addr %s45, 16
          %s2810 = scalar_lea.hbm %s20, %s2809
          %s2812 = sshll.u32 %s2802, 4
          %s2813 = int_to_ptr.vmem [resolvable:$true] %s2812
          %2815 = dma.vmem_to_hbm [thread:$0]  %s2813, 16, %s2810, %s2800
        $region164: #{tpu_custom_call.1} parent=99 // pred_fallthru
          _
      $region100: #{tpu_custom_call.1} parent=5 // pred_fallthru
        _
      %p2816 = scmp.le.s32.totalorder 2, %s36
      // Predicated region
      $region165: #{tpu_custom_call.1} parent=5 // pred_check
        %p2817 = pneg %p2816
      $region166: #{tpu_custom_call.1} parent=5 // pred_check_branch
        %2819 = sbr.rel (%p2817) target = $region168
      $region167: #{tpu_custom_call.1} parent=5 // pred_region
        %s2820 = ssub.s32 %s36, 2
        // Predicated region
        $region169: #{tpu_custom_call.1} parent=167 // pred_check
          %p2821 = pneg %p567
        $region170: #{tpu_custom_call.1} parent=167 // pred_check_branch
          %2823 = sbr.rel (%p2821) target = $region172
        $region171: #{tpu_custom_call.1} parent=167 // pred_region
          %s2824 = sand.u32 %s552, 1
          %s2825 = scalar_lea.sflag [#allocation5], %s2824
          %s2826 = sand.u32 %s552, 1
          %s2827 = scalar_lea.vmem [#allocation20], %s2826
          %2828 = dma.done %s2825, 16
        $region172: #{tpu_custom_call.1} parent=167 // pred_fallthru
          _
      $region168: #{tpu_custom_call.1} parent=5 // pred_fallthru
        _
    $region6: #{tpu_custom_call.1} parent=1 // loop_footer
      %s40 = sadd.s32 1, %s36
    $region7: #{tpu_custom_call.1} parent=1 // loop_footer_branch
      %35 = sbr.rel target = $region3
    $region8: #{tpu_custom_call.1} parent=1 // loop_exit
      _
    %2829 = vsyncpa [#allocation4], 1
    %s2830 = scalar_lea.sflag [#allocation4], 1
    %2831 = vsyncpa %s2830, 1
    %2832 = vsyncpa [#allocation7], 1
    %s2833 = scalar_lea.sflag [#allocation7], 1
    %2834 = vsyncpa %s2833, 1
    %2835 = vsyncpa [#allocation10], 1
    %2836 = vsyncpa [#allocation5], 1
    %s2837 = scalar_lea.sflag [#allocation5], 1
    %2838 = vsyncpa %s2837, 1

</llo_original>
